<compile_context>
chip_gen: v5e
topology: v5e:2x2
jax: 0.10.0
libtpu: 0.0.40
codegen_flags: <defaults>
</compile_context>

<pallas_src>
import jax
import jax.numpy as jnp
from jax import lax
from jax.experimental import pallas as pl
from jax.experimental.pallas import tpu as pltpu


def _round_up(n, m):
    return ((n + m - 1) // m) * m


def _encode_rvq_kernel(x_ref, w_ref, b_ref, cb_ref, hsq_ref, o_ref):
    """One tile of `tile_rows` folded (B*Tp) patch rows per grid step.

    x_ref  : (TR, K)        bf16  waveform patches (rows = folded B*Tp)
    w_ref  : (K, D)         bf16  encoder conv weight (as matmul)
    b_ref  : (1, D)         f32   encoder conv bias
    cb_ref : (n_q, Cp, D)   bf16  codebooks (single layout: cross term + dequant)
    hsq_ref: (n_q, 1, Cp)   f32   0.5*||cb||^2, 1e30 sentinel on padded entries
    o_ref  : (n_q, TR)      i32   codes, lane-dense along the row axis
    """
    TR = x_ref.shape[0]
    n_q, Cp, _ = cb_ref.shape

    # --- encoder: strided conv1d == patch matmul (bf16 MXU, f32 accumulate) ---
    latent = jnp.dot(x_ref[...], w_ref[...],
                     preferred_element_type=jnp.float32)
    latent = latent + b_ref[...]                       # f32 [TR, D]

    lane_iota = lax.broadcasted_iota(jnp.int32, (TR, Cp), 1)

    residual = latent                                  # f32 accumulator
    codes = []
    # n_q is small (4); static unrolled loop is fine.
    for q in range(n_q):
        cb = cb_ref[q]                                 # [Cp, D] bf16
        # cross = residual @ cb^T, contracting D on both operands (q.k^T
        # pattern) -> no pre-transposed codebook copy needed.
        cross = lax.dot_general(
            residual.astype(jnp.bfloat16), cb,
            dimension_numbers=(((1,), (1,)), ((), ())),
            preferred_element_type=jnp.float32)        # f32 [TR, Cp]
        # argmin ||r - cb||^2 == argmin (0.5*||cb||^2 - r.cb); ||r||^2 dropped
        # and the 2x scale folded into the precomputed half ||cb||^2.
        dist = hsq_ref[q] - cross                      # f32 [TR, Cp]
        # First-match tie break via min + masked iota (matches torch.argmin).
        # TODO(synk): collapse to a single lane reduction (jnp.argmin /
        # packed-key min) once the Mosaic lowering for it is verified; the
        # two-pass form is kept because it is known to lower cleanly.
        min_d = jnp.min(dist, axis=-1, keepdims=True)
        masked = jnp.where(dist == min_d, lane_iota, Cp)
        idx = jnp.min(masked, axis=-1).astype(jnp.int32)      # [TR]
        # de-quantize via one-hot matmul (MXU-friendly gather)
        onehot = (lane_iota == idx[:, None]).astype(jnp.bfloat16)
        quant = jnp.dot(onehot, cb, preferred_element_type=jnp.float32)
        residual = residual - quant
        codes.append(idx)

    # single batched, lane-dense store of all quantizer stages.
    # TODO(synk): check the bundle dump for a sublane->lane relayout here; if
    # present, stage codes through a VMEM scratch laid out as [n_q, TR].
    o_ref[...] = jnp.stack(codes, axis=0)              # [n_q, TR]


def _vmem_limit_bytes(tile_rows, K, D, n_q, Cp):
    """Explicit scoped-VMEM budget (v5e defaults to only 16 MiB)."""
    buffers = (2 * tile_rows * K * 2            # x, bf16, double-buffered
               + 2 * n_q * tile_rows * 4        # codes out, i32, double-buffered
               + 2 * (K * D * 2 + D * 4)        # conv weight/bias (worst case)
               + 2 * (n_q * Cp * D * 2)         # codebooks (worst case 2 bufs)
               + 2 * (n_q * Cp * 4))            # 0.5*||cb||^2
    intermediates = tile_rows * (Cp * 20 + D * 16)   # cross/dist/iota/onehot/...
    est = 2 * (buffers + intermediates)              # 2x headroom for temps
    # clamp to [32 MiB, 64 MiB] so the limit is valid on v7x (64 MiB physical)
    return int(min(max(est, 32 * 1024 * 1024), 64 * 1024 * 1024))


def _build_encode_call(*, n_q, Cp, D, K, tile_rows, Np, num_tiles,
                       vmem_limit, single_buffer_constants):
    # grid-invariant operands: fetched once; single-buffer them to halve VMEM.
    const_kw = ({"pipeline_mode": pl.Buffered(1)}
                if single_buffer_constants else {})
    grid_spec = pltpu.PrefetchScalarGridSpec(
        num_scalar_prefetch=0,
        grid=(num_tiles,),
        in_specs=[
            pl.BlockSpec((tile_rows, K), lambda r: (r, 0)),
            pl.BlockSpec((K, D), lambda r: (0, 0), **const_kw),
            pl.BlockSpec((1, D), lambda r: (0, 0), **const_kw),
            pl.BlockSpec((n_q, Cp, D), lambda r: (0, 0, 0), **const_kw),
            pl.BlockSpec((n_q, 1, Cp), lambda r: (0, 0, 0), **const_kw),
        ],
        out_specs=pl.BlockSpec((n_q, tile_rows), lambda r: (0, r)),
    )
    return pl.pallas_call(
        _encode_rvq_kernel,
        out_shape=jax.ShapeDtypeStruct((n_q, Np), jnp.int32),
        grid_spec=grid_spec,
        compiler_params=pltpu.CompilerParams(
            dimension_semantics=("parallel",),
            vmem_limit_bytes=vmem_limit),
    )


def encodec_encode_pallas(x_patches, w_bf, b2, cb_bf, half_cbsq, *,
                          tile_rows=512):
    """x_patches: [B, Tp, K] f32 -> codes [n_q, B*Tp] i32 (encodec layout).

    w_bf      : [K, D]        bf16
    b2        : [1, D]        f32
    cb_bf     : [n_q, Cp, D]  bf16  (codebook entries padded to Cp lanes)
    half_cbsq : [n_q, 1, Cp]  f32   (0.5*||cb||^2, 1e30 on padded entries)
    """
    B, Tp, K = x_patches.shape
    n_q, Cp, D = cb_bf.shape
    N = B * Tp

    # --- choose the row tile: big (amortize per-step overhead, wide lane-dense
    # store), but adapted so the grid has >= 2 steps when there is enough work
    # (v7x megacore shards the 'parallel' row-tile axis across 2 TCs).
    N128 = _round_up(N, 128)
    tr = max(128, min(_round_up(tile_rows, 128), N128))
    if N128 >= 256 and N128 <= tr:
        tr = _round_up(N128 // 2, 128)
    Np = _round_up(N, tr)
    num_tiles = Np // tr

    # fold batch+time into one row axis, pad rows, cast MXU operand to bf16
    rows = x_patches.reshape(N, K)
    if Np != N:
        rows = jnp.pad(rows, ((0, Np - N), (0, 0)))
    rows = rows.astype(jnp.bfloat16)

    vmem_limit = _vmem_limit_bytes(tr, K, D, n_q, Cp)
    call_kwargs = dict(n_q=n_q, Cp=Cp, D=D, K=K, tile_rows=tr, Np=Np,
                       num_tiles=num_tiles, vmem_limit=vmem_limit)
    args = (rows, w_bf, b2, cb_bf, half_cbsq)

    try:
        codes_qn = _build_encode_call(
            single_buffer_constants=True, **call_kwargs)(*args)
    except Exception:
        # TODO(synk): pl.Buffered(1) rejected on this JAX/Mosaic build; fall
        # back to default double-buffering of the grid-invariant operands.
        codes_qn = _build_encode_call(
            single_buffer_constants=False, **call_kwargs)(*args)

    return codes_qn[:, :N]                             # [n_q, B*Tp]


class EncodecWrapperPallas:
    """JAX/Pallas analogue of EncodecWrapper (synthetic encodec)."""

    def __init__(self, *, sample_rate=24000, output_hz=75,
                 bandwidth=6.0, total_quantizers=16, codebook_bins=64,
                 latent_dim=32, stride=16, tile_rows=512, key=None):
        self.sample_rate = sample_rate
        self.output_hz = output_hz
        # matches: num_quantizers = int(bandwidth / 24 * total_quantizers)
        self.num_quantizers = int(bandwidth / 24 * total_quantizers)  # -> 4
        self.codebook_size = codebook_bins
        self.latent_dim = latent_dim
        self.stride = stride          # encoder downsample factor (kernel==stride)
        # per-generation tuning: v7x ~512 (64 MiB VMEM), v6e/v5e can use 1024-2048
        self.tile_rows = tile_rows

        key = jax.random.PRNGKey(0) if key is None else key
        kw, kb, kc = jax.random.split(key, 3)
        # Conv1d(1, D, kernel_size=stride, stride=stride) expressed as a
        # [K, D] matmul weight + [D] bias (deterministic synthetic init).
        self.enc_w = (jax.random.normal(kw, (stride, latent_dim), jnp.float32)
                      * (1.0 / jnp.sqrt(stride)))
        self.enc_b = jax.random.normal(kb, (latent_dim,), jnp.float32) * 0.01
        # RVQ codebooks: [n_q, bins, D]
        self.codebooks = jax.random.normal(
            kc, (self.num_quantizers, codebook_bins, latent_dim), jnp.float32)

        # --- kernel-ready constants, hoisted out of forward() (cached once) ---
        n_q, C, D = self.codebooks.shape
        Cp = _round_up(C, 128)                         # codebook axis -> lanes
        cb_pad = self.codebooks
        if Cp != C:
            cb_pad = jnp.pad(self.codebooks, ((0, 0), (0, Cp - C), (0, 0)))
        self._cb_bf = cb_pad.astype(jnp.bfloat16)      # [n_q, Cp, D]
        half_sq = 0.5 * jnp.sum(cb_pad * cb_pad, axis=-1)        # [n_q, Cp] f32
        entry_ids = jnp.arange(Cp, dtype=jnp.int32)
        half_sq = jnp.where(entry_ids[None, :] < C, half_sq, jnp.float32(1e30))
        self._half_cbsq = half_sq.reshape(n_q, 1, Cp)
        self._w_bf = self.enc_w.astype(jnp.bfloat16)   # [K, D]
        self._b2 = self.enc_b.reshape(1, D).astype(jnp.float32)

    def forward(self, x, return_encoded=True):
        assert return_encoded is True
        # accept [B, T] or [B, 1, T] like the torch wrapper
        if x.ndim == 3:
            x = x[:, 0, :]
        B, T = x.shape
        assert T % self.stride == 0
        Tp = T // self.stride
        # patchify (kernel_size == stride): pure reshape glue
        x_patches = x.reshape(B, Tp, self.stride)
        codes_qn = encodec_encode_pallas(
            x_patches, self._w_bf, self._b2, self._cb_bf, self._half_cbsq,
            tile_rows=self.tile_rows)                            # [n_q, B*Tp]
        # encodec 'b n_q t' layout, then rearrange to 'b t n_q'
        codes_bnt = codes_qn.reshape(self.num_quantizers, B, Tp)
        codes = jnp.transpose(codes_bnt, (1, 2, 0))              # [B, Tp, n_q]
        return (None, codes, None)

    # TODO(synk): decode_from_codebook_indices (full SEANet decoder) is out of
    # scope for this synthetic kernel; only the encode/forward path is built.


if __name__ == "__main__":
    key = jax.random.PRNGKey(0)
    k_model, k_x = jax.random.split(key)

    model = EncodecWrapperPallas(key=k_model)

    B, T = 2, 128                      # small waveform: 2 clips of 128 samples
    x = jax.random.normal(k_x, (B, T), jnp.float32)

    _, codes, _ = model.forward(x, return_encoded=True)
    codes = jax.block_until_ready(codes)

    # sanity checks on semantics: shape [B, T', n_q], int codes in range
    Tp = T // model.stride
    assert codes.shape == (B, Tp, model.num_quantizers), codes.shape
    assert codes.dtype == jnp.int32
    assert int(jnp.min(codes)) >= 0
    assert int(jnp.max(codes)) < model.codebook_size

    print("KERNEL_OK")
</pallas_src>

<mosaic_0001>
module attributes {stable_mosaic.version = 11 : i64} {
  func.func @_encode_rvq_kernel(%arg0: i32, %arg1: memref<128x16xbf16, #tpu.memory_space<vmem>>, %arg2: memref<16x32xbf16, #tpu.memory_space<vmem>>, %arg3: memref<1x32xf32, #tpu.memory_space<vmem>>, %arg4: memref<4x128x32xbf16, #tpu.memory_space<vmem>>, %arg5: memref<4x1x128xf32, #tpu.memory_space<vmem>>, %arg6: memref<4x128xi32, #tpu.memory_space<vmem>>) attributes {dimension_semantics = [#tpu.dimension_semantics<parallel>], iteration_bounds = array<i64: 1>, scalar_prefetch = 0 : i64, scratch_operands = 0 : i64, tpu.core_type = #tpu.core_type<tc>, window_params = [{transform_indices = @transform_0, window_bounds = array<i64: 128, 16>}, {pipeline_mode = #tpu.pipeline_mode<synchronous>, transform_indices = @transform_1, window_bounds = array<i64: 16, 32>}, {pipeline_mode = #tpu.pipeline_mode<synchronous>, transform_indices = @transform_2, window_bounds = array<i64: 1, 32>}, {pipeline_mode = #tpu.pipeline_mode<synchronous>, transform_indices = @transform_3, window_bounds = array<i64: 4, 128, 32>}, {pipeline_mode = #tpu.pipeline_mode<synchronous>, transform_indices = @transform_4, window_bounds = array<i64: 4, 1, 128>}, {transform_indices = @transform_5, window_bounds = array<i64: 4, 128>}]} {
    %c0 = arith.constant 0 : index
    %c0_0 = arith.constant 0 : index
    %0 = vector.load %arg1[%c0, %c0_0] : memref<128x16xbf16, #tpu.memory_space<vmem>>, vector<128x16xbf16>
    %c0_1 = arith.constant 0 : index
    %c0_2 = arith.constant 0 : index
    %1 = vector.load %arg2[%c0_1, %c0_2] : memref<16x32xbf16, #tpu.memory_space<vmem>>, vector<16x32xbf16>
    %cst = arith.constant dense<0.000000e+00> : vector<128x32xf32>
    %2 = tpu.matmul %0, %1, %cst {dimension_numbers = #tpu.dot_dimension_numbers<[1], [0], [0], [1], [0, 0, 1, 1], [], []>} : vector<128x16xbf16>, vector<16x32xbf16>, vector<128x32xf32> -> vector<128x32xf32>
    %c0_3 = arith.constant 0 : index
    %c0_4 = arith.constant 0 : index
    %3 = vector.load %arg3[%c0_3, %c0_4] : memref<1x32xf32, #tpu.memory_space<vmem>>, vector<1x32xf32>
    %4 = vector.broadcast %3 : vector<1x32xf32> to vector<128x32xf32>
    %5 = arith.addf %2, %4 : vector<128x32xf32>
    %6 = tpu.iota {dimensions = array<i32: 1>} : vector<128x128xi32>
    %c0_5 = arith.constant 0 : index
    %c0_6 = arith.constant 0 : index
    %c0_7 = arith.constant 0 : index
    %7 = vector.load %arg4[%c0_5, %c0_6, %c0_7] : memref<4x128x32xbf16, #tpu.memory_space<vmem>>, vector<1x128x32xbf16>
    %8 = vector.shape_cast %7 : vector<1x128x32xbf16> to vector<128x32xbf16>
    %9 = arith.truncf %5 : vector<128x32xf32> to vector<128x32xbf16>
    %cst_8 = arith.constant dense<0.000000e+00> : vector<128x128xf32>
    %10 = tpu.matmul %9, %8, %cst_8 {dimension_numbers = #tpu.dot_dimension_numbers<[1], [1], [0], [0], [0, 0, 1, 0], [], []>} : vector<128x32xbf16>, vector<128x32xbf16>, vector<128x128xf32> -> vector<128x128xf32>
    %c0_9 = arith.constant 0 : index
    %c0_10 = arith.constant 0 : index
    %c0_11 = arith.constant 0 : index
    %11 = vector.load %arg5[%c0_9, %c0_10, %c0_11] : memref<4x1x128xf32, #tpu.memory_space<vmem>>, vector<1x1x128xf32>
    %12 = vector.shape_cast %11 : vector<1x1x128xf32> to vector<1x128xf32>
    %13 = vector.broadcast %12 : vector<1x128xf32> to vector<128x128xf32>
    %14 = arith.subf %13, %10 : vector<128x128xf32>
    %cst_12 = arith.constant dense<0x7F800000> : vector<128xf32>
    %15 = vector.multi_reduction <minimumf>, %14, %cst_12 [1] : vector<128x128xf32> to vector<128xf32>
    %16 = vector.shape_cast %15 : vector<128xf32> to vector<128x1xf32>
    %17 = vector.broadcast %16 : vector<128x1xf32> to vector<128x128xf32>
    %18 = arith.cmpf oeq, %14, %17 : vector<128x128xf32>
    %c128_i32 = arith.constant 128 : i32
    %19 = vector.broadcast %c128_i32 : i32 to vector<128x128xi32>
    %20 = arith.select %18, %6, %19 : vector<128x128xi1>, vector<128x128xi32>
    %cst_13 = arith.constant dense<2147483647> : vector<128xi32>
    %21 = vector.multi_reduction <minsi>, %20, %cst_13 [1] : vector<128x128xi32> to vector<128xi32>
    %22 = vector.shape_cast %21 : vector<128xi32> to vector<128x1xi32>
    %23 = vector.broadcast %22 : vector<128x1xi32> to vector<128x128xi32>
    %24 = arith.cmpi eq, %6, %23 : vector<128x128xi32>
    %25 = arith.extui %24 : vector<128x128xi1> to vector<128x128xi32>
    %26 = arith.sitofp %25 : vector<128x128xi32> to vector<128x128xf32>
    %27 = arith.truncf %26 : vector<128x128xf32> to vector<128x128xbf16>
    %cst_14 = arith.constant dense<0.000000e+00> : vector<128x32xf32>
    %28 = tpu.matmul %27, %8, %cst_14 {dimension_numbers = #tpu.dot_dimension_numbers<[1], [0], [0], [1], [0, 0, 1, 1], [], []>} : vector<128x128xbf16>, vector<128x32xbf16>, vector<128x32xf32> -> vector<128x32xf32>
    %29 = arith.subf %5, %28 : vector<128x32xf32>
    %c1 = arith.constant 1 : index
    %c0_15 = arith.constant 0 : index
    %c0_16 = arith.constant 0 : index
    %30 = vector.load %arg4[%c1, %c0_15, %c0_16] : memref<4x128x32xbf16, #tpu.memory_space<vmem>>, vector<1x128x32xbf16>
    %31 = vector.shape_cast %30 : vector<1x128x32xbf16> to vector<128x32xbf16>
    %32 = arith.truncf %29 : vector<128x32xf32> to vector<128x32xbf16>
    %cst_17 = arith.constant dense<0.000000e+00> : vector<128x128xf32>
    %33 = tpu.matmul %32, %31, %cst_17 {dimension_numbers = #tpu.dot_dimension_numbers<[1], [1], [0], [0], [0, 0, 1, 0], [], []>} : vector<128x32xbf16>, vector<128x32xbf16>, vector<128x128xf32> -> vector<128x128xf32>
    %c1_18 = arith.constant 1 : index
    %c0_19 = arith.constant 0 : index
    %c0_20 = arith.constant 0 : index
    %34 = vector.load %arg5[%c1_18, %c0_19, %c0_20] : memref<4x1x128xf32, #tpu.memory_space<vmem>>, vector<1x1x128xf32>
    %35 = vector.shape_cast %34 : vector<1x1x128xf32> to vector<1x128xf32>
    %36 = vector.broadcast %35 : vector<1x128xf32> to vector<128x128xf32>
    %37 = arith.subf %36, %33 : vector<128x128xf32>
    %cst_21 = arith.constant dense<0x7F800000> : vector<128xf32>
    %38 = vector.multi_reduction <minimumf>, %37, %cst_21 [1] : vector<128x128xf32> to vector<128xf32>
    %39 = vector.shape_cast %38 : vector<128xf32> to vector<128x1xf32>
    %40 = vector.broadcast %39 : vector<128x1xf32> to vector<128x128xf32>
    %41 = arith.cmpf oeq, %37, %40 : vector<128x128xf32>
    %c128_i32_22 = arith.constant 128 : i32
    %42 = vector.broadcast %c128_i32_22 : i32 to vector<128x128xi32>
    %43 = arith.select %41, %6, %42 : vector<128x128xi1>, vector<128x128xi32>
    %cst_23 = arith.constant dense<2147483647> : vector<128xi32>
    %44 = vector.multi_reduction <minsi>, %43, %cst_23 [1] : vector<128x128xi32> to vector<128xi32>
    %45 = vector.shape_cast %44 : vector<128xi32> to vector<128x1xi32>
    %46 = vector.broadcast %45 : vector<128x1xi32> to vector<128x128xi32>
    %47 = arith.cmpi eq, %6, %46 : vector<128x128xi32>
    %48 = arith.extui %47 : vector<128x128xi1> to vector<128x128xi32>
    %49 = arith.sitofp %48 : vector<128x128xi32> to vector<128x128xf32>
    %50 = arith.truncf %49 : vector<128x128xf32> to vector<128x128xbf16>
    %cst_24 = arith.constant dense<0.000000e+00> : vector<128x32xf32>
    %51 = tpu.matmul %50, %31, %cst_24 {dimension_numbers = #tpu.dot_dimension_numbers<[1], [0], [0], [1], [0, 0, 1, 1], [], []>} : vector<128x128xbf16>, vector<128x32xbf16>, vector<128x32xf32> -> vector<128x32xf32>
    %52 = arith.subf %29, %51 : vector<128x32xf32>
    %c2 = arith.constant 2 : index
    %c0_25 = arith.constant 0 : index
    %c0_26 = arith.constant 0 : index
    %53 = vector.load %arg4[%c2, %c0_25, %c0_26] : memref<4x128x32xbf16, #tpu.memory_space<vmem>>, vector<1x128x32xbf16>
    %54 = vector.shape_cast %53 : vector<1x128x32xbf16> to vector<128x32xbf16>
    %55 = arith.truncf %52 : vector<128x32xf32> to vector<128x32xbf16>
    %cst_27 = arith.constant dense<0.000000e+00> : vector<128x128xf32>
    %56 = tpu.matmul %55, %54, %cst_27 {dimension_numbers = #tpu.dot_dimension_numbers<[1], [1], [0], [0], [0, 0, 1, 0], [], []>} : vector<128x32xbf16>, vector<128x32xbf16>, vector<128x128xf32> -> vector<128x128xf32>
    %c2_28 = arith.constant 2 : index
    %c0_29 = arith.constant 0 : index
    %c0_30 = arith.constant 0 : index
    %57 = vector.load %arg5[%c2_28, %c0_29, %c0_30] : memref<4x1x128xf32, #tpu.memory_space<vmem>>, vector<1x1x128xf32>
    %58 = vector.shape_cast %57 : vector<1x1x128xf32> to vector<1x128xf32>
    %59 = vector.broadcast %58 : vector<1x128xf32> to vector<128x128xf32>
    %60 = arith.subf %59, %56 : vector<128x128xf32>
    %cst_31 = arith.constant dense<0x7F800000> : vector<128xf32>
    %61 = vector.multi_reduction <minimumf>, %60, %cst_31 [1] : vector<128x128xf32> to vector<128xf32>
    %62 = vector.shape_cast %61 : vector<128xf32> to vector<128x1xf32>
    %63 = vector.broadcast %62 : vector<128x1xf32> to vector<128x128xf32>
    %64 = arith.cmpf oeq, %60, %63 : vector<128x128xf32>
    %c128_i32_32 = arith.constant 128 : i32
    %65 = vector.broadcast %c128_i32_32 : i32 to vector<128x128xi32>
    %66 = arith.select %64, %6, %65 : vector<128x128xi1>, vector<128x128xi32>
    %cst_33 = arith.constant dense<2147483647> : vector<128xi32>
    %67 = vector.multi_reduction <minsi>, %66, %cst_33 [1] : vector<128x128xi32> to vector<128xi32>
    %68 = vector.shape_cast %67 : vector<128xi32> to vector<128x1xi32>
    %69 = vector.broadcast %68 : vector<128x1xi32> to vector<128x128xi32>
    %70 = arith.cmpi eq, %6, %69 : vector<128x128xi32>
    %71 = arith.extui %70 : vector<128x128xi1> to vector<128x128xi32>
    %72 = arith.sitofp %71 : vector<128x128xi32> to vector<128x128xf32>
    %73 = arith.truncf %72 : vector<128x128xf32> to vector<128x128xbf16>
    %cst_34 = arith.constant dense<0.000000e+00> : vector<128x32xf32>
    %74 = tpu.matmul %73, %54, %cst_34 {dimension_numbers = #tpu.dot_dimension_numbers<[1], [0], [0], [1], [0, 0, 1, 1], [], []>} : vector<128x128xbf16>, vector<128x32xbf16>, vector<128x32xf32> -> vector<128x32xf32>
    %75 = arith.subf %52, %74 : vector<128x32xf32>
    %c3 = arith.constant 3 : index
    %c0_35 = arith.constant 0 : index
    %c0_36 = arith.constant 0 : index
    %76 = vector.load %arg4[%c3, %c0_35, %c0_36] : memref<4x128x32xbf16, #tpu.memory_space<vmem>>, vector<1x128x32xbf16>
    %77 = vector.shape_cast %76 : vector<1x128x32xbf16> to vector<128x32xbf16>
    %78 = arith.truncf %75 : vector<128x32xf32> to vector<128x32xbf16>
    %cst_37 = arith.constant dense<0.000000e+00> : vector<128x128xf32>
    %79 = tpu.matmul %78, %77, %cst_37 {dimension_numbers = #tpu.dot_dimension_numbers<[1], [1], [0], [0], [0, 0, 1, 0], [], []>} : vector<128x32xbf16>, vector<128x32xbf16>, vector<128x128xf32> -> vector<128x128xf32>
    %c3_38 = arith.constant 3 : index
    %c0_39 = arith.constant 0 : index
    %c0_40 = arith.constant 0 : index
    %80 = vector.load %arg5[%c3_38, %c0_39, %c0_40] : memref<4x1x128xf32, #tpu.memory_space<vmem>>, vector<1x1x128xf32>
    %81 = vector.shape_cast %80 : vector<1x1x128xf32> to vector<1x128xf32>
    %82 = vector.broadcast %81 : vector<1x128xf32> to vector<128x128xf32>
    %83 = arith.subf %82, %79 : vector<128x128xf32>
    %cst_41 = arith.constant dense<0x7F800000> : vector<128xf32>
    %84 = vector.multi_reduction <minimumf>, %83, %cst_41 [1] : vector<128x128xf32> to vector<128xf32>
    %85 = vector.shape_cast %84 : vector<128xf32> to vector<128x1xf32>
    %86 = vector.broadcast %85 : vector<128x1xf32> to vector<128x128xf32>
    %87 = arith.cmpf oeq, %83, %86 : vector<128x128xf32>
    %c128_i32_42 = arith.constant 128 : i32
    %88 = vector.broadcast %c128_i32_42 : i32 to vector<128x128xi32>
    %89 = arith.select %87, %6, %88 : vector<128x128xi1>, vector<128x128xi32>
    %cst_43 = arith.constant dense<2147483647> : vector<128xi32>
    %90 = vector.multi_reduction <minsi>, %89, %cst_43 [1] : vector<128x128xi32> to vector<128xi32>
    %91 = vector.shape_cast %21 : vector<128xi32> to vector<1x128xi32>
    %92 = vector.shape_cast %44 : vector<128xi32> to vector<1x128xi32>
    %93 = vector.shape_cast %67 : vector<128xi32> to vector<1x128xi32>
    %94 = vector.shape_cast %90 : vector<128xi32> to vector<1x128xi32>
    %95 = tpu.concatenate %91, %92, %93, %94 in 0 : vector<1x128xi32>, vector<1x128xi32>, vector<1x128xi32>, vector<1x128xi32> -> vector<4x128xi32>
    %c0_44 = arith.constant 0 : index
    %c0_45 = arith.constant 0 : index
    %96 = vector.load %arg6[%c0_44, %c0_45] : memref<4x128xi32, #tpu.memory_space<vmem>>, vector<4x128xi32>
    tpu.vector_store %arg6[%c0_44, %c0_45], %95 {strides = array<i32>} : memref<4x128xi32, #tpu.memory_space<vmem>>, vector<4x128xi32>,
    return
  }
  func.func @transform_0(%arg0: i32) -> (i32, i32) {
    %c0_i32 = arith.constant 0 : i32
    %c0_i32_0 = arith.constant 0 : i32
    return %arg0, %c0_i32 : i32, i32
  }
  func.func @transform_1(%arg0: i32) -> (i32, i32) {
    %c0_i32 = arith.constant 0 : i32
    %c0_i32_0 = arith.constant 0 : i32
    %c0_i32_1 = arith.constant 0 : i32
    return %c0_i32, %c0_i32_0 : i32, i32
  }
  func.func @transform_2(%arg0: i32) -> (i32, i32) {
    %c0_i32 = arith.constant 0 : i32
    %c0_i32_0 = arith.constant 0 : i32
    %c0_i32_1 = arith.constant 0 : i32
    return %c0_i32, %c0_i32_0 : i32, i32
  }
  func.func @transform_3(%arg0: i32) -> (i32, i32, i32) {
    %c0_i32 = arith.constant 0 : i32
    %c0_i32_0 = arith.constant 0 : i32
    %c0_i32_1 = arith.constant 0 : i32
    %c0_i32_2 = arith.constant 0 : i32
    return %c0_i32, %c0_i32_0, %c0_i32_1 : i32, i32, i32
  }
  func.func @transform_4(%arg0: i32) -> (i32, i32, i32) {
    %c0_i32 = arith.constant 0 : i32
    %c0_i32_0 = arith.constant 0 : i32
    %c0_i32_1 = arith.constant 0 : i32
    %c0_i32_2 = arith.constant 0 : i32
    return %c0_i32, %c0_i32_0, %c0_i32_1 : i32, i32, i32
  }
  func.func @transform_5(%arg0: i32) -> (i32, i32) {
    %c0_i32 = arith.constant 0 : i32
    %c0_i32_0 = arith.constant 0 : i32
    return %c0_i32, %arg0 : i32, i32
  }
}

module attributes {stable_mosaic.version = 11 : i64} {
  func.func @_encode_rvq_kernel(%arg0: i32, %arg1: memref<128x16xbf16, #tpu.memory_space<vmem>>, %arg2: memref<16x32xbf16, #tpu.memory_space<vmem>>, %arg3: memref<1x32xf32, #tpu.memory_space<vmem>>, %arg4: memref<4x128x32xbf16, #tpu.memory_space<vmem>>, %arg5: memref<4x1x128xf32, #tpu.memory_space<vmem>>, %arg6: memref<4x128xi32, #tpu.memory_space<vmem>>) attributes {dimension_semantics = [#tpu.dimension_semantics<parallel>], iteration_bounds = array<i64: 1>, scalar_prefetch = 0 : i64, scratch_operands = 0 : i64, tpu.core_type = #tpu.core_type<tc>, window_params = [{transform_indices = @transform_0, window_bounds = array<i64: 128, 16>}, {pipeline_mode = #tpu.pipeline_mode<synchronous>, transform_indices = @transform_1, window_bounds = array<i64: 16, 32>}, {pipeline_mode = #tpu.pipeline_mode<synchronous>, transform_indices = @transform_2, window_bounds = array<i64: 1, 32>}, {pipeline_mode = #tpu.pipeline_mode<synchronous>, transform_indices = @transform_3, window_bounds = array<i64: 4, 128, 32>}, {pipeline_mode = #tpu.pipeline_mode<synchronous>, transform_indices = @transform_4, window_bounds = array<i64: 4, 1, 128>}, {transform_indices = @transform_5, window_bounds = array<i64: 4, 128>}]} {
    %c0 = arith.constant 0 : index
    %c0_0 = arith.constant 0 : index
    %0 = vector.load %arg1[%c0, %c0_0] : memref<128x16xbf16, #tpu.memory_space<vmem>>, vector<128x16xbf16>
    %c0_1 = arith.constant 0 : index
    %c0_2 = arith.constant 0 : index
    %1 = vector.load %arg2[%c0_1, %c0_2] : memref<16x32xbf16, #tpu.memory_space<vmem>>, vector<16x32xbf16>
    %cst = arith.constant dense<0.000000e+00> : vector<128x32xf32>
    %2 = tpu.matmul %0, %1, %cst {dimension_numbers = #tpu.dot_dimension_numbers<[1], [0], [0], [1], [0, 0, 1, 1], [], []>} : vector<128x16xbf16>, vector<16x32xbf16>, vector<128x32xf32> -> vector<128x32xf32>
    %c0_3 = arith.constant 0 : index
    %c0_4 = arith.constant 0 : index
    %3 = vector.load %arg3[%c0_3, %c0_4] : memref<1x32xf32, #tpu.memory_space<vmem>>, vector<1x32xf32>
    %4 = vector.broadcast %3 : vector<1x32xf32> to vector<128x32xf32>
    %5 = arith.addf %2, %4 : vector<128x32xf32>
    %6 = tpu.iota {dimensions = array<i32: 1>} : vector<128x128xi32>
    %c0_5 = arith.constant 0 : index
    %c0_6 = arith.constant 0 : index
    %c0_7 = arith.constant 0 : index
    %7 = vector.load %arg4[%c0_5, %c0_6, %c0_7] : memref<4x128x32xbf16, #tpu.memory_space<vmem>>, vector<1x128x32xbf16>
    %8 = vector.shape_cast %7 : vector<1x128x32xbf16> to vector<128x32xbf16>
    %9 = arith.truncf %5 : vector<128x32xf32> to vector<128x32xbf16>
    %cst_8 = arith.constant dense<0.000000e+00> : vector<128x128xf32>
    %10 = tpu.matmul %9, %8, %cst_8 {dimension_numbers = #tpu.dot_dimension_numbers<[1], [1], [0], [0], [0, 0, 1, 0], [], []>} : vector<128x32xbf16>, vector<128x32xbf16>, vector<128x128xf32> -> vector<128x128xf32>
    %c0_9 = arith.constant 0 : index
    %c0_10 = arith.constant 0 : index
    %c0_11 = arith.constant 0 : index
    %11 = vector.load %arg5[%c0_9, %c0_10, %c0_11] : memref<4x1x128xf32, #tpu.memory_space<vmem>>, vector<1x1x128xf32>
    %12 = vector.shape_cast %11 : vector<1x1x128xf32> to vector<1x128xf32>
    %13 = vector.broadcast %12 : vector<1x128xf32> to vector<128x128xf32>
    %14 = arith.subf %13, %10 : vector<128x128xf32>
    %cst_12 = arith.constant dense<0x7F800000> : vector<128xf32>
    %15 = vector.multi_reduction <minimumf>, %14, %cst_12 [1] : vector<128x128xf32> to vector<128xf32>
    %16 = vector.shape_cast %15 : vector<128xf32> to vector<128x1xf32>
    %17 = vector.broadcast %16 : vector<128x1xf32> to vector<128x128xf32>
    %18 = arith.cmpf oeq, %14, %17 : vector<128x128xf32>
    %c128_i32 = arith.constant 128 : i32
    %19 = vector.broadcast %c128_i32 : i32 to vector<128x128xi32>
    %20 = arith.select %18, %6, %19 : vector<128x128xi1>, vector<128x128xi32>
    %cst_13 = arith.constant dense<2147483647> : vector<128xi32>
    %21 = vector.multi_reduction <minsi>, %20, %cst_13 [1] : vector<128x128xi32> to vector<128xi32>
    %22 = vector.shape_cast %21 : vector<128xi32> to vector<128x1xi32>
    %23 = vector.broadcast %22 : vector<128x1xi32> to vector<128x128xi32>
    %24 = arith.cmpi eq, %6, %23 : vector<128x128xi32>
    %25 = arith.extui %24 : vector<128x128xi1> to vector<128x128xi32>
    %26 = arith.sitofp %25 : vector<128x128xi32> to vector<128x128xf32>
    %27 = arith.truncf %26 : vector<128x128xf32> to vector<128x128xbf16>
    %cst_14 = arith.constant dense<0.000000e+00> : vector<128x32xf32>
    %28 = tpu.matmul %27, %8, %cst_14 {dimension_numbers = #tpu.dot_dimension_numbers<[1], [0], [0], [1], [0, 0, 1, 1], [], []>} : vector<128x128xbf16>, vector<128x32xbf16>, vector<128x32xf32> -> vector<128x32xf32>
    %29 = arith.subf %5, %28 : vector<128x32xf32>
    %c1 = arith.constant 1 : index
    %c0_15 = arith.constant 0 : index
    %c0_16 = arith.constant 0 : index
    %30 = vector.load %arg4[%c1, %c0_15, %c0_16] : memref<4x128x32xbf16, #tpu.memory_space<vmem>>, vector<1x128x32xbf16>
    %31 = vector.shape_cast %30 : vector<1x128x32xbf16> to vector<128x32xbf16>
    %32 = arith.truncf %29 : vector<128x32xf32> to vector<128x32xbf16>
    %cst_17 = arith.constant dense<0.000000e+00> : vector<128x128xf32>
    %33 = tpu.matmul %32, %31, %cst_17 {dimension_numbers = #tpu.dot_dimension_numbers<[1], [1], [0], [0], [0, 0, 1, 0], [], []>} : vector<128x32xbf16>, vector<128x32xbf16>, vector<128x128xf32> -> vector<128x128xf32>
    %c1_18 = arith.constant 1 : index
    %c0_19 = arith.constant 0 : index
    %c0_20 = arith.constant 0 : index
    %34 = vector.load %arg5[%c1_18, %c0_19, %c0_20] : memref<4x1x128xf32, #tpu.memory_space<vmem>>, vector<1x1x128xf32>
    %35 = vector.shape_cast %34 : vector<1x1x128xf32> to vector<1x128xf32>
    %36 = vector.broadcast %35 : vector<1x128xf32> to vector<128x128xf32>
    %37 = arith.subf %36, %33 : vector<128x128xf32>
    %cst_21 = arith.constant dense<0x7F800000> : vector<128xf32>
    %38 = vector.multi_reduction <minimumf>, %37, %cst_21 [1] : vector<128x128xf32> to vector<128xf32>
    %39 = vector.shape_cast %38 : vector<128xf32> to vector<128x1xf32>
    %40 = vector.broadcast %39 : vector<128x1xf32> to vector<128x128xf32>
    %41 = arith.cmpf oeq, %37, %40 : vector<128x128xf32>
    %c128_i32_22 = arith.constant 128 : i32
    %42 = vector.broadcast %c128_i32_22 : i32 to vector<128x128xi32>
    %43 = arith.select %41, %6, %42 : vector<128x128xi1>, vector<128x128xi32>
    %cst_23 = arith.constant dense<2147483647> : vector<128xi32>
    %44 = vector.multi_reduction <minsi>, %43, %cst_23 [1] : vector<128x128xi32> to vector<128xi32>
    %45 = vector.shape_cast %44 : vector<128xi32> to vector<128x1xi32>
    %46 = vector.broadcast %45 : vector<128x1xi32> to vector<128x128xi32>
    %47 = arith.cmpi eq, %6, %46 : vector<128x128xi32>
    %48 = arith.extui %47 : vector<128x128xi1> to vector<128x128xi32>
    %49 = arith.sitofp %48 : vector<128x128xi32> to vector<128x128xf32>
    %50 = arith.truncf %49 : vector<128x128xf32> to vector<128x128xbf16>
    %cst_24 = arith.constant dense<0.000000e+00> : vector<128x32xf32>
    %51 = tpu.matmul %50, %31, %cst_24 {dimension_numbers = #tpu.dot_dimension_numbers<[1], [0], [0], [1], [0, 0, 1, 1], [], []>} : vector<128x128xbf16>, vector<128x32xbf16>, vector<128x32xf32> -> vector<128x32xf32>
    %52 = arith.subf %29, %51 : vector<128x32xf32>
    %c2 = arith.constant 2 : index
    %c0_25 = arith.constant 0 : index
    %c0_26 = arith.constant 0 : index
    %53 = vector.load %arg4[%c2, %c0_25, %c0_26] : memref<4x128x32xbf16, #tpu.memory_space<vmem>>, vector<1x128x32xbf16>
    %54 = vector.shape_cast %53 : vector<1x128x32xbf16> to vector<128x32xbf16>
    %55 = arith.truncf %52 : vector<128x32xf32> to vector<128x32xbf16>
    %cst_27 = arith.constant dense<0.000000e+00> : vector<128x128xf32>
    %56 = tpu.matmul %55, %54, %cst_27 {dimension_numbers = #tpu.dot_dimension_numbers<[1], [1], [0], [0], [0, 0, 1, 0], [], []>} : vector<128x32xbf16>, vector<128x32xbf16>, vector<128x128xf32> -> vector<128x128xf32>
    %c2_28 = arith.constant 2 : index
    %c0_29 = arith.constant 0 : index
    %c0_30 = arith.constant 0 : index
    %57 = vector.load %arg5[%c2_28, %c0_29, %c0_30] : memref<4x1x128xf32, #tpu.memory_space<vmem>>, vector<1x1x128xf32>
    %58 = vector.shape_cast %57 : vector<1x1x128xf32> to vector<1x128xf32>
    %59 = vector.broadcast %58 : vector<1x128xf32> to vector<128x128xf32>
    %60 = arith.subf %59, %56 : vector<128x128xf32>
    %cst_31 = arith.constant dense<0x7F800000> : vector<128xf32>
    %61 = vector.multi_reduction <minimumf>, %60, %cst_31 [1] : vector<128x128xf32> to vector<128xf32>
    %62 = vector.shape_cast %61 : vector<128xf32> to vector<128x1xf32>
    %63 = vector.broadcast %62 : vector<128x1xf32> to vector<128x128xf32>
    %64 = arith.cmpf oeq, %60, %63 : vector<128x128xf32>
    %c128_i32_32 = arith.constant 128 : i32
    %65 = vector.broadcast %c128_i32_32 : i32 to vector<128x128xi32>
    %66 = arith.select %64, %6, %65 : vector<128x128xi1>, vector<128x128xi32>
    %cst_33 = arith.constant dense<2147483647> : vector<128xi32>
    %67 = vector.multi_reduction <minsi>, %66, %cst_33 [1] : vector<128x128xi32> to vector<128xi32>
    %68 = vector.shape_cast %67 : vector<128xi32> to vector<128x1xi32>
    %69 = vector.broadcast %68 : vector<128x1xi32> to vector<128x128xi32>
    %70 = arith.cmpi eq, %6, %69 : vector<128x128xi32>
    %71 = arith.extui %70 : vector<128x128xi1> to vector<128x128xi32>
    %72 = arith.sitofp %71 : vector<128x128xi32> to vector<128x128xf32>
    %73 = arith.truncf %72 : vector<128x128xf32> to vector<128x128xbf16>
    %cst_34 = arith.constant dense<0.000000e+00> : vector<128x32xf32>
    %74 = tpu.matmul %73, %54, %cst_34 {dimension_numbers = #tpu.dot_dimension_numbers<[1], [0], [0], [1], [0, 0, 1, 1], [], []>} : vector<128x128xbf16>, vector<128x32xbf16>, vector<128x32xf32> -> vector<128x32xf32>
    %75 = arith.subf %52, %74 : vector<128x32xf32>
    %c3 = arith.constant 3 : index
    %c0_35 = arith.constant 0 : index
    %c0_36 = arith.constant 0 : index
    %76 = vector.load %arg4[%c3, %c0_35, %c0_36] : memref<4x128x32xbf16, #tpu.memory_space<vmem>>, vector<1x128x32xbf16>
    %77 = vector.shape_cast %76 : vector<1x128x32xbf16> to vector<128x32xbf16>
    %78 = arith.truncf %75 : vector<128x32xf32> to vector<128x32xbf16>
    %cst_37 = arith.constant dense<0.000000e+00> : vector<128x128xf32>
    %79 = tpu.matmul %78, %77, %cst_37 {dimension_numbers = #tpu.dot_dimension_numbers<[1], [1], [0], [0], [0, 0, 1, 0], [], []>} : vector<128x32xbf16>, vector<128x32xbf16>, vector<128x128xf32> -> vector<128x128xf32>
    %c3_38 = arith.constant 3 : index
    %c0_39 = arith.constant 0 : index
    %c0_40 = arith.constant 0 : index
    %80 = vector.load %arg5[%c3_38, %c0_39, %c0_40] : memref<4x1x128xf32, #tpu.memory_space<vmem>>, vector<1x1x128xf32>
    %81 = vector.shape_cast %80 : vector<1x1x128xf32> to vector<1x128xf32>
    %82 = vector.broadcast %81 : vector<1x128xf32> to vector<128x128xf32>
    %83 = arith.subf %82, %79 : vector<128x128xf32>
    %cst_41 = arith.constant dense<0x7F800000> : vector<128xf32>
    %84 = vector.multi_reduction <minimumf>, %83, %cst_41 [1] : vector<128x128xf32> to vector<128xf32>
    %85 = vector.shape_cast %84 : vector<128xf32> to vector<128x1xf32>
    %86 = vector.broadcast %85 : vector<128x1xf32> to vector<128x128xf32>
    %87 = arith.cmpf oeq, %83, %86 : vector<128x128xf32>
    %c128_i32_42 = arith.constant 128 : i32
    %88 = vector.broadcast %c128_i32_42 : i32 to vector<128x128xi32>
    %89 = arith.select %87, %6, %88 : vector<128x128xi1>, vector<128x128xi32>
    %cst_43 = arith.constant dense<2147483647> : vector<128xi32>
    %90 = vector.multi_reduction <minsi>, %89, %cst_43 [1] : vector<128x128xi32> to vector<128xi32>
    %91 = vector.shape_cast %21 : vector<128xi32> to vector<1x128xi32>
    %92 = vector.shape_cast %44 : vector<128xi32> to vector<1x128xi32>
    %93 = vector.shape_cast %67 : vector<128xi32> to vector<1x128xi32>
    %94 = vector.shape_cast %90 : vector<128xi32> to vector<1x128xi32>
    %95 = tpu.concatenate %91, %92, %93, %94 in 0 : vector<1x128xi32>, vector<1x128xi32>, vector<1x128xi32>, vector<1x128xi32> -> vector<4x128xi32>
    %c0_44 = arith.constant 0 : index
    %c0_45 = arith.constant 0 : index
    %96 = vector.load %arg6[%c0_44, %c0_45] : memref<4x128xi32, #tpu.memory_space<vmem>>, vector<4x128xi32>
    tpu.vector_store %arg6[%c0_44, %c0_45], %95 {strides = array<i32>} : memref<4x128xi32, #tpu.memory_space<vmem>>, vector<4x128xi32>,
    return
  }
  func.func @transform_0(%arg0: i32) -> (i32, i32) {
    %c0_i32 = arith.constant 0 : i32
    %c0_i32_0 = arith.constant 0 : i32
    return %arg0, %c0_i32 : i32, i32
  }
  func.func @transform_1(%arg0: i32) -> (i32, i32) {
    %c0_i32 = arith.constant 0 : i32
    %c0_i32_0 = arith.constant 0 : i32
    %c0_i32_1 = arith.constant 0 : i32
    return %c0_i32, %c0_i32_0 : i32, i32
  }
  func.func @transform_2(%arg0: i32) -> (i32, i32) {
    %c0_i32 = arith.constant 0 : i32
    %c0_i32_0 = arith.constant 0 : i32
    %c0_i32_1 = arith.constant 0 : i32
    return %c0_i32, %c0_i32_0 : i32, i32
  }
  func.func @transform_3(%arg0: i32) -> (i32, i32, i32) {
    %c0_i32 = arith.constant 0 : i32
    %c0_i32_0 = arith.constant 0 : i32
    %c0_i32_1 = arith.constant 0 : i32
    %c0_i32_2 = arith.constant 0 : i32
    return %c0_i32, %c0_i32_0, %c0_i32_1 : i32, i32, i32
  }
  func.func @transform_4(%arg0: i32) -> (i32, i32, i32) {
    %c0_i32 = arith.constant 0 : i32
    %c0_i32_0 = arith.constant 0 : i32
    %c0_i32_1 = arith.constant 0 : i32
    %c0_i32_2 = arith.constant 0 : i32
    return %c0_i32, %c0_i32_0, %c0_i32_1 : i32, i32, i32
  }
  func.func @transform_5(%arg0: i32) -> (i32, i32) {
    %c0_i32 = arith.constant 0 : i32
    %c0_i32_0 = arith.constant 0 : i32
    return %c0_i32, %arg0 : i32, i32
  }
}

</mosaic_0001>

<llo_original>
// kernel: tpu_custom_call.1
$region0: #{tpu_custom_call.1}
  #allocation0 [shape = 'u32[]', space=smem, size = 0x4, offset = 0x4, fixed_abs, tag = 'smem constant byte address 0x4 - core index']
  #allocation1 [shape = 'u32[72,128]{1,0:T(1,128)}', space=vmem, size = 0x9000, scoped, tag = 'internal scratch']
  %s0 = inlined_call_operand.vmem [shape: bf16[128,16], index: 0, kind: input, shape index: {}]
  %s1 = inlined_call_operand.vmem [shape: bf16[16,32], index: 1, kind: input, shape index: {}]
  %s2 = inlined_call_operand.vmem [shape: f32[1,32], index: 2, kind: input, shape index: {}]
  %s3 = inlined_call_operand.vmem [shape: bf16[4,128,32], index: 3, kind: input, shape index: {}]
  %s4 = inlined_call_operand.vmem [shape: f32[4,1,128], index: 4, kind: input, shape index: {}]
  %s5 = inlined_call_operand.hbm [shape: s32[4,128], index: 5, kind: output, shape index: {}]
  %s6 = sld [smem:[#allocation0]]
  $region30: #{tpu_custom_call.1} parent=0
    _
  %s8 = ssub.s32 1, %s6
  %s9 = scalar_select 0, %s8, %s6
  $region1: #{tpu_custom_call.1} parent=0
    #allocation2 [shape = 'u8[2048]{0}', space=vmem, size = 0x800, scoped, tag = 'output window, operand 0, single buffered']
    #allocation3 [shape = 's32[1]{0}', space=sflag, size = 0x4, scoped, tag = 'scoped memory for tpu_custom_call.1']
    %10 = vsyncpa [#allocation3], 0
    // Predicated region
    $region2: #{tpu_custom_call.1} parent=1 // pred_check
      _
    $region3: #{tpu_custom_call.1} parent=1 // pred_check_branch
      %12 = sbr.rel (0) target = $region5
    $region4: #{tpu_custom_call.1} parent=1 // pred_region
      _
    $region5: #{tpu_custom_call.1} parent=1 // pred_fallthru
      _
    // Predicated region
    $region6: #{tpu_custom_call.1} parent=1 // pred_check
      _
    $region7: #{tpu_custom_call.1} parent=1 // pred_check_branch
      %14 = sbr.rel (0) target = $region9
    $region8: #{tpu_custom_call.1} parent=1 // pred_region
      _
    $region9: #{tpu_custom_call.1} parent=1 // pred_fallthru
      _
    // Predicated region
    $region10: #{tpu_custom_call.1} parent=1 // pred_check
      _
    $region11: #{tpu_custom_call.1} parent=1 // pred_check_branch
      %16 = sbr.rel (0) target = $region13
    $region12: #{tpu_custom_call.1} parent=1 // pred_region
      _
    $region13: #{tpu_custom_call.1} parent=1 // pred_fallthru
      _
    // Predicated region
    $region14: #{tpu_custom_call.1} parent=1 // pred_check
      _
    $region15: #{tpu_custom_call.1} parent=1 // pred_check_branch
      %18 = sbr.rel (0) target = $region17
    $region16: #{tpu_custom_call.1} parent=1 // pred_region
      _
    $region17: #{tpu_custom_call.1} parent=1 // pred_fallthru
      _
    // Predicated region
    $region18: #{tpu_custom_call.1} parent=1 // pred_check
      _
    $region19: #{tpu_custom_call.1} parent=1 // pred_check_branch
      %20 = sbr.rel (0) target = $region21
    $region20: #{tpu_custom_call.1} parent=1 // pred_region
      _
    $region21: #{tpu_custom_call.1} parent=1 // pred_fallthru
      _
    %v22 = vld [vmem:[%s0] sm:$0xf]
    %v23 = vld [vmem:[%s0 + $0x4] sm:$0xf]
    %v24 = vld [vmem:[%s0 + $0x8] sm:$0xf]
    %v25 = vld [vmem:[%s0 + $0xc] sm:$0xf]
    %v26 = vld [vmem:[%s0 + $0x10] sm:$0xf]
    %v27 = vld [vmem:[%s0 + $0x14] sm:$0xf]
    %v28 = vld [vmem:[%s0 + $0x18] sm:$0xf]
    %v29 = vld [vmem:[%s0 + $0x1c] sm:$0xf]
    %v30 = vld [vmem:[%s0 + $0x20] sm:$0xf]
    %v31 = vld [vmem:[%s0 + $0x24] sm:$0xf]
    %v32 = vld [vmem:[%s0 + $0x28] sm:$0xf]
    %v33 = vld [vmem:[%s0 + $0x2c] sm:$0xf]
    %v34 = vld [vmem:[%s0 + $0x30] sm:$0xf]
    %v35 = vld [vmem:[%s0 + $0x34] sm:$0xf]
    %v36 = vld [vmem:[%s0 + $0x38] sm:$0xf]
    %v37 = vld [vmem:[%s0 + $0x3c] sm:$0xf]
    %v38 = vld [vmem:[%s1] sm:$0xf]
    %v39 = vld [vmem:[%s1 + $0x4] sm:$0xf]
    %v40 = vld [vmem:[%s2] sm:$0x1]
    %v42 = vperm.slane %v40, 0
    %v60 = vunpack.c.l.b16 %v22
    %v61 = vunpack.c.l.b16 %v23
    %v62 = vunpack.c.l.b16 %v24
    %v63 = vunpack.c.l.b16 %v25
    %v64 = vunpack.c.l.b16 %v26
    %v65 = vunpack.c.l.b16 %v27
    %v66 = vunpack.c.l.b16 %v28
    %v67 = vunpack.c.l.b16 %v29
    %v68 = vunpack.c.l.b16 %v30
    %v69 = vunpack.c.l.b16 %v31
    %v70 = vunpack.c.l.b16 %v32
    %v71 = vunpack.c.l.b16 %v33
    %v72 = vunpack.c.l.b16 %v34
    %v73 = vunpack.c.l.b16 %v35
    %v74 = vunpack.c.l.b16 %v36
    %v75 = vunpack.c.l.b16 %v37
    %v76 = vpack.c.b16 %v61, %v60
    %v77 = vpack.c.b16 %v63, %v62
    %v78 = vpack.c.b16 %v65, %v64
    %v79 = vpack.c.b16 %v67, %v66
    %v80 = vpack.c.b16 %v69, %v68
    %v81 = vpack.c.b16 %v71, %v70
    %v82 = vpack.c.b16 %v73, %v72
    %v83 = vpack.c.b16 %v75, %v74
    %v86 = vunpack.c.l.b16 %v38
    %v87 = vunpack.c.l.b16 %v39
    %v88 = vpack.c.b16 %v87, %v86
    %vm90 = vcmask 130048
    %v92 = vsel %vm90, %v76, 0
    %v95 = vsel %vm90, %v77, 0
    %v98 = vsel %vm90, %v78, 0
    %v101 = vsel %vm90, %v79, 0
    %v104 = vsel %vm90, %v80, 0
    %v107 = vsel %vm90, %v81, 0
    %v110 = vsel %vm90, %v82, 0
    %v113 = vsel %vm90, %v83, 0
    %115 = vmatpush.bf16.msra.mxu0 0
    %116 = vmatpush.bf16.msra.mxu0 0
    %117 = vmatpush.bf16.msra.mxu0 0
    %118 = vmatpush.bf16.msra.mxu0 0
    %119 = vmatpush.bf16.msra.mxu0 0
    %120 = vmatpush.bf16.msra.mxu0 0
    %121 = vmatpush.bf16.msra.mxu0 0
    %122 = vmatpush.bf16.msra.mxu0 %v88
    %123 = vmatmul.bf16.gmra.mxu0 %v92
    %v124 = vpop.f32.mrf.mxu0
    %v125 = vadd.f32 %v42, %v124
    %v126 = vpop.f32.mrf.mxu0
    %v127 = vadd.f32 %v42, %v126
    %128 = vmatmul.bf16.gmra.mxu0 %v95
    %v129 = vpop.f32.mrf.mxu0
    %v130 = vadd.f32 %v42, %v129
    %v131 = vpop.f32.mrf.mxu0
    %v132 = vadd.f32 %v42, %v131
    %133 = vmatmul.bf16.gmra.mxu0 %v98
    %v134 = vpop.f32.mrf.mxu0
    %v135 = vadd.f32 %v42, %v134
    %v136 = vpop.f32.mrf.mxu0
    %v137 = vadd.f32 %v42, %v136
    %138 = vmatmul.bf16.gmra.mxu0 %v101
    %v139 = vpop.f32.mrf.mxu0
    %v140 = vadd.f32 %v42, %v139
    %v141 = vpop.f32.mrf.mxu0
    %v142 = vadd.f32 %v42, %v141
    %143 = vmatmul.bf16.gmra.mxu0 %v104
    %v144 = vpop.f32.mrf.mxu0
    %v145 = vadd.f32 %v42, %v144
    %v146 = vpop.f32.mrf.mxu0
    %v147 = vadd.f32 %v42, %v146
    %148 = vmatmul.bf16.gmra.mxu0 %v107
    %v149 = vpop.f32.mrf.mxu0
    %v150 = vadd.f32 %v42, %v149
    %v151 = vpop.f32.mrf.mxu0
    %v152 = vadd.f32 %v42, %v151
    %153 = vmatmul.bf16.gmra.mxu0 %v110
    %v154 = vpop.f32.mrf.mxu0
    %v155 = vadd.f32 %v42, %v154
    %v156 = vpop.f32.mrf.mxu0
    %v157 = vadd.f32 %v42, %v156
    %158 = vmatmul.bf16.gmra.mxu0 %v113
    %v159 = vpop.f32.mrf.mxu0
    %v160 = vadd.f32 %v42, %v159
    %v161 = vpop.f32.mrf.mxu0
    %v162 = vadd.f32 %v42, %v161
    %163 = vdwg.mxu0
    %v164 = vlaneseq
    %v165 = vand.u32 %v164, 127
    %v166 = vld [vmem:[%s3] sm:$0xf]
    %v167 = vld [vmem:[%s3 + $0x4] sm:$0xf]
    %v168 = vld [vmem:[%s3 + $0x8] sm:$0xf]
    %v169 = vld [vmem:[%s3 + $0xc] sm:$0xf]
    %v170 = vld [vmem:[%s3 + $0x10] sm:$0xf]
    %v171 = vld [vmem:[%s3 + $0x14] sm:$0xf]
    %v172 = vld [vmem:[%s3 + $0x18] sm:$0xf]
    %v173 = vld [vmem:[%s3 + $0x1c] sm:$0xf]
    %v174 = vld [vmem:[%s3 + $0x20] sm:$0xf]
    %v175 = vld [vmem:[%s3 + $0x24] sm:$0xf]
    %v176 = vld [vmem:[%s3 + $0x28] sm:$0xf]
    %v177 = vld [vmem:[%s3 + $0x2c] sm:$0xf]
    %v178 = vld [vmem:[%s3 + $0x30] sm:$0xf]
    %v179 = vld [vmem:[%s3 + $0x34] sm:$0xf]
    %v180 = vld [vmem:[%s3 + $0x38] sm:$0xf]
    %v181 = vld [vmem:[%s3 + $0x3c] sm:$0xf]
    %v182 = vpack.c.bf16 %v127, %v125
    %v183 = vpack.c.bf16 %v132, %v130
    %v184 = vpack.c.bf16 %v137, %v135
    %v185 = vpack.c.bf16 %v142, %v140
    %v186 = vpack.c.bf16 %v147, %v145
    %v187 = vpack.c.bf16 %v152, %v150
    %v188 = vpack.c.bf16 %v157, %v155
    %v189 = vpack.c.bf16 %v162, %v160
    %v206 = vunpack.c.l.b16 %v166
    %v207 = vunpack.c.l.b16 %v167
    %v208 = vunpack.c.l.b16 %v168
    %v209 = vunpack.c.l.b16 %v169
    %v210 = vunpack.c.l.b16 %v170
    %v211 = vunpack.c.l.b16 %v171
    %v212 = vunpack.c.l.b16 %v172
    %v213 = vunpack.c.l.b16 %v173
    %v214 = vunpack.c.l.b16 %v174
    %v215 = vunpack.c.l.b16 %v175
    %v216 = vunpack.c.l.b16 %v176
    %v217 = vunpack.c.l.b16 %v177
    %v218 = vunpack.c.l.b16 %v178
    %v219 = vunpack.c.l.b16 %v179
    %v220 = vunpack.c.l.b16 %v180
    %v221 = vunpack.c.l.b16 %v181
    %v222 = vpack.c.b16 %v207, %v206
    %v223 = vpack.c.b16 %v209, %v208
    %v224 = vpack.c.b16 %v211, %v210
    %v225 = vpack.c.b16 %v213, %v212
    %v226 = vpack.c.b16 %v215, %v214
    %v227 = vpack.c.b16 %v217, %v216
    %v228 = vpack.c.b16 %v219, %v218
    %v229 = vpack.c.b16 %v221, %v220
    %vm230 = vcmask 261120
    %v232 = vsel %vm230, %v182, 0
    %v235 = vsel %vm230, %v183, 0
    %v238 = vsel %vm230, %v184, 0
    %v241 = vsel %vm230, %v185, 0
    %v244 = vsel %vm230, %v186, 0
    %v247 = vsel %vm230, %v187, 0
    %v250 = vsel %vm230, %v188, 0
    %v253 = vsel %vm230, %v189, 0
    %v256 = vsel %vm230, %v222, 0
    %v259 = vsel %vm230, %v223, 0
    %v262 = vsel %vm230, %v224, 0
    %v265 = vsel %vm230, %v225, 0
    %v268 = vsel %vm230, %v226, 0
    %v271 = vsel %vm230, %v227, 0
    %v274 = vsel %vm230, %v228, 0
    %v277 = vsel %vm230, %v229, 0
    %279 = vmatpush.bf16.xpose.msra.mxu0 %v277
    %280 = vmatpush.bf16.xpose.msra.mxu0 %v274
    %281 = vmatpush.bf16.xpose.msra.mxu0 %v271
    %282 = vmatpush.bf16.xpose.msra.mxu0 %v268
    %283 = vmatpush.bf16.xpose.msra.mxu0 %v265
    %284 = vmatpush.bf16.xpose.msra.mxu0 %v262
    %285 = vmatpush.bf16.xpose.msra.mxu0 %v259
    %286 = vmatpush.bf16.xpose.msra.mxu0 %v256
    %287 = vmatmul.bf16.gmra.mxu0 %v232
    %v288 = vpop.f32.mrf.mxu0
    %v289 = vadd.f32 0.0, %v288
    %v290 = vpop.f32.mrf.mxu0
    %v291 = vadd.f32 0.0, %v290
    %292 = vmatmul.bf16.gmra.mxu0 %v235
    %v293 = vpop.f32.mrf.mxu0
    %v294 = vadd.f32 0.0, %v293
    %v295 = vpop.f32.mrf.mxu0
    %v296 = vadd.f32 0.0, %v295
    %297 = vmatmul.bf16.gmra.mxu0 %v238
    %v298 = vpop.f32.mrf.mxu0
    %v299 = vadd.f32 0.0, %v298
    %v300 = vpop.f32.mrf.mxu0
    %v301 = vadd.f32 0.0, %v300
    %302 = vmatmul.bf16.gmra.mxu0 %v241
    %v303 = vpop.f32.mrf.mxu0
    %v304 = vadd.f32 0.0, %v303
    %v305 = vpop.f32.mrf.mxu0
    %v306 = vadd.f32 0.0, %v305
    %307 = vmatmul.bf16.gmra.mxu0 %v244
    %v308 = vpop.f32.mrf.mxu0
    %v309 = vadd.f32 0.0, %v308
    %v310 = vpop.f32.mrf.mxu0
    %v311 = vadd.f32 0.0, %v310
    %312 = vmatmul.bf16.gmra.mxu0 %v247
    %v313 = vpop.f32.mrf.mxu0
    %v314 = vadd.f32 0.0, %v313
    %v315 = vpop.f32.mrf.mxu0
    %v316 = vadd.f32 0.0, %v315
    %317 = vmatmul.bf16.gmra.mxu0 %v250
    %v318 = vpop.f32.mrf.mxu0
    %v319 = vadd.f32 0.0, %v318
    %v320 = vpop.f32.mrf.mxu0
    %v321 = vadd.f32 0.0, %v320
    %322 = vmatmul.bf16.gmra.mxu0 %v253
    %v323 = vpop.f32.mrf.mxu0
    %v324 = vadd.f32 0.0, %v323
    %v325 = vpop.f32.mrf.mxu0
    %v326 = vadd.f32 0.0, %v325
    %327 = vdwg.mxu0
    %v328 = vld [vmem:[%s4] sm:$0x1]
    %v330 = vperm.slane %v328, 0
    %v332 = vsub.f32 %v330, %v289
    %v333 = vsub.f32 %v330, %v291
    %v334 = vsub.f32 %v330, %v294
    %v335 = vsub.f32 %v330, %v296
    %v336 = vsub.f32 %v330, %v299
    %v337 = vsub.f32 %v330, %v301
    %v338 = vsub.f32 %v330, %v304
    %v339 = vsub.f32 %v330, %v306
    %v340 = vsub.f32 %v330, %v309
    %v341 = vsub.f32 %v330, %v311
    %v342 = vsub.f32 %v330, %v314
    %v343 = vsub.f32 %v330, %v316
    %v344 = vsub.f32 %v330, %v319
    %v345 = vsub.f32 %v330, %v321
    %v346 = vsub.f32 %v330, %v324
    %v347 = vsub.f32 %v330, %v326
    %348 = vmin.xlane.f32.xlu0 %v332
    %v349 = vpop.xlane.xlu0 %348
    %350 = vmin.xlane.f32.xlu0 %v333
    %v351 = vpop.xlane.xlu0 %350
    %352 = vmin.xlane.f32.xlu0 %v334
    %v353 = vpop.xlane.xlu0 %352
    %354 = vmin.xlane.f32.xlu0 %v335
    %v355 = vpop.xlane.xlu0 %354
    %356 = vmin.xlane.f32.xlu0 %v336
    %v357 = vpop.xlane.xlu0 %356
    %358 = vmin.xlane.f32.xlu0 %v337
    %v359 = vpop.xlane.xlu0 %358
    %360 = vmin.xlane.f32.xlu0 %v338
    %v361 = vpop.xlane.xlu0 %360
    %362 = vmin.xlane.f32.xlu0 %v339
    %v363 = vpop.xlane.xlu0 %362
    %364 = vmin.xlane.f32.xlu0 %v340
    %v365 = vpop.xlane.xlu0 %364
    %366 = vmin.xlane.f32.xlu0 %v341
    %v367 = vpop.xlane.xlu0 %366
    %368 = vmin.xlane.f32.xlu0 %v342
    %v369 = vpop.xlane.xlu0 %368
    %370 = vmin.xlane.f32.xlu0 %v343
    %v371 = vpop.xlane.xlu0 %370
    %372 = vmin.xlane.f32.xlu0 %v344
    %v373 = vpop.xlane.xlu0 %372
    %374 = vmin.xlane.f32.xlu0 %v345
    %v375 = vpop.xlane.xlu0 %374
    %376 = vmin.xlane.f32.xlu0 %v346
    %v377 = vpop.xlane.xlu0 %376
    %378 = vmin.xlane.f32.xlu0 %v347
    %v379 = vpop.xlane.xlu0 %378
    %vm380 = vcmp.eq.f32.partialorder %v332, %v349
    %vm381 = vcmp.eq.f32.partialorder %v333, %v351
    %vm382 = vcmp.eq.f32.partialorder %v334, %v353
    %vm383 = vcmp.eq.f32.partialorder %v335, %v355
    %vm384 = vcmp.eq.f32.partialorder %v336, %v357
    %vm385 = vcmp.eq.f32.partialorder %v337, %v359
    %vm386 = vcmp.eq.f32.partialorder %v338, %v361
    %vm387 = vcmp.eq.f32.partialorder %v339, %v363
    %vm388 = vcmp.eq.f32.partialorder %v340, %v365
    %vm389 = vcmp.eq.f32.partialorder %v341, %v367
    %vm390 = vcmp.eq.f32.partialorder %v342, %v369
    %vm391 = vcmp.eq.f32.partialorder %v343, %v371
    %vm392 = vcmp.eq.f32.partialorder %v344, %v373
    %vm393 = vcmp.eq.f32.partialorder %v345, %v375
    %vm394 = vcmp.eq.f32.partialorder %v346, %v377
    %vm395 = vcmp.eq.f32.partialorder %v347, %v379
    %v396 = vsel %vm380, %v165, 128
    %v397 = vsel %vm381, %v165, 128
    %v398 = vsel %vm382, %v165, 128
    %v399 = vsel %vm383, %v165, 128
    %v400 = vsel %vm384, %v165, 128
    %v401 = vsel %vm385, %v165, 128
    %v402 = vsel %vm386, %v165, 128
    %v403 = vsel %vm387, %v165, 128
    %v404 = vsel %vm388, %v165, 128
    %v405 = vsel %vm389, %v165, 128
    %v406 = vsel %vm390, %v165, 128
    %v407 = vsel %vm391, %v165, 128
    %v408 = vsel %vm392, %v165, 128
    %v409 = vsel %vm393, %v165, 128
    %v410 = vsel %vm394, %v165, 128
    %v411 = vsel %vm395, %v165, 128
    %v412 = vand.u32 %v396, 65535
    %v413 = vshra.s32 %v396, 16
    %v414 = vcvt.s32.f32 %v412
    %v415 = vcvt.s32.f32 %v413
    %416 = vmin.xlane.f32.xlu0 %v415
    %v417 = vpop.xlane.xlu0 %416
    %vm418 = vcmp.eq.f32.partialorder %v415, %v417
    %v419 = vsel %vm418, %v414, inf
    %420 = vmin.xlane.f32.xlu0 %v419
    %v421 = vpop.xlane.xlu0 %420
    %v422 = vcvt.f32.s32 %v421
    %v423 = vcvt.f32.s32 %v417
    %v424 = vshll.u32 %v423, 16
    %v425 = vadd.s32 %v424, %v422
    %v426 = vand.u32 %v397, 65535
    %v427 = vshra.s32 %v397, 16
    %v428 = vcvt.s32.f32 %v426
    %v429 = vcvt.s32.f32 %v427
    %430 = vmin.xlane.f32.xlu0 %v429
    %v431 = vpop.xlane.xlu0 %430
    %vm432 = vcmp.eq.f32.partialorder %v429, %v431
    %v433 = vsel %vm432, %v428, inf
    %434 = vmin.xlane.f32.xlu0 %v433
    %v435 = vpop.xlane.xlu0 %434
    %v436 = vcvt.f32.s32 %v435
    %v437 = vcvt.f32.s32 %v431
    %v438 = vshll.u32 %v437, 16
    %v439 = vadd.s32 %v438, %v436
    %v440 = vand.u32 %v398, 65535
    %v441 = vshra.s32 %v398, 16
    %v442 = vcvt.s32.f32 %v440
    %v443 = vcvt.s32.f32 %v441
    %444 = vmin.xlane.f32.xlu0 %v443
    %v445 = vpop.xlane.xlu0 %444
    %vm446 = vcmp.eq.f32.partialorder %v443, %v445
    %v447 = vsel %vm446, %v442, inf
    %448 = vmin.xlane.f32.xlu0 %v447
    %v449 = vpop.xlane.xlu0 %448
    %v450 = vcvt.f32.s32 %v449
    %v451 = vcvt.f32.s32 %v445
    %v452 = vshll.u32 %v451, 16
    %v453 = vadd.s32 %v452, %v450
    %v454 = vand.u32 %v399, 65535
    %v455 = vshra.s32 %v399, 16
    %v456 = vcvt.s32.f32 %v454
    %v457 = vcvt.s32.f32 %v455
    %458 = vmin.xlane.f32.xlu0 %v457
    %v459 = vpop.xlane.xlu0 %458
    %vm460 = vcmp.eq.f32.partialorder %v457, %v459
    %v461 = vsel %vm460, %v456, inf
    %462 = vmin.xlane.f32.xlu0 %v461
    %v463 = vpop.xlane.xlu0 %462
    %v464 = vcvt.f32.s32 %v463
    %v465 = vcvt.f32.s32 %v459
    %v466 = vshll.u32 %v465, 16
    %v467 = vadd.s32 %v466, %v464
    %v468 = vand.u32 %v400, 65535
    %v469 = vshra.s32 %v400, 16
    %v470 = vcvt.s32.f32 %v468
    %v471 = vcvt.s32.f32 %v469
    %472 = vmin.xlane.f32.xlu0 %v471
    %v473 = vpop.xlane.xlu0 %472
    %vm474 = vcmp.eq.f32.partialorder %v471, %v473
    %v475 = vsel %vm474, %v470, inf
    %476 = vmin.xlane.f32.xlu0 %v475
    %v477 = vpop.xlane.xlu0 %476
    %v478 = vcvt.f32.s32 %v477
    %v479 = vcvt.f32.s32 %v473
    %v480 = vshll.u32 %v479, 16
    %v481 = vadd.s32 %v480, %v478
    %v482 = vand.u32 %v401, 65535
    %v483 = vshra.s32 %v401, 16
    %v484 = vcvt.s32.f32 %v482
    %v485 = vcvt.s32.f32 %v483
    %486 = vmin.xlane.f32.xlu0 %v485
    %v487 = vpop.xlane.xlu0 %486
    %vm488 = vcmp.eq.f32.partialorder %v485, %v487
    %v489 = vsel %vm488, %v484, inf
    %490 = vmin.xlane.f32.xlu0 %v489
    %v491 = vpop.xlane.xlu0 %490
    %v492 = vcvt.f32.s32 %v491
    %v493 = vcvt.f32.s32 %v487
    %v494 = vshll.u32 %v493, 16
    %v495 = vadd.s32 %v494, %v492
    %v496 = vand.u32 %v402, 65535
    %v497 = vshra.s32 %v402, 16
    %v498 = vcvt.s32.f32 %v496
    %v499 = vcvt.s32.f32 %v497
    %500 = vmin.xlane.f32.xlu0 %v499
    %v501 = vpop.xlane.xlu0 %500
    %vm502 = vcmp.eq.f32.partialorder %v499, %v501
    %v503 = vsel %vm502, %v498, inf
    %504 = vmin.xlane.f32.xlu0 %v503
    %v505 = vpop.xlane.xlu0 %504
    %v506 = vcvt.f32.s32 %v505
    %v507 = vcvt.f32.s32 %v501
    %v508 = vshll.u32 %v507, 16
    %v509 = vadd.s32 %v508, %v506
    %v510 = vand.u32 %v403, 65535
    %v511 = vshra.s32 %v403, 16
    %v512 = vcvt.s32.f32 %v510
    %v513 = vcvt.s32.f32 %v511
    %514 = vmin.xlane.f32.xlu0 %v513
    %v515 = vpop.xlane.xlu0 %514
    %vm516 = vcmp.eq.f32.partialorder %v513, %v515
    %v517 = vsel %vm516, %v512, inf
    %518 = vmin.xlane.f32.xlu0 %v517
    %v519 = vpop.xlane.xlu0 %518
    %v520 = vcvt.f32.s32 %v519
    %v521 = vcvt.f32.s32 %v515
    %v522 = vshll.u32 %v521, 16
    %v523 = vadd.s32 %v522, %v520
    %v524 = vand.u32 %v404, 65535
    %v525 = vshra.s32 %v404, 16
    %v526 = vcvt.s32.f32 %v524
    %v527 = vcvt.s32.f32 %v525
    %528 = vmin.xlane.f32.xlu0 %v527
    %v529 = vpop.xlane.xlu0 %528
    %vm530 = vcmp.eq.f32.partialorder %v527, %v529
    %v531 = vsel %vm530, %v526, inf
    %532 = vmin.xlane.f32.xlu0 %v531
    %v533 = vpop.xlane.xlu0 %532
    %v534 = vcvt.f32.s32 %v533
    %v535 = vcvt.f32.s32 %v529
    %v536 = vshll.u32 %v535, 16
    %v537 = vadd.s32 %v536, %v534
    %v538 = vand.u32 %v405, 65535
    %v539 = vshra.s32 %v405, 16
    %v540 = vcvt.s32.f32 %v538
    %v541 = vcvt.s32.f32 %v539
    %542 = vmin.xlane.f32.xlu0 %v541
    %v543 = vpop.xlane.xlu0 %542
    %vm544 = vcmp.eq.f32.partialorder %v541, %v543
    %v545 = vsel %vm544, %v540, inf
    %546 = vmin.xlane.f32.xlu0 %v545
    %v547 = vpop.xlane.xlu0 %546
    %v548 = vcvt.f32.s32 %v547
    %v549 = vcvt.f32.s32 %v543
    %v550 = vshll.u32 %v549, 16
    %v551 = vadd.s32 %v550, %v548
    %v552 = vand.u32 %v406, 65535
    %v553 = vshra.s32 %v406, 16
    %v554 = vcvt.s32.f32 %v552
    %v555 = vcvt.s32.f32 %v553
    %556 = vmin.xlane.f32.xlu0 %v555
    %v557 = vpop.xlane.xlu0 %556
    %vm558 = vcmp.eq.f32.partialorder %v555, %v557
    %v559 = vsel %vm558, %v554, inf
    %560 = vmin.xlane.f32.xlu0 %v559
    %v561 = vpop.xlane.xlu0 %560
    %v562 = vcvt.f32.s32 %v561
    %v563 = vcvt.f32.s32 %v557
    %v564 = vshll.u32 %v563, 16
    %v565 = vadd.s32 %v564, %v562
    %v566 = vand.u32 %v407, 65535
    %v567 = vshra.s32 %v407, 16
    %v568 = vcvt.s32.f32 %v566
    %v569 = vcvt.s32.f32 %v567
    %570 = vmin.xlane.f32.xlu0 %v569
    %v571 = vpop.xlane.xlu0 %570
    %vm572 = vcmp.eq.f32.partialorder %v569, %v571
    %v573 = vsel %vm572, %v568, inf
    %574 = vmin.xlane.f32.xlu0 %v573
    %v575 = vpop.xlane.xlu0 %574
    %v576 = vcvt.f32.s32 %v575
    %v577 = vcvt.f32.s32 %v571
    %v578 = vshll.u32 %v577, 16
    %v579 = vadd.s32 %v578, %v576
    %v580 = vand.u32 %v408, 65535
    %v581 = vshra.s32 %v408, 16
    %v582 = vcvt.s32.f32 %v580
    %v583 = vcvt.s32.f32 %v581
    %584 = vmin.xlane.f32.xlu0 %v583
    %v585 = vpop.xlane.xlu0 %584
    %vm586 = vcmp.eq.f32.partialorder %v583, %v585
    %v587 = vsel %vm586, %v582, inf
    %588 = vmin.xlane.f32.xlu0 %v587
    %v589 = vpop.xlane.xlu0 %588
    %v590 = vcvt.f32.s32 %v589
    %v591 = vcvt.f32.s32 %v585
    %v592 = vshll.u32 %v591, 16
    %v593 = vadd.s32 %v592, %v590
    %v594 = vand.u32 %v409, 65535
    %v595 = vshra.s32 %v409, 16
    %v596 = vcvt.s32.f32 %v594
    %v597 = vcvt.s32.f32 %v595
    %598 = vmin.xlane.f32.xlu0 %v597
    %v599 = vpop.xlane.xlu0 %598
    %vm600 = vcmp.eq.f32.partialorder %v597, %v599
    %v601 = vsel %vm600, %v596, inf
    %602 = vmin.xlane.f32.xlu0 %v601
    %v603 = vpop.xlane.xlu0 %602
    %v604 = vcvt.f32.s32 %v603
    %v605 = vcvt.f32.s32 %v599
    %v606 = vshll.u32 %v605, 16
    %v607 = vadd.s32 %v606, %v604
    %v608 = vand.u32 %v410, 65535
    %v609 = vshra.s32 %v410, 16
    %v610 = vcvt.s32.f32 %v608
    %v611 = vcvt.s32.f32 %v609
    %612 = vmin.xlane.f32.xlu0 %v611
    %v613 = vpop.xlane.xlu0 %612
    %vm614 = vcmp.eq.f32.partialorder %v611, %v613
    %v615 = vsel %vm614, %v610, inf
    %616 = vmin.xlane.f32.xlu0 %v615
    %v617 = vpop.xlane.xlu0 %616
    %v618 = vcvt.f32.s32 %v617
    %v619 = vcvt.f32.s32 %v613
    %v620 = vshll.u32 %v619, 16
    %v621 = vadd.s32 %v620, %v618
    %v622 = vand.u32 %v411, 65535
    %v623 = vshra.s32 %v411, 16
    %v624 = vcvt.s32.f32 %v622
    %v625 = vcvt.s32.f32 %v623
    %626 = vmin.xlane.f32.xlu0 %v625
    %v627 = vpop.xlane.xlu0 %626
    %vm628 = vcmp.eq.f32.partialorder %v625, %v627
    %v629 = vsel %vm628, %v624, inf
    %630 = vmin.xlane.f32.xlu0 %v629
    %v631 = vpop.xlane.xlu0 %630
    %v632 = vcvt.f32.s32 %v631
    %v633 = vcvt.f32.s32 %v627
    %v634 = vshll.u32 %v633, 16
    %v635 = vadd.s32 %v634, %v632
    %vm636 = vcmp.eq.s32.totalorder %v165, %v425
    %vm637 = vcmp.eq.s32.totalorder %v165, %v439
    %vm638 = vcmp.eq.s32.totalorder %v165, %v453
    %vm639 = vcmp.eq.s32.totalorder %v165, %v467
    %vm640 = vcmp.eq.s32.totalorder %v165, %v481
    %vm641 = vcmp.eq.s32.totalorder %v165, %v495
    %vm642 = vcmp.eq.s32.totalorder %v165, %v509
    %vm643 = vcmp.eq.s32.totalorder %v165, %v523
    %vm644 = vcmp.eq.s32.totalorder %v165, %v537
    %vm645 = vcmp.eq.s32.totalorder %v165, %v551
    %vm646 = vcmp.eq.s32.totalorder %v165, %v565
    %vm647 = vcmp.eq.s32.totalorder %v165, %v579
    %vm648 = vcmp.eq.s32.totalorder %v165, %v593
    %vm649 = vcmp.eq.s32.totalorder %v165, %v607
    %vm650 = vcmp.eq.s32.totalorder %v165, %v621
    %vm651 = vcmp.eq.s32.totalorder %v165, %v635
    %v652 = vsel %vm636, 1, 0
    %v653 = vsel %vm637, 1, 0
    %v654 = vsel %vm638, 1, 0
    %v655 = vsel %vm639, 1, 0
    %v656 = vsel %vm640, 1, 0
    %v657 = vsel %vm641, 1, 0
    %v658 = vsel %vm642, 1, 0
    %v659 = vsel %vm643, 1, 0
    %v660 = vsel %vm644, 1, 0
    %v661 = vsel %vm645, 1, 0
    %v662 = vsel %vm646, 1, 0
    %v663 = vsel %vm647, 1, 0
    %v664 = vsel %vm648, 1, 0
    %v665 = vsel %vm649, 1, 0
    %v666 = vsel %vm650, 1, 0
    %v667 = vsel %vm651, 1, 0
    %v668 = vcvt.s32.f32 %v652
    %v669 = vcvt.s32.f32 %v653
    %v670 = vcvt.s32.f32 %v654
    %v671 = vcvt.s32.f32 %v655
    %v672 = vcvt.s32.f32 %v656
    %v673 = vcvt.s32.f32 %v657
    %v674 = vcvt.s32.f32 %v658
    %v675 = vcvt.s32.f32 %v659
    %v676 = vcvt.s32.f32 %v660
    %v677 = vcvt.s32.f32 %v661
    %v678 = vcvt.s32.f32 %v662
    %v679 = vcvt.s32.f32 %v663
    %v680 = vcvt.s32.f32 %v664
    %v681 = vcvt.s32.f32 %v665
    %v682 = vcvt.s32.f32 %v666
    %v683 = vcvt.s32.f32 %v667
    %v684 = vpack.c.bf16 %v669, %v668
    %v685 = vpack.c.bf16 %v671, %v670
    %v686 = vpack.c.bf16 %v673, %v672
    %v687 = vpack.c.bf16 %v675, %v674
    %v688 = vpack.c.bf16 %v677, %v676
    %v689 = vpack.c.bf16 %v679, %v678
    %v690 = vpack.c.bf16 %v681, %v680
    %v691 = vpack.c.bf16 %v683, %v682
    %700 = vmatpush.bf16.msra.mxu0 %v229
    %701 = vmatpush.bf16.msra.mxu0 %v228
    %702 = vmatpush.bf16.msra.mxu0 %v227
    %703 = vmatpush.bf16.msra.mxu0 %v226
    %704 = vmatpush.bf16.msra.mxu0 %v225
    %705 = vmatpush.bf16.msra.mxu0 %v224
    %706 = vmatpush.bf16.msra.mxu0 %v223
    %707 = vmatpush.bf16.msra.mxu0 %v222
    %708 = vmatmul.bf16.gmra.mxu0 %v684
    %v709 = vpop.f32.mrf.mxu0
    %v710 = vadd.f32 0.0, %v709
    %v711 = vpop.f32.mrf.mxu0
    %v712 = vadd.f32 0.0, %v711
    %713 = vmatmul.bf16.gmra.mxu0 %v685
    %v714 = vpop.f32.mrf.mxu0
    %v715 = vadd.f32 0.0, %v714
    %v716 = vpop.f32.mrf.mxu0
    %v717 = vadd.f32 0.0, %v716
    %718 = vmatmul.bf16.gmra.mxu0 %v686
    %v719 = vpop.f32.mrf.mxu0
    %v720 = vadd.f32 0.0, %v719
    %v721 = vpop.f32.mrf.mxu0
    %v722 = vadd.f32 0.0, %v721
    %723 = vmatmul.bf16.gmra.mxu0 %v687
    %v724 = vpop.f32.mrf.mxu0
    %v725 = vadd.f32 0.0, %v724
    %v726 = vpop.f32.mrf.mxu0
    %v727 = vadd.f32 0.0, %v726
    %728 = vmatmul.bf16.gmra.mxu0 %v688
    %v729 = vpop.f32.mrf.mxu0
    %v730 = vadd.f32 0.0, %v729
    %v731 = vpop.f32.mrf.mxu0
    %v732 = vadd.f32 0.0, %v731
    %733 = vmatmul.bf16.gmra.mxu0 %v689
    %v734 = vpop.f32.mrf.mxu0
    %v735 = vadd.f32 0.0, %v734
    %v736 = vpop.f32.mrf.mxu0
    %v737 = vadd.f32 0.0, %v736
    %738 = vmatmul.bf16.gmra.mxu0 %v690
    %v739 = vpop.f32.mrf.mxu0
    %v740 = vadd.f32 0.0, %v739
    %v741 = vpop.f32.mrf.mxu0
    %v742 = vadd.f32 0.0, %v741
    %743 = vmatmul.bf16.gmra.mxu0 %v691
    %v744 = vpop.f32.mrf.mxu0
    %v745 = vadd.f32 0.0, %v744
    %v746 = vpop.f32.mrf.mxu0
    %v747 = vadd.f32 0.0, %v746
    %748 = vdwg.mxu0
    %v749 = vsub.f32 %v125, %v710
    %v750 = vsub.f32 %v127, %v712
    %v751 = vsub.f32 %v130, %v715
    %v752 = vsub.f32 %v132, %v717
    %v753 = vsub.f32 %v135, %v720
    %v754 = vsub.f32 %v137, %v722
    %v755 = vsub.f32 %v140, %v725
    %v756 = vsub.f32 %v142, %v727
    %v757 = vsub.f32 %v145, %v730
    %v758 = vsub.f32 %v147, %v732
    %v759 = vsub.f32 %v150, %v735
    %v760 = vsub.f32 %v152, %v737
    %v761 = vsub.f32 %v155, %v740
    %v762 = vsub.f32 %v157, %v742
    %v763 = vsub.f32 %v160, %v745
    %v764 = vsub.f32 %v162, %v747
    %s765 = scalar_lea.vmem %s3, 64
    %v766 = vld [vmem:[%s765] sm:$0xf]
    %v767 = vld [vmem:[%s765 + $0x4] sm:$0xf]
    %v768 = vld [vmem:[%s765 + $0x8] sm:$0xf]
    %v769 = vld [vmem:[%s765 + $0xc] sm:$0xf]
    %v770 = vld [vmem:[%s765 + $0x10] sm:$0xf]
    %v771 = vld [vmem:[%s765 + $0x14] sm:$0xf]
    %v772 = vld [vmem:[%s765 + $0x18] sm:$0xf]
    %v773 = vld [vmem:[%s765 + $0x1c] sm:$0xf]
    %v774 = vld [vmem:[%s765 + $0x20] sm:$0xf]
    %v775 = vld [vmem:[%s765 + $0x24] sm:$0xf]
    %v776 = vld [vmem:[%s765 + $0x28] sm:$0xf]
    %v777 = vld [vmem:[%s765 + $0x2c] sm:$0xf]
    %v778 = vld [vmem:[%s765 + $0x30] sm:$0xf]
    %v779 = vld [vmem:[%s765 + $0x34] sm:$0xf]
    %v780 = vld [vmem:[%s765 + $0x38] sm:$0xf]
    %v781 = vld [vmem:[%s765 + $0x3c] sm:$0xf]
    %v782 = vpack.c.bf16 %v750, %v749
    %v783 = vpack.c.bf16 %v752, %v751
    %v784 = vpack.c.bf16 %v754, %v753
    %v785 = vpack.c.bf16 %v756, %v755
    %v786 = vpack.c.bf16 %v758, %v757
    %v787 = vpack.c.bf16 %v760, %v759
    %v788 = vpack.c.bf16 %v762, %v761
    %v789 = vpack.c.bf16 %v764, %v763
    %v806 = vunpack.c.l.b16 %v766
    %v807 = vunpack.c.l.b16 %v767
    %v808 = vunpack.c.l.b16 %v768
    %v809 = vunpack.c.l.b16 %v769
    %v810 = vunpack.c.l.b16 %v770
    %v811 = vunpack.c.l.b16 %v771
    %v812 = vunpack.c.l.b16 %v772
    %v813 = vunpack.c.l.b16 %v773
    %v814 = vunpack.c.l.b16 %v774
    %v815 = vunpack.c.l.b16 %v775
    %v816 = vunpack.c.l.b16 %v776
    %v817 = vunpack.c.l.b16 %v777
    %v818 = vunpack.c.l.b16 %v778
    %v819 = vunpack.c.l.b16 %v779
    %v820 = vunpack.c.l.b16 %v780
    %v821 = vunpack.c.l.b16 %v781
    %v822 = vpack.c.b16 %v807, %v806
    %v823 = vpack.c.b16 %v809, %v808
    %v824 = vpack.c.b16 %v811, %v810
    %v825 = vpack.c.b16 %v813, %v812
    %v826 = vpack.c.b16 %v815, %v814
    %v827 = vpack.c.b16 %v817, %v816
    %v828 = vpack.c.b16 %v819, %v818
    %v829 = vpack.c.b16 %v821, %v820
    %v831 = vsel %vm230, %v782, 0
    %v834 = vsel %vm230, %v783, 0
    %v837 = vsel %vm230, %v784, 0
    %v840 = vsel %vm230, %v785, 0
    %v843 = vsel %vm230, %v786, 0
    %v846 = vsel %vm230, %v787, 0
    %v849 = vsel %vm230, %v788, 0
    %v852 = vsel %vm230, %v789, 0
    %v855 = vsel %vm230, %v822, 0
    %v858 = vsel %vm230, %v823, 0
    %v861 = vsel %vm230, %v824, 0
    %v864 = vsel %vm230, %v825, 0
    %v867 = vsel %vm230, %v826, 0
    %v870 = vsel %vm230, %v827, 0
    %v873 = vsel %vm230, %v828, 0
    %v876 = vsel %vm230, %v829, 0
    %878 = vmatpush.bf16.xpose.msra.mxu0 %v876
    %879 = vmatpush.bf16.xpose.msra.mxu0 %v873
    %880 = vmatpush.bf16.xpose.msra.mxu0 %v870
    %881 = vmatpush.bf16.xpose.msra.mxu0 %v867
    %882 = vmatpush.bf16.xpose.msra.mxu0 %v864
    %883 = vmatpush.bf16.xpose.msra.mxu0 %v861
    %884 = vmatpush.bf16.xpose.msra.mxu0 %v858
    %885 = vmatpush.bf16.xpose.msra.mxu0 %v855
    %886 = vmatmul.bf16.gmra.mxu0 %v831
    %v887 = vpop.f32.mrf.mxu0
    %v888 = vadd.f32 0.0, %v887
    %v889 = vpop.f32.mrf.mxu0
    %v890 = vadd.f32 0.0, %v889
    %891 = vmatmul.bf16.gmra.mxu0 %v834
    %v892 = vpop.f32.mrf.mxu0
    %v893 = vadd.f32 0.0, %v892
    %v894 = vpop.f32.mrf.mxu0
    %v895 = vadd.f32 0.0, %v894
    %896 = vmatmul.bf16.gmra.mxu0 %v837
    %v897 = vpop.f32.mrf.mxu0
    %v898 = vadd.f32 0.0, %v897
    %v899 = vpop.f32.mrf.mxu0
    %v900 = vadd.f32 0.0, %v899
    %901 = vmatmul.bf16.gmra.mxu0 %v840
    %v902 = vpop.f32.mrf.mxu0
    %v903 = vadd.f32 0.0, %v902
    %v904 = vpop.f32.mrf.mxu0
    %v905 = vadd.f32 0.0, %v904
    %906 = vmatmul.bf16.gmra.mxu0 %v843
    %v907 = vpop.f32.mrf.mxu0
    %v908 = vadd.f32 0.0, %v907
    %v909 = vpop.f32.mrf.mxu0
    %v910 = vadd.f32 0.0, %v909
    %911 = vmatmul.bf16.gmra.mxu0 %v846
    %v912 = vpop.f32.mrf.mxu0
    %v913 = vadd.f32 0.0, %v912
    %v914 = vpop.f32.mrf.mxu0
    %v915 = vadd.f32 0.0, %v914
    %916 = vmatmul.bf16.gmra.mxu0 %v849
    %v917 = vpop.f32.mrf.mxu0
    %v918 = vadd.f32 0.0, %v917
    %v919 = vpop.f32.mrf.mxu0
    %v920 = vadd.f32 0.0, %v919
    %921 = vmatmul.bf16.gmra.mxu0 %v852
    %v922 = vpop.f32.mrf.mxu0
    %v923 = vadd.f32 0.0, %v922
    %v924 = vpop.f32.mrf.mxu0
    %v925 = vadd.f32 0.0, %v924
    %926 = vdwg.mxu0
    %s927 = scalar_lea.vmem %s4, 1
    %v928 = vld [vmem:[%s927] sm:$0x1]
    %v930 = vperm.slane %v928, 0
    %v932 = vsub.f32 %v930, %v888
    %v933 = vsub.f32 %v930, %v890
    %v934 = vsub.f32 %v930, %v893
    %v935 = vsub.f32 %v930, %v895
    %v936 = vsub.f32 %v930, %v898
    %v937 = vsub.f32 %v930, %v900
    %v938 = vsub.f32 %v930, %v903
    %v939 = vsub.f32 %v930, %v905
    %v940 = vsub.f32 %v930, %v908
    %v941 = vsub.f32 %v930, %v910
    %v942 = vsub.f32 %v930, %v913
    %v943 = vsub.f32 %v930, %v915
    %v944 = vsub.f32 %v930, %v918
    %v945 = vsub.f32 %v930, %v920
    %v946 = vsub.f32 %v930, %v923
    %v947 = vsub.f32 %v930, %v925
    %948 = vmin.xlane.f32.xlu0 %v932
    %v949 = vpop.xlane.xlu0 %948
    %950 = vmin.xlane.f32.xlu0 %v933
    %v951 = vpop.xlane.xlu0 %950
    %952 = vmin.xlane.f32.xlu0 %v934
    %v953 = vpop.xlane.xlu0 %952
    %954 = vmin.xlane.f32.xlu0 %v935
    %v955 = vpop.xlane.xlu0 %954
    %956 = vmin.xlane.f32.xlu0 %v936
    %v957 = vpop.xlane.xlu0 %956
    %958 = vmin.xlane.f32.xlu0 %v937
    %v959 = vpop.xlane.xlu0 %958
    %960 = vmin.xlane.f32.xlu0 %v938
    %v961 = vpop.xlane.xlu0 %960
    %962 = vmin.xlane.f32.xlu0 %v939
    %v963 = vpop.xlane.xlu0 %962
    %964 = vmin.xlane.f32.xlu0 %v940
    %v965 = vpop.xlane.xlu0 %964
    %966 = vmin.xlane.f32.xlu0 %v941
    %v967 = vpop.xlane.xlu0 %966
    %968 = vmin.xlane.f32.xlu0 %v942
    %v969 = vpop.xlane.xlu0 %968
    %970 = vmin.xlane.f32.xlu0 %v943
    %v971 = vpop.xlane.xlu0 %970
    %972 = vmin.xlane.f32.xlu0 %v944
    %v973 = vpop.xlane.xlu0 %972
    %974 = vmin.xlane.f32.xlu0 %v945
    %v975 = vpop.xlane.xlu0 %974
    %976 = vmin.xlane.f32.xlu0 %v946
    %v977 = vpop.xlane.xlu0 %976
    %978 = vmin.xlane.f32.xlu0 %v947
    %v979 = vpop.xlane.xlu0 %978
    %vm980 = vcmp.eq.f32.partialorder %v932, %v949
    %vm981 = vcmp.eq.f32.partialorder %v933, %v951
    %vm982 = vcmp.eq.f32.partialorder %v934, %v953
    %vm983 = vcmp.eq.f32.partialorder %v935, %v955
    %vm984 = vcmp.eq.f32.partialorder %v936, %v957
    %vm985 = vcmp.eq.f32.partialorder %v937, %v959
    %vm986 = vcmp.eq.f32.partialorder %v938, %v961
    %vm987 = vcmp.eq.f32.partialorder %v939, %v963
    %vm988 = vcmp.eq.f32.partialorder %v940, %v965
    %vm989 = vcmp.eq.f32.partialorder %v941, %v967
    %vm990 = vcmp.eq.f32.partialorder %v942, %v969
    %vm991 = vcmp.eq.f32.partialorder %v943, %v971
    %vm992 = vcmp.eq.f32.partialorder %v944, %v973
    %vm993 = vcmp.eq.f32.partialorder %v945, %v975
    %vm994 = vcmp.eq.f32.partialorder %v946, %v977
    %vm995 = vcmp.eq.f32.partialorder %v947, %v979
    %v996 = vsel %vm980, %v165, 128
    %v997 = vsel %vm981, %v165, 128
    %v998 = vsel %vm982, %v165, 128
    %v999 = vsel %vm983, %v165, 128
    %v1000 = vsel %vm984, %v165, 128
    %v1001 = vsel %vm985, %v165, 128
    %v1002 = vsel %vm986, %v165, 128
    %v1003 = vsel %vm987, %v165, 128
    %v1004 = vsel %vm988, %v165, 128
    %v1005 = vsel %vm989, %v165, 128
    %v1006 = vsel %vm990, %v165, 128
    %v1007 = vsel %vm991, %v165, 128
    %v1008 = vsel %vm992, %v165, 128
    %v1009 = vsel %vm993, %v165, 128
    %v1010 = vsel %vm994, %v165, 128
    %v1011 = vsel %vm995, %v165, 128
    %v1012 = vand.u32 %v996, 65535
    %v1013 = vshra.s32 %v996, 16
    %v1014 = vcvt.s32.f32 %v1012
    %v1015 = vcvt.s32.f32 %v1013
    %1016 = vmin.xlane.f32.xlu0 %v1015
    %v1017 = vpop.xlane.xlu0 %1016
    %vm1018 = vcmp.eq.f32.partialorder %v1015, %v1017
    %v1019 = vsel %vm1018, %v1014, inf
    %1020 = vmin.xlane.f32.xlu0 %v1019
    %v1021 = vpop.xlane.xlu0 %1020
    %v1022 = vcvt.f32.s32 %v1021
    %v1023 = vcvt.f32.s32 %v1017
    %v1024 = vshll.u32 %v1023, 16
    %v1025 = vadd.s32 %v1024, %v1022
    %v1026 = vand.u32 %v997, 65535
    %v1027 = vshra.s32 %v997, 16
    %v1028 = vcvt.s32.f32 %v1026
    %v1029 = vcvt.s32.f32 %v1027
    %1030 = vmin.xlane.f32.xlu0 %v1029
    %v1031 = vpop.xlane.xlu0 %1030
    %vm1032 = vcmp.eq.f32.partialorder %v1029, %v1031
    %v1033 = vsel %vm1032, %v1028, inf
    %1034 = vmin.xlane.f32.xlu0 %v1033
    %v1035 = vpop.xlane.xlu0 %1034
    %v1036 = vcvt.f32.s32 %v1035
    %v1037 = vcvt.f32.s32 %v1031
    %v1038 = vshll.u32 %v1037, 16
    %v1039 = vadd.s32 %v1038, %v1036
    %v1040 = vand.u32 %v998, 65535
    %v1041 = vshra.s32 %v998, 16
    %v1042 = vcvt.s32.f32 %v1040
    %v1043 = vcvt.s32.f32 %v1041
    %1044 = vmin.xlane.f32.xlu0 %v1043
    %v1045 = vpop.xlane.xlu0 %1044
    %vm1046 = vcmp.eq.f32.partialorder %v1043, %v1045
    %v1047 = vsel %vm1046, %v1042, inf
    %1048 = vmin.xlane.f32.xlu0 %v1047
    %v1049 = vpop.xlane.xlu0 %1048
    %v1050 = vcvt.f32.s32 %v1049
    %v1051 = vcvt.f32.s32 %v1045
    %v1052 = vshll.u32 %v1051, 16
    %v1053 = vadd.s32 %v1052, %v1050
    %v1054 = vand.u32 %v999, 65535
    %v1055 = vshra.s32 %v999, 16
    %v1056 = vcvt.s32.f32 %v1054
    %v1057 = vcvt.s32.f32 %v1055
    %1058 = vmin.xlane.f32.xlu0 %v1057
    %v1059 = vpop.xlane.xlu0 %1058
    %vm1060 = vcmp.eq.f32.partialorder %v1057, %v1059
    %v1061 = vsel %vm1060, %v1056, inf
    %1062 = vmin.xlane.f32.xlu0 %v1061
    %v1063 = vpop.xlane.xlu0 %1062
    %v1064 = vcvt.f32.s32 %v1063
    %v1065 = vcvt.f32.s32 %v1059
    %v1066 = vshll.u32 %v1065, 16
    %v1067 = vadd.s32 %v1066, %v1064
    %v1068 = vand.u32 %v1000, 65535
    %v1069 = vshra.s32 %v1000, 16
    %v1070 = vcvt.s32.f32 %v1068
    %v1071 = vcvt.s32.f32 %v1069
    %1072 = vmin.xlane.f32.xlu0 %v1071
    %v1073 = vpop.xlane.xlu0 %1072
    %vm1074 = vcmp.eq.f32.partialorder %v1071, %v1073
    %v1075 = vsel %vm1074, %v1070, inf
    %1076 = vmin.xlane.f32.xlu0 %v1075
    %v1077 = vpop.xlane.xlu0 %1076
    %v1078 = vcvt.f32.s32 %v1077
    %v1079 = vcvt.f32.s32 %v1073
    %v1080 = vshll.u32 %v1079, 16
    %v1081 = vadd.s32 %v1080, %v1078
    %v1082 = vand.u32 %v1001, 65535
    %v1083 = vshra.s32 %v1001, 16
    %v1084 = vcvt.s32.f32 %v1082
    %v1085 = vcvt.s32.f32 %v1083
    %1086 = vmin.xlane.f32.xlu0 %v1085
    %v1087 = vpop.xlane.xlu0 %1086
    %vm1088 = vcmp.eq.f32.partialorder %v1085, %v1087
    %v1089 = vsel %vm1088, %v1084, inf
    %1090 = vmin.xlane.f32.xlu0 %v1089
    %v1091 = vpop.xlane.xlu0 %1090
    %v1092 = vcvt.f32.s32 %v1091
    %v1093 = vcvt.f32.s32 %v1087
    %v1094 = vshll.u32 %v1093, 16
    %v1095 = vadd.s32 %v1094, %v1092
    %v1096 = vand.u32 %v1002, 65535
    %v1097 = vshra.s32 %v1002, 16
    %v1098 = vcvt.s32.f32 %v1096
    %v1099 = vcvt.s32.f32 %v1097
    %1100 = vmin.xlane.f32.xlu0 %v1099
    %v1101 = vpop.xlane.xlu0 %1100
    %vm1102 = vcmp.eq.f32.partialorder %v1099, %v1101
    %v1103 = vsel %vm1102, %v1098, inf
    %1104 = vmin.xlane.f32.xlu0 %v1103
    %v1105 = vpop.xlane.xlu0 %1104
    %v1106 = vcvt.f32.s32 %v1105
    %v1107 = vcvt.f32.s32 %v1101
    %v1108 = vshll.u32 %v1107, 16
    %v1109 = vadd.s32 %v1108, %v1106
    %v1110 = vand.u32 %v1003, 65535
    %v1111 = vshra.s32 %v1003, 16
    %v1112 = vcvt.s32.f32 %v1110
    %v1113 = vcvt.s32.f32 %v1111
    %1114 = vmin.xlane.f32.xlu0 %v1113
    %v1115 = vpop.xlane.xlu0 %1114
    %vm1116 = vcmp.eq.f32.partialorder %v1113, %v1115
    %v1117 = vsel %vm1116, %v1112, inf
    %1118 = vmin.xlane.f32.xlu0 %v1117
    %v1119 = vpop.xlane.xlu0 %1118
    %v1120 = vcvt.f32.s32 %v1119
    %v1121 = vcvt.f32.s32 %v1115
    %v1122 = vshll.u32 %v1121, 16
    %v1123 = vadd.s32 %v1122, %v1120
    %v1124 = vand.u32 %v1004, 65535
    %v1125 = vshra.s32 %v1004, 16
    %v1126 = vcvt.s32.f32 %v1124
    %v1127 = vcvt.s32.f32 %v1125
    %1128 = vmin.xlane.f32.xlu0 %v1127
    %v1129 = vpop.xlane.xlu0 %1128
    %vm1130 = vcmp.eq.f32.partialorder %v1127, %v1129
    %v1131 = vsel %vm1130, %v1126, inf
    %1132 = vmin.xlane.f32.xlu0 %v1131
    %v1133 = vpop.xlane.xlu0 %1132
    %v1134 = vcvt.f32.s32 %v1133
    %v1135 = vcvt.f32.s32 %v1129
    %v1136 = vshll.u32 %v1135, 16
    %v1137 = vadd.s32 %v1136, %v1134
    %v1138 = vand.u32 %v1005, 65535
    %v1139 = vshra.s32 %v1005, 16
    %v1140 = vcvt.s32.f32 %v1138
    %v1141 = vcvt.s32.f32 %v1139
    %1142 = vmin.xlane.f32.xlu0 %v1141
    %v1143 = vpop.xlane.xlu0 %1142
    %vm1144 = vcmp.eq.f32.partialorder %v1141, %v1143
    %v1145 = vsel %vm1144, %v1140, inf
    %1146 = vmin.xlane.f32.xlu0 %v1145
    %v1147 = vpop.xlane.xlu0 %1146
    %v1148 = vcvt.f32.s32 %v1147
    %v1149 = vcvt.f32.s32 %v1143
    %v1150 = vshll.u32 %v1149, 16
    %v1151 = vadd.s32 %v1150, %v1148
    %v1152 = vand.u32 %v1006, 65535
    %v1153 = vshra.s32 %v1006, 16
    %v1154 = vcvt.s32.f32 %v1152
    %v1155 = vcvt.s32.f32 %v1153
    %1156 = vmin.xlane.f32.xlu0 %v1155
    %v1157 = vpop.xlane.xlu0 %1156
    %vm1158 = vcmp.eq.f32.partialorder %v1155, %v1157
    %v1159 = vsel %vm1158, %v1154, inf
    %1160 = vmin.xlane.f32.xlu0 %v1159
    %v1161 = vpop.xlane.xlu0 %1160
    %v1162 = vcvt.f32.s32 %v1161
    %v1163 = vcvt.f32.s32 %v1157
    %v1164 = vshll.u32 %v1163, 16
    %v1165 = vadd.s32 %v1164, %v1162
    %v1166 = vand.u32 %v1007, 65535
    %v1167 = vshra.s32 %v1007, 16
    %v1168 = vcvt.s32.f32 %v1166
    %v1169 = vcvt.s32.f32 %v1167
    %1170 = vmin.xlane.f32.xlu0 %v1169
    %v1171 = vpop.xlane.xlu0 %1170
    %vm1172 = vcmp.eq.f32.partialorder %v1169, %v1171
    %v1173 = vsel %vm1172, %v1168, inf
    %1174 = vmin.xlane.f32.xlu0 %v1173
    %v1175 = vpop.xlane.xlu0 %1174
    %v1176 = vcvt.f32.s32 %v1175
    %v1177 = vcvt.f32.s32 %v1171
    %v1178 = vshll.u32 %v1177, 16
    %v1179 = vadd.s32 %v1178, %v1176
    %v1180 = vand.u32 %v1008, 65535
    %v1181 = vshra.s32 %v1008, 16
    %v1182 = vcvt.s32.f32 %v1180
    %v1183 = vcvt.s32.f32 %v1181
    %1184 = vmin.xlane.f32.xlu0 %v1183
    %v1185 = vpop.xlane.xlu0 %1184
    %vm1186 = vcmp.eq.f32.partialorder %v1183, %v1185
    %v1187 = vsel %vm1186, %v1182, inf
    %1188 = vmin.xlane.f32.xlu0 %v1187
    %v1189 = vpop.xlane.xlu0 %1188
    %v1190 = vcvt.f32.s32 %v1189
    %v1191 = vcvt.f32.s32 %v1185
    %v1192 = vshll.u32 %v1191, 16
    %v1193 = vadd.s32 %v1192, %v1190
    %v1194 = vand.u32 %v1009, 65535
    %v1195 = vshra.s32 %v1009, 16
    %v1196 = vcvt.s32.f32 %v1194
    %v1197 = vcvt.s32.f32 %v1195
    %1198 = vmin.xlane.f32.xlu0 %v1197
    %v1199 = vpop.xlane.xlu0 %1198
    %vm1200 = vcmp.eq.f32.partialorder %v1197, %v1199
    %v1201 = vsel %vm1200, %v1196, inf
    %1202 = vmin.xlane.f32.xlu0 %v1201
    %v1203 = vpop.xlane.xlu0 %1202
    %v1204 = vcvt.f32.s32 %v1203
    %v1205 = vcvt.f32.s32 %v1199
    %v1206 = vshll.u32 %v1205, 16
    %v1207 = vadd.s32 %v1206, %v1204
    %v1208 = vand.u32 %v1010, 65535
    %v1209 = vshra.s32 %v1010, 16
    %v1210 = vcvt.s32.f32 %v1208
    %v1211 = vcvt.s32.f32 %v1209
    %1212 = vmin.xlane.f32.xlu0 %v1211
    %v1213 = vpop.xlane.xlu0 %1212
    %vm1214 = vcmp.eq.f32.partialorder %v1211, %v1213
    %v1215 = vsel %vm1214, %v1210, inf
    %1216 = vmin.xlane.f32.xlu0 %v1215
    %v1217 = vpop.xlane.xlu0 %1216
    %v1218 = vcvt.f32.s32 %v1217
    %v1219 = vcvt.f32.s32 %v1213
    %v1220 = vshll.u32 %v1219, 16
    %v1221 = vadd.s32 %v1220, %v1218
    %v1222 = vand.u32 %v1011, 65535
    %v1223 = vshra.s32 %v1011, 16
    %v1224 = vcvt.s32.f32 %v1222
    %v1225 = vcvt.s32.f32 %v1223
    %1226 = vmin.xlane.f32.xlu0 %v1225
    %v1227 = vpop.xlane.xlu0 %1226
    %vm1228 = vcmp.eq.f32.partialorder %v1225, %v1227
    %v1229 = vsel %vm1228, %v1224, inf
    %1230 = vmin.xlane.f32.xlu0 %v1229
    %v1231 = vpop.xlane.xlu0 %1230
    %v1232 = vcvt.f32.s32 %v1231
    %v1233 = vcvt.f32.s32 %v1227
    %v1234 = vshll.u32 %v1233, 16
    %v1235 = vadd.s32 %v1234, %v1232
    %vm1236 = vcmp.eq.s32.totalorder %v165, %v1025
    %vm1237 = vcmp.eq.s32.totalorder %v165, %v1039
    %vm1238 = vcmp.eq.s32.totalorder %v165, %v1053
    %vm1239 = vcmp.eq.s32.totalorder %v165, %v1067
    %vm1240 = vcmp.eq.s32.totalorder %v165, %v1081
    %vm1241 = vcmp.eq.s32.totalorder %v165, %v1095
    %vm1242 = vcmp.eq.s32.totalorder %v165, %v1109
    %vm1243 = vcmp.eq.s32.totalorder %v165, %v1123
    %vm1244 = vcmp.eq.s32.totalorder %v165, %v1137
    %vm1245 = vcmp.eq.s32.totalorder %v165, %v1151
    %vm1246 = vcmp.eq.s32.totalorder %v165, %v1165
    %vm1247 = vcmp.eq.s32.totalorder %v165, %v1179
    %vm1248 = vcmp.eq.s32.totalorder %v165, %v1193
    %vm1249 = vcmp.eq.s32.totalorder %v165, %v1207
    %vm1250 = vcmp.eq.s32.totalorder %v165, %v1221
    %vm1251 = vcmp.eq.s32.totalorder %v165, %v1235
    %v1252 = vsel %vm1236, 1, 0
    %v1253 = vsel %vm1237, 1, 0
    %v1254 = vsel %vm1238, 1, 0
    %v1255 = vsel %vm1239, 1, 0
    %v1256 = vsel %vm1240, 1, 0
    %v1257 = vsel %vm1241, 1, 0
    %v1258 = vsel %vm1242, 1, 0
    %v1259 = vsel %vm1243, 1, 0
    %v1260 = vsel %vm1244, 1, 0
    %v1261 = vsel %vm1245, 1, 0
    %v1262 = vsel %vm1246, 1, 0
    %v1263 = vsel %vm1247, 1, 0
    %v1264 = vsel %vm1248, 1, 0
    %v1265 = vsel %vm1249, 1, 0
    %v1266 = vsel %vm1250, 1, 0
    %v1267 = vsel %vm1251, 1, 0
    %v1268 = vcvt.s32.f32 %v1252
    %v1269 = vcvt.s32.f32 %v1253
    %v1270 = vcvt.s32.f32 %v1254
    %v1271 = vcvt.s32.f32 %v1255
    %v1272 = vcvt.s32.f32 %v1256
    %v1273 = vcvt.s32.f32 %v1257
    %v1274 = vcvt.s32.f32 %v1258
    %v1275 = vcvt.s32.f32 %v1259
    %v1276 = vcvt.s32.f32 %v1260
    %v1277 = vcvt.s32.f32 %v1261
    %v1278 = vcvt.s32.f32 %v1262
    %v1279 = vcvt.s32.f32 %v1263
    %v1280 = vcvt.s32.f32 %v1264
    %v1281 = vcvt.s32.f32 %v1265
    %v1282 = vcvt.s32.f32 %v1266
    %v1283 = vcvt.s32.f32 %v1267
    %v1284 = vpack.c.bf16 %v1269, %v1268
    %v1285 = vpack.c.bf16 %v1271, %v1270
    %v1286 = vpack.c.bf16 %v1273, %v1272
    %v1287 = vpack.c.bf16 %v1275, %v1274
    %v1288 = vpack.c.bf16 %v1277, %v1276
    %v1289 = vpack.c.bf16 %v1279, %v1278
    %v1290 = vpack.c.bf16 %v1281, %v1280
    %v1291 = vpack.c.bf16 %v1283, %v1282
    %1300 = vmatpush.bf16.msra.mxu0 %v829
    %1301 = vmatpush.bf16.msra.mxu0 %v828
    %1302 = vmatpush.bf16.msra.mxu0 %v827
    %1303 = vmatpush.bf16.msra.mxu0 %v826
    %1304 = vmatpush.bf16.msra.mxu0 %v825
    %1305 = vmatpush.bf16.msra.mxu0 %v824
    %1306 = vmatpush.bf16.msra.mxu0 %v823
    %1307 = vmatpush.bf16.msra.mxu0 %v822
    %1308 = vmatmul.bf16.gmra.mxu0 %v1284
    %v1309 = vpop.f32.mrf.mxu0
    %v1310 = vadd.f32 0.0, %v1309
    %v1311 = vpop.f32.mrf.mxu0
    %v1312 = vadd.f32 0.0, %v1311
    %1313 = vmatmul.bf16.gmra.mxu0 %v1285
    %v1314 = vpop.f32.mrf.mxu0
    %v1315 = vadd.f32 0.0, %v1314
    %v1316 = vpop.f32.mrf.mxu0
    %v1317 = vadd.f32 0.0, %v1316
    %1318 = vmatmul.bf16.gmra.mxu0 %v1286
    %v1319 = vpop.f32.mrf.mxu0
    %v1320 = vadd.f32 0.0, %v1319
    %v1321 = vpop.f32.mrf.mxu0
    %v1322 = vadd.f32 0.0, %v1321
    %1323 = vmatmul.bf16.gmra.mxu0 %v1287
    %v1324 = vpop.f32.mrf.mxu0
    %v1325 = vadd.f32 0.0, %v1324
    %v1326 = vpop.f32.mrf.mxu0
    %v1327 = vadd.f32 0.0, %v1326
    %1328 = vmatmul.bf16.gmra.mxu0 %v1288
    %v1329 = vpop.f32.mrf.mxu0
    %v1330 = vadd.f32 0.0, %v1329
    %v1331 = vpop.f32.mrf.mxu0
    %v1332 = vadd.f32 0.0, %v1331
    %1333 = vmatmul.bf16.gmra.mxu0 %v1289
    %v1334 = vpop.f32.mrf.mxu0
    %v1335 = vadd.f32 0.0, %v1334
    %v1336 = vpop.f32.mrf.mxu0
    %v1337 = vadd.f32 0.0, %v1336
    %1338 = vmatmul.bf16.gmra.mxu0 %v1290
    %v1339 = vpop.f32.mrf.mxu0
    %v1340 = vadd.f32 0.0, %v1339
    %v1341 = vpop.f32.mrf.mxu0
    %v1342 = vadd.f32 0.0, %v1341
    %1343 = vmatmul.bf16.gmra.mxu0 %v1291
    %v1344 = vpop.f32.mrf.mxu0
    %v1345 = vadd.f32 0.0, %v1344
    %v1346 = vpop.f32.mrf.mxu0
    %v1347 = vadd.f32 0.0, %v1346
    %1348 = vdwg.mxu0
    %v1349 = vsub.f32 %v749, %v1310
    %v1350 = vsub.f32 %v750, %v1312
    %v1351 = vsub.f32 %v751, %v1315
    %v1352 = vsub.f32 %v752, %v1317
    %v1353 = vsub.f32 %v753, %v1320
    %v1354 = vsub.f32 %v754, %v1322
    %v1355 = vsub.f32 %v755, %v1325
    %v1356 = vsub.f32 %v756, %v1327
    %v1357 = vsub.f32 %v757, %v1330
    %v1358 = vsub.f32 %v758, %v1332
    %v1359 = vsub.f32 %v759, %v1335
    %v1360 = vsub.f32 %v760, %v1337
    %v1361 = vsub.f32 %v761, %v1340
    %v1362 = vsub.f32 %v762, %v1342
    %v1363 = vsub.f32 %v763, %v1345
    %v1364 = vsub.f32 %v764, %v1347
    %s1365 = scalar_lea.vmem %s3, 128
    %v1366 = vld [vmem:[%s1365] sm:$0xf]
    %v1367 = vld [vmem:[%s1365 + $0x4] sm:$0xf]
    %v1368 = vld [vmem:[%s1365 + $0x8] sm:$0xf]
    %v1369 = vld [vmem:[%s1365 + $0xc] sm:$0xf]
    %v1370 = vld [vmem:[%s1365 + $0x10] sm:$0xf]
    %v1371 = vld [vmem:[%s1365 + $0x14] sm:$0xf]
    %v1372 = vld [vmem:[%s1365 + $0x18] sm:$0xf]
    %v1373 = vld [vmem:[%s1365 + $0x1c] sm:$0xf]
    %v1374 = vld [vmem:[%s1365 + $0x20] sm:$0xf]
    %v1375 = vld [vmem:[%s1365 + $0x24] sm:$0xf]
    %v1376 = vld [vmem:[%s1365 + $0x28] sm:$0xf]
    %v1377 = vld [vmem:[%s1365 + $0x2c] sm:$0xf]
    %v1378 = vld [vmem:[%s1365 + $0x30] sm:$0xf]
    %v1379 = vld [vmem:[%s1365 + $0x34] sm:$0xf]
    %v1380 = vld [vmem:[%s1365 + $0x38] sm:$0xf]
    %v1381 = vld [vmem:[%s1365 + $0x3c] sm:$0xf]
    %v1382 = vpack.c.bf16 %v1350, %v1349
    %v1383 = vpack.c.bf16 %v1352, %v1351
    %v1384 = vpack.c.bf16 %v1354, %v1353
    %v1385 = vpack.c.bf16 %v1356, %v1355
    %v1386 = vpack.c.bf16 %v1358, %v1357
    %v1387 = vpack.c.bf16 %v1360, %v1359
    %v1388 = vpack.c.bf16 %v1362, %v1361
    %v1389 = vpack.c.bf16 %v1364, %v1363
    %v1406 = vunpack.c.l.b16 %v1366
    %v1407 = vunpack.c.l.b16 %v1367
    %v1408 = vunpack.c.l.b16 %v1368
    %v1409 = vunpack.c.l.b16 %v1369
    %v1410 = vunpack.c.l.b16 %v1370
    %v1411 = vunpack.c.l.b16 %v1371
    %v1412 = vunpack.c.l.b16 %v1372
    %v1413 = vunpack.c.l.b16 %v1373
    %v1414 = vunpack.c.l.b16 %v1374
    %v1415 = vunpack.c.l.b16 %v1375
    %v1416 = vunpack.c.l.b16 %v1376
    %v1417 = vunpack.c.l.b16 %v1377
    %v1418 = vunpack.c.l.b16 %v1378
    %v1419 = vunpack.c.l.b16 %v1379
    %v1420 = vunpack.c.l.b16 %v1380
    %v1421 = vunpack.c.l.b16 %v1381
    %v1422 = vpack.c.b16 %v1407, %v1406
    %v1423 = vpack.c.b16 %v1409, %v1408
    %v1424 = vpack.c.b16 %v1411, %v1410
    %v1425 = vpack.c.b16 %v1413, %v1412
    %v1426 = vpack.c.b16 %v1415, %v1414
    %v1427 = vpack.c.b16 %v1417, %v1416
    %v1428 = vpack.c.b16 %v1419, %v1418
    %v1429 = vpack.c.b16 %v1421, %v1420
    %v1431 = vsel %vm230, %v1382, 0
    %v1434 = vsel %vm230, %v1383, 0
    %v1437 = vsel %vm230, %v1384, 0
    %v1440 = vsel %vm230, %v1385, 0
    %v1443 = vsel %vm230, %v1386, 0
    %v1446 = vsel %vm230, %v1387, 0
    %v1449 = vsel %vm230, %v1388, 0
    %v1452 = vsel %vm230, %v1389, 0
    %v1455 = vsel %vm230, %v1422, 0
    %v1458 = vsel %vm230, %v1423, 0
    %v1461 = vsel %vm230, %v1424, 0
    %v1464 = vsel %vm230, %v1425, 0
    %v1467 = vsel %vm230, %v1426, 0
    %v1470 = vsel %vm230, %v1427, 0
    %v1473 = vsel %vm230, %v1428, 0
    %v1476 = vsel %vm230, %v1429, 0
    %1478 = vmatpush.bf16.xpose.msra.mxu0 %v1476
    %1479 = vmatpush.bf16.xpose.msra.mxu0 %v1473
    %1480 = vmatpush.bf16.xpose.msra.mxu0 %v1470
    %1481 = vmatpush.bf16.xpose.msra.mxu0 %v1467
    %1482 = vmatpush.bf16.xpose.msra.mxu0 %v1464
    %1483 = vmatpush.bf16.xpose.msra.mxu0 %v1461
    %1484 = vmatpush.bf16.xpose.msra.mxu0 %v1458
    %1485 = vmatpush.bf16.xpose.msra.mxu0 %v1455
    %1486 = vmatmul.bf16.gmra.mxu0 %v1431
    %v1487 = vpop.f32.mrf.mxu0
    %v1488 = vadd.f32 0.0, %v1487
    %v1489 = vpop.f32.mrf.mxu0
    %v1490 = vadd.f32 0.0, %v1489
    %1491 = vmatmul.bf16.gmra.mxu0 %v1434
    %v1492 = vpop.f32.mrf.mxu0
    %v1493 = vadd.f32 0.0, %v1492
    %v1494 = vpop.f32.mrf.mxu0
    %v1495 = vadd.f32 0.0, %v1494
    %1496 = vmatmul.bf16.gmra.mxu0 %v1437
    %v1497 = vpop.f32.mrf.mxu0
    %v1498 = vadd.f32 0.0, %v1497
    %v1499 = vpop.f32.mrf.mxu0
    %v1500 = vadd.f32 0.0, %v1499
    %1501 = vmatmul.bf16.gmra.mxu0 %v1440
    %v1502 = vpop.f32.mrf.mxu0
    %v1503 = vadd.f32 0.0, %v1502
    %v1504 = vpop.f32.mrf.mxu0
    %v1505 = vadd.f32 0.0, %v1504
    %1506 = vmatmul.bf16.gmra.mxu0 %v1443
    %v1507 = vpop.f32.mrf.mxu0
    %v1508 = vadd.f32 0.0, %v1507
    %v1509 = vpop.f32.mrf.mxu0
    %v1510 = vadd.f32 0.0, %v1509
    %1511 = vmatmul.bf16.gmra.mxu0 %v1446
    %v1512 = vpop.f32.mrf.mxu0
    %v1513 = vadd.f32 0.0, %v1512
    %v1514 = vpop.f32.mrf.mxu0
    %v1515 = vadd.f32 0.0, %v1514
    %1516 = vmatmul.bf16.gmra.mxu0 %v1449
    %v1517 = vpop.f32.mrf.mxu0
    %v1518 = vadd.f32 0.0, %v1517
    %v1519 = vpop.f32.mrf.mxu0
    %v1520 = vadd.f32 0.0, %v1519
    %1521 = vmatmul.bf16.gmra.mxu0 %v1452
    %v1522 = vpop.f32.mrf.mxu0
    %v1523 = vadd.f32 0.0, %v1522
    %v1524 = vpop.f32.mrf.mxu0
    %v1525 = vadd.f32 0.0, %v1524
    %1526 = vdwg.mxu0
    %s1527 = scalar_lea.vmem %s4, 2
    %v1528 = vld [vmem:[%s1527] sm:$0x1]
    %v1530 = vperm.slane %v1528, 0
    %v1532 = vsub.f32 %v1530, %v1488
    %v1533 = vsub.f32 %v1530, %v1490
    %v1534 = vsub.f32 %v1530, %v1493
    %v1535 = vsub.f32 %v1530, %v1495
    %v1536 = vsub.f32 %v1530, %v1498
    %v1537 = vsub.f32 %v1530, %v1500
    %v1538 = vsub.f32 %v1530, %v1503
    %v1539 = vsub.f32 %v1530, %v1505
    %v1540 = vsub.f32 %v1530, %v1508
    %v1541 = vsub.f32 %v1530, %v1510
    %v1542 = vsub.f32 %v1530, %v1513
    %v1543 = vsub.f32 %v1530, %v1515
    %v1544 = vsub.f32 %v1530, %v1518
    %v1545 = vsub.f32 %v1530, %v1520
    %v1546 = vsub.f32 %v1530, %v1523
    %v1547 = vsub.f32 %v1530, %v1525
    %1548 = vmin.xlane.f32.xlu0 %v1532
    %v1549 = vpop.xlane.xlu0 %1548
    %1550 = vmin.xlane.f32.xlu0 %v1533
    %v1551 = vpop.xlane.xlu0 %1550
    %1552 = vmin.xlane.f32.xlu0 %v1534
    %v1553 = vpop.xlane.xlu0 %1552
    %1554 = vmin.xlane.f32.xlu0 %v1535
    %v1555 = vpop.xlane.xlu0 %1554
    %1556 = vmin.xlane.f32.xlu0 %v1536
    %v1557 = vpop.xlane.xlu0 %1556
    %1558 = vmin.xlane.f32.xlu0 %v1537
    %v1559 = vpop.xlane.xlu0 %1558
    %1560 = vmin.xlane.f32.xlu0 %v1538
    %v1561 = vpop.xlane.xlu0 %1560
    %1562 = vmin.xlane.f32.xlu0 %v1539
    %v1563 = vpop.xlane.xlu0 %1562
    %1564 = vmin.xlane.f32.xlu0 %v1540
    %v1565 = vpop.xlane.xlu0 %1564
    %1566 = vmin.xlane.f32.xlu0 %v1541
    %v1567 = vpop.xlane.xlu0 %1566
    %1568 = vmin.xlane.f32.xlu0 %v1542
    %v1569 = vpop.xlane.xlu0 %1568
    %1570 = vmin.xlane.f32.xlu0 %v1543
    %v1571 = vpop.xlane.xlu0 %1570
    %1572 = vmin.xlane.f32.xlu0 %v1544
    %v1573 = vpop.xlane.xlu0 %1572
    %1574 = vmin.xlane.f32.xlu0 %v1545
    %v1575 = vpop.xlane.xlu0 %1574
    %1576 = vmin.xlane.f32.xlu0 %v1546
    %v1577 = vpop.xlane.xlu0 %1576
    %1578 = vmin.xlane.f32.xlu0 %v1547
    %v1579 = vpop.xlane.xlu0 %1578
    %vm1580 = vcmp.eq.f32.partialorder %v1532, %v1549
    %vm1581 = vcmp.eq.f32.partialorder %v1533, %v1551
    %vm1582 = vcmp.eq.f32.partialorder %v1534, %v1553
    %vm1583 = vcmp.eq.f32.partialorder %v1535, %v1555
    %vm1584 = vcmp.eq.f32.partialorder %v1536, %v1557
    %vm1585 = vcmp.eq.f32.partialorder %v1537, %v1559
    %vm1586 = vcmp.eq.f32.partialorder %v1538, %v1561
    %vm1587 = vcmp.eq.f32.partialorder %v1539, %v1563
    %vm1588 = vcmp.eq.f32.partialorder %v1540, %v1565
    %vm1589 = vcmp.eq.f32.partialorder %v1541, %v1567
    %vm1590 = vcmp.eq.f32.partialorder %v1542, %v1569
    %vm1591 = vcmp.eq.f32.partialorder %v1543, %v1571
    %vm1592 = vcmp.eq.f32.partialorder %v1544, %v1573
    %vm1593 = vcmp.eq.f32.partialorder %v1545, %v1575
    %vm1594 = vcmp.eq.f32.partialorder %v1546, %v1577
    %vm1595 = vcmp.eq.f32.partialorder %v1547, %v1579
    %v1596 = vsel %vm1580, %v165, 128
    %v1597 = vsel %vm1581, %v165, 128
    %v1598 = vsel %vm1582, %v165, 128
    %v1599 = vsel %vm1583, %v165, 128
    %v1600 = vsel %vm1584, %v165, 128
    %v1601 = vsel %vm1585, %v165, 128
    %v1602 = vsel %vm1586, %v165, 128
    %v1603 = vsel %vm1587, %v165, 128
    %v1604 = vsel %vm1588, %v165, 128
    %v1605 = vsel %vm1589, %v165, 128
    %v1606 = vsel %vm1590, %v165, 128
    %v1607 = vsel %vm1591, %v165, 128
    %v1608 = vsel %vm1592, %v165, 128
    %v1609 = vsel %vm1593, %v165, 128
    %v1610 = vsel %vm1594, %v165, 128
    %v1611 = vsel %vm1595, %v165, 128
    %v1612 = vand.u32 %v1596, 65535
    %v1613 = vshra.s32 %v1596, 16
    %v1614 = vcvt.s32.f32 %v1612
    %v1615 = vcvt.s32.f32 %v1613
    %1616 = vmin.xlane.f32.xlu0 %v1615
    %v1617 = vpop.xlane.xlu0 %1616
    %vm1618 = vcmp.eq.f32.partialorder %v1615, %v1617
    %v1619 = vsel %vm1618, %v1614, inf
    %1620 = vmin.xlane.f32.xlu0 %v1619
    %v1621 = vpop.xlane.xlu0 %1620
    %v1622 = vcvt.f32.s32 %v1621
    %v1623 = vcvt.f32.s32 %v1617
    %v1624 = vshll.u32 %v1623, 16
    %v1625 = vadd.s32 %v1624, %v1622
    %v1626 = vand.u32 %v1597, 65535
    %v1627 = vshra.s32 %v1597, 16
    %v1628 = vcvt.s32.f32 %v1626
    %v1629 = vcvt.s32.f32 %v1627
    %1630 = vmin.xlane.f32.xlu0 %v1629
    %v1631 = vpop.xlane.xlu0 %1630
    %vm1632 = vcmp.eq.f32.partialorder %v1629, %v1631
    %v1633 = vsel %vm1632, %v1628, inf
    %1634 = vmin.xlane.f32.xlu0 %v1633
    %v1635 = vpop.xlane.xlu0 %1634
    %v1636 = vcvt.f32.s32 %v1635
    %v1637 = vcvt.f32.s32 %v1631
    %v1638 = vshll.u32 %v1637, 16
    %v1639 = vadd.s32 %v1638, %v1636
    %v1640 = vand.u32 %v1598, 65535
    %v1641 = vshra.s32 %v1598, 16
    %v1642 = vcvt.s32.f32 %v1640
    %v1643 = vcvt.s32.f32 %v1641
    %1644 = vmin.xlane.f32.xlu0 %v1643
    %v1645 = vpop.xlane.xlu0 %1644
    %vm1646 = vcmp.eq.f32.partialorder %v1643, %v1645
    %v1647 = vsel %vm1646, %v1642, inf
    %1648 = vmin.xlane.f32.xlu0 %v1647
    %v1649 = vpop.xlane.xlu0 %1648
    %v1650 = vcvt.f32.s32 %v1649
    %v1651 = vcvt.f32.s32 %v1645
    %v1652 = vshll.u32 %v1651, 16
    %v1653 = vadd.s32 %v1652, %v1650
    %v1654 = vand.u32 %v1599, 65535
    %v1655 = vshra.s32 %v1599, 16
    %v1656 = vcvt.s32.f32 %v1654
    %v1657 = vcvt.s32.f32 %v1655
    %1658 = vmin.xlane.f32.xlu0 %v1657
    %v1659 = vpop.xlane.xlu0 %1658
    %vm1660 = vcmp.eq.f32.partialorder %v1657, %v1659
    %v1661 = vsel %vm1660, %v1656, inf
    %1662 = vmin.xlane.f32.xlu0 %v1661
    %v1663 = vpop.xlane.xlu0 %1662
    %v1664 = vcvt.f32.s32 %v1663
    %v1665 = vcvt.f32.s32 %v1659
    %v1666 = vshll.u32 %v1665, 16
    %v1667 = vadd.s32 %v1666, %v1664
    %v1668 = vand.u32 %v1600, 65535
    %v1669 = vshra.s32 %v1600, 16
    %v1670 = vcvt.s32.f32 %v1668
    %v1671 = vcvt.s32.f32 %v1669
    %1672 = vmin.xlane.f32.xlu0 %v1671
    %v1673 = vpop.xlane.xlu0 %1672
    %vm1674 = vcmp.eq.f32.partialorder %v1671, %v1673
    %v1675 = vsel %vm1674, %v1670, inf
    %1676 = vmin.xlane.f32.xlu0 %v1675
    %v1677 = vpop.xlane.xlu0 %1676
    %v1678 = vcvt.f32.s32 %v1677
    %v1679 = vcvt.f32.s32 %v1673
    %v1680 = vshll.u32 %v1679, 16
    %v1681 = vadd.s32 %v1680, %v1678
    %v1682 = vand.u32 %v1601, 65535
    %v1683 = vshra.s32 %v1601, 16
    %v1684 = vcvt.s32.f32 %v1682
    %v1685 = vcvt.s32.f32 %v1683
    %1686 = vmin.xlane.f32.xlu0 %v1685
    %v1687 = vpop.xlane.xlu0 %1686
    %vm1688 = vcmp.eq.f32.partialorder %v1685, %v1687
    %v1689 = vsel %vm1688, %v1684, inf
    %1690 = vmin.xlane.f32.xlu0 %v1689
    %v1691 = vpop.xlane.xlu0 %1690
    %v1692 = vcvt.f32.s32 %v1691
    %v1693 = vcvt.f32.s32 %v1687
    %v1694 = vshll.u32 %v1693, 16
    %v1695 = vadd.s32 %v1694, %v1692
    %v1696 = vand.u32 %v1602, 65535
    %v1697 = vshra.s32 %v1602, 16
    %v1698 = vcvt.s32.f32 %v1696
    %v1699 = vcvt.s32.f32 %v1697
    %1700 = vmin.xlane.f32.xlu0 %v1699
    %v1701 = vpop.xlane.xlu0 %1700
    %vm1702 = vcmp.eq.f32.partialorder %v1699, %v1701
    %v1703 = vsel %vm1702, %v1698, inf
    %1704 = vmin.xlane.f32.xlu0 %v1703
    %v1705 = vpop.xlane.xlu0 %1704
    %v1706 = vcvt.f32.s32 %v1705
    %v1707 = vcvt.f32.s32 %v1701
    %v1708 = vshll.u32 %v1707, 16
    %v1709 = vadd.s32 %v1708, %v1706
    %v1710 = vand.u32 %v1603, 65535
    %v1711 = vshra.s32 %v1603, 16
    %v1712 = vcvt.s32.f32 %v1710
    %v1713 = vcvt.s32.f32 %v1711
    %1714 = vmin.xlane.f32.xlu0 %v1713
    %v1715 = vpop.xlane.xlu0 %1714
    %vm1716 = vcmp.eq.f32.partialorder %v1713, %v1715
    %v1717 = vsel %vm1716, %v1712, inf
    %1718 = vmin.xlane.f32.xlu0 %v1717
    %v1719 = vpop.xlane.xlu0 %1718
    %v1720 = vcvt.f32.s32 %v1719
    %v1721 = vcvt.f32.s32 %v1715
    %v1722 = vshll.u32 %v1721, 16
    %v1723 = vadd.s32 %v1722, %v1720
    %v1724 = vand.u32 %v1604, 65535
    %v1725 = vshra.s32 %v1604, 16
    %v1726 = vcvt.s32.f32 %v1724
    %v1727 = vcvt.s32.f32 %v1725
    %1728 = vmin.xlane.f32.xlu0 %v1727
    %v1729 = vpop.xlane.xlu0 %1728
    %vm1730 = vcmp.eq.f32.partialorder %v1727, %v1729
    %v1731 = vsel %vm1730, %v1726, inf
    %1732 = vmin.xlane.f32.xlu0 %v1731
    %v1733 = vpop.xlane.xlu0 %1732
    %v1734 = vcvt.f32.s32 %v1733
    %v1735 = vcvt.f32.s32 %v1729
    %v1736 = vshll.u32 %v1735, 16
    %v1737 = vadd.s32 %v1736, %v1734
    %v1738 = vand.u32 %v1605, 65535
    %v1739 = vshra.s32 %v1605, 16
    %v1740 = vcvt.s32.f32 %v1738
    %v1741 = vcvt.s32.f32 %v1739
    %1742 = vmin.xlane.f32.xlu0 %v1741
    %v1743 = vpop.xlane.xlu0 %1742
    %vm1744 = vcmp.eq.f32.partialorder %v1741, %v1743
    %v1745 = vsel %vm1744, %v1740, inf
    %1746 = vmin.xlane.f32.xlu0 %v1745
    %v1747 = vpop.xlane.xlu0 %1746
    %v1748 = vcvt.f32.s32 %v1747
    %v1749 = vcvt.f32.s32 %v1743
    %v1750 = vshll.u32 %v1749, 16
    %v1751 = vadd.s32 %v1750, %v1748
    %v1752 = vand.u32 %v1606, 65535
    %v1753 = vshra.s32 %v1606, 16
    %v1754 = vcvt.s32.f32 %v1752
    %v1755 = vcvt.s32.f32 %v1753
    %1756 = vmin.xlane.f32.xlu0 %v1755
    %v1757 = vpop.xlane.xlu0 %1756
    %vm1758 = vcmp.eq.f32.partialorder %v1755, %v1757
    %v1759 = vsel %vm1758, %v1754, inf
    %1760 = vmin.xlane.f32.xlu0 %v1759
    %v1761 = vpop.xlane.xlu0 %1760
    %v1762 = vcvt.f32.s32 %v1761
    %v1763 = vcvt.f32.s32 %v1757
    %v1764 = vshll.u32 %v1763, 16
    %v1765 = vadd.s32 %v1764, %v1762
    %v1766 = vand.u32 %v1607, 65535
    %v1767 = vshra.s32 %v1607, 16
    %v1768 = vcvt.s32.f32 %v1766
    %v1769 = vcvt.s32.f32 %v1767
    %1770 = vmin.xlane.f32.xlu0 %v1769
    %v1771 = vpop.xlane.xlu0 %1770
    %vm1772 = vcmp.eq.f32.partialorder %v1769, %v1771
    %v1773 = vsel %vm1772, %v1768, inf
    %1774 = vmin.xlane.f32.xlu0 %v1773
    %v1775 = vpop.xlane.xlu0 %1774
    %v1776 = vcvt.f32.s32 %v1775
    %v1777 = vcvt.f32.s32 %v1771
    %v1778 = vshll.u32 %v1777, 16
    %v1779 = vadd.s32 %v1778, %v1776
    %v1780 = vand.u32 %v1608, 65535
    %v1781 = vshra.s32 %v1608, 16
    %v1782 = vcvt.s32.f32 %v1780
    %v1783 = vcvt.s32.f32 %v1781
    %1784 = vmin.xlane.f32.xlu0 %v1783
    %v1785 = vpop.xlane.xlu0 %1784
    %vm1786 = vcmp.eq.f32.partialorder %v1783, %v1785
    %v1787 = vsel %vm1786, %v1782, inf
    %1788 = vmin.xlane.f32.xlu0 %v1787
    %v1789 = vpop.xlane.xlu0 %1788
    %v1790 = vcvt.f32.s32 %v1789
    %v1791 = vcvt.f32.s32 %v1785
    %v1792 = vshll.u32 %v1791, 16
    %v1793 = vadd.s32 %v1792, %v1790
    %v1794 = vand.u32 %v1609, 65535
    %v1795 = vshra.s32 %v1609, 16
    %v1796 = vcvt.s32.f32 %v1794
    %v1797 = vcvt.s32.f32 %v1795
    %1798 = vmin.xlane.f32.xlu0 %v1797
    %v1799 = vpop.xlane.xlu0 %1798
    %vm1800 = vcmp.eq.f32.partialorder %v1797, %v1799
    %v1801 = vsel %vm1800, %v1796, inf
    %1802 = vmin.xlane.f32.xlu0 %v1801
    %v1803 = vpop.xlane.xlu0 %1802
    %v1804 = vcvt.f32.s32 %v1803
    %v1805 = vcvt.f32.s32 %v1799
    %v1806 = vshll.u32 %v1805, 16
    %v1807 = vadd.s32 %v1806, %v1804
    %v1808 = vand.u32 %v1610, 65535
    %v1809 = vshra.s32 %v1610, 16
    %v1810 = vcvt.s32.f32 %v1808
    %v1811 = vcvt.s32.f32 %v1809
    %1812 = vmin.xlane.f32.xlu0 %v1811
    %v1813 = vpop.xlane.xlu0 %1812
    %vm1814 = vcmp.eq.f32.partialorder %v1811, %v1813
    %v1815 = vsel %vm1814, %v1810, inf
    %1816 = vmin.xlane.f32.xlu0 %v1815
    %v1817 = vpop.xlane.xlu0 %1816
    %v1818 = vcvt.f32.s32 %v1817
    %v1819 = vcvt.f32.s32 %v1813
    %v1820 = vshll.u32 %v1819, 16
    %v1821 = vadd.s32 %v1820, %v1818
    %v1822 = vand.u32 %v1611, 65535
    %v1823 = vshra.s32 %v1611, 16
    %v1824 = vcvt.s32.f32 %v1822
    %v1825 = vcvt.s32.f32 %v1823
    %1826 = vmin.xlane.f32.xlu0 %v1825
    %v1827 = vpop.xlane.xlu0 %1826
    %vm1828 = vcmp.eq.f32.partialorder %v1825, %v1827
    %v1829 = vsel %vm1828, %v1824, inf
    %1830 = vmin.xlane.f32.xlu0 %v1829
    %v1831 = vpop.xlane.xlu0 %1830
    %v1832 = vcvt.f32.s32 %v1831
    %v1833 = vcvt.f32.s32 %v1827
    %v1834 = vshll.u32 %v1833, 16
    %v1835 = vadd.s32 %v1834, %v1832
    %vm1836 = vcmp.eq.s32.totalorder %v165, %v1625
    %vm1837 = vcmp.eq.s32.totalorder %v165, %v1639
    %vm1838 = vcmp.eq.s32.totalorder %v165, %v1653
    %vm1839 = vcmp.eq.s32.totalorder %v165, %v1667
    %vm1840 = vcmp.eq.s32.totalorder %v165, %v1681
    %vm1841 = vcmp.eq.s32.totalorder %v165, %v1695
    %vm1842 = vcmp.eq.s32.totalorder %v165, %v1709
    %vm1843 = vcmp.eq.s32.totalorder %v165, %v1723
    %vm1844 = vcmp.eq.s32.totalorder %v165, %v1737
    %vm1845 = vcmp.eq.s32.totalorder %v165, %v1751
    %vm1846 = vcmp.eq.s32.totalorder %v165, %v1765
    %vm1847 = vcmp.eq.s32.totalorder %v165, %v1779
    %vm1848 = vcmp.eq.s32.totalorder %v165, %v1793
    %vm1849 = vcmp.eq.s32.totalorder %v165, %v1807
    %vm1850 = vcmp.eq.s32.totalorder %v165, %v1821
    %vm1851 = vcmp.eq.s32.totalorder %v165, %v1835
    %v1852 = vsel %vm1836, 1, 0
    %v1853 = vsel %vm1837, 1, 0
    %v1854 = vsel %vm1838, 1, 0
    %v1855 = vsel %vm1839, 1, 0
    %v1856 = vsel %vm1840, 1, 0
    %v1857 = vsel %vm1841, 1, 0
    %v1858 = vsel %vm1842, 1, 0
    %v1859 = vsel %vm1843, 1, 0
    %v1860 = vsel %vm1844, 1, 0
    %v1861 = vsel %vm1845, 1, 0
    %v1862 = vsel %vm1846, 1, 0
    %v1863 = vsel %vm1847, 1, 0
    %v1864 = vsel %vm1848, 1, 0
    %v1865 = vsel %vm1849, 1, 0
    %v1866 = vsel %vm1850, 1, 0
    %v1867 = vsel %vm1851, 1, 0
    %v1868 = vcvt.s32.f32 %v1852
    %v1869 = vcvt.s32.f32 %v1853
    %v1870 = vcvt.s32.f32 %v1854
    %v1871 = vcvt.s32.f32 %v1855
    %v1872 = vcvt.s32.f32 %v1856
    %v1873 = vcvt.s32.f32 %v1857
    %v1874 = vcvt.s32.f32 %v1858
    %v1875 = vcvt.s32.f32 %v1859
    %v1876 = vcvt.s32.f32 %v1860
    %v1877 = vcvt.s32.f32 %v1861
    %v1878 = vcvt.s32.f32 %v1862
    %v1879 = vcvt.s32.f32 %v1863
    %v1880 = vcvt.s32.f32 %v1864
    %v1881 = vcvt.s32.f32 %v1865
    %v1882 = vcvt.s32.f32 %v1866
    %v1883 = vcvt.s32.f32 %v1867
    %v1884 = vpack.c.bf16 %v1869, %v1868
    %v1885 = vpack.c.bf16 %v1871, %v1870
    %v1886 = vpack.c.bf16 %v1873, %v1872
    %v1887 = vpack.c.bf16 %v1875, %v1874
    %v1888 = vpack.c.bf16 %v1877, %v1876
    %v1889 = vpack.c.bf16 %v1879, %v1878
    %v1890 = vpack.c.bf16 %v1881, %v1880
    %v1891 = vpack.c.bf16 %v1883, %v1882
    %1900 = vmatpush.bf16.msra.mxu0 %v1429
    %1901 = vmatpush.bf16.msra.mxu0 %v1428
    %1902 = vmatpush.bf16.msra.mxu0 %v1427
    %1903 = vmatpush.bf16.msra.mxu0 %v1426
    %1904 = vmatpush.bf16.msra.mxu0 %v1425
    %1905 = vmatpush.bf16.msra.mxu0 %v1424
    %1906 = vmatpush.bf16.msra.mxu0 %v1423
    %1907 = vmatpush.bf16.msra.mxu0 %v1422
    %1908 = vmatmul.bf16.gmra.mxu0 %v1884
    %v1909 = vpop.f32.mrf.mxu0
    %v1910 = vadd.f32 0.0, %v1909
    %v1911 = vpop.f32.mrf.mxu0
    %v1912 = vadd.f32 0.0, %v1911
    %1913 = vmatmul.bf16.gmra.mxu0 %v1885
    %v1914 = vpop.f32.mrf.mxu0
    %v1915 = vadd.f32 0.0, %v1914
    %v1916 = vpop.f32.mrf.mxu0
    %v1917 = vadd.f32 0.0, %v1916
    %1918 = vmatmul.bf16.gmra.mxu0 %v1886
    %v1919 = vpop.f32.mrf.mxu0
    %v1920 = vadd.f32 0.0, %v1919
    %v1921 = vpop.f32.mrf.mxu0
    %v1922 = vadd.f32 0.0, %v1921
    %1923 = vmatmul.bf16.gmra.mxu0 %v1887
    %v1924 = vpop.f32.mrf.mxu0
    %v1925 = vadd.f32 0.0, %v1924
    %v1926 = vpop.f32.mrf.mxu0
    %v1927 = vadd.f32 0.0, %v1926
    %1928 = vmatmul.bf16.gmra.mxu0 %v1888
    %v1929 = vpop.f32.mrf.mxu0
    %v1930 = vadd.f32 0.0, %v1929
    %v1931 = vpop.f32.mrf.mxu0
    %v1932 = vadd.f32 0.0, %v1931
    %1933 = vmatmul.bf16.gmra.mxu0 %v1889
    %v1934 = vpop.f32.mrf.mxu0
    %v1935 = vadd.f32 0.0, %v1934
    %v1936 = vpop.f32.mrf.mxu0
    %v1937 = vadd.f32 0.0, %v1936
    %1938 = vmatmul.bf16.gmra.mxu0 %v1890
    %v1939 = vpop.f32.mrf.mxu0
    %v1940 = vadd.f32 0.0, %v1939
    %v1941 = vpop.f32.mrf.mxu0
    %v1942 = vadd.f32 0.0, %v1941
    %1943 = vmatmul.bf16.gmra.mxu0 %v1891
    %v1944 = vpop.f32.mrf.mxu0
    %v1945 = vadd.f32 0.0, %v1944
    %v1946 = vpop.f32.mrf.mxu0
    %v1947 = vadd.f32 0.0, %v1946
    %1948 = vdwg.mxu0
    %v1949 = vsub.f32 %v1349, %v1910
    %v1950 = vsub.f32 %v1350, %v1912
    %v1951 = vsub.f32 %v1351, %v1915
    %v1952 = vsub.f32 %v1352, %v1917
    %v1953 = vsub.f32 %v1353, %v1920
    %v1954 = vsub.f32 %v1354, %v1922
    %v1955 = vsub.f32 %v1355, %v1925
    %v1956 = vsub.f32 %v1356, %v1927
    %v1957 = vsub.f32 %v1357, %v1930
    %v1958 = vsub.f32 %v1358, %v1932
    %v1959 = vsub.f32 %v1359, %v1935
    %v1960 = vsub.f32 %v1360, %v1937
    %v1961 = vsub.f32 %v1361, %v1940
    %v1962 = vsub.f32 %v1362, %v1942
    %v1963 = vsub.f32 %v1363, %v1945
    %v1964 = vsub.f32 %v1364, %v1947
    %s1965 = scalar_lea.vmem %s3, 192
    %v1966 = vld [vmem:[%s1965] sm:$0xf]
    %v1967 = vld [vmem:[%s1965 + $0x4] sm:$0xf]
    %v1968 = vld [vmem:[%s1965 + $0x8] sm:$0xf]
    %v1969 = vld [vmem:[%s1965 + $0xc] sm:$0xf]
    %v1970 = vld [vmem:[%s1965 + $0x10] sm:$0xf]
    %v1971 = vld [vmem:[%s1965 + $0x14] sm:$0xf]
    %v1972 = vld [vmem:[%s1965 + $0x18] sm:$0xf]
    %v1973 = vld [vmem:[%s1965 + $0x1c] sm:$0xf]
    %v1974 = vld [vmem:[%s1965 + $0x20] sm:$0xf]
    %v1975 = vld [vmem:[%s1965 + $0x24] sm:$0xf]
    %v1976 = vld [vmem:[%s1965 + $0x28] sm:$0xf]
    %v1977 = vld [vmem:[%s1965 + $0x2c] sm:$0xf]
    %v1978 = vld [vmem:[%s1965 + $0x30] sm:$0xf]
    %v1979 = vld [vmem:[%s1965 + $0x34] sm:$0xf]
    %v1980 = vld [vmem:[%s1965 + $0x38] sm:$0xf]
    %v1981 = vld [vmem:[%s1965 + $0x3c] sm:$0xf]
    %v1982 = vpack.c.bf16 %v1950, %v1949
    %v1983 = vpack.c.bf16 %v1952, %v1951
    %v1984 = vpack.c.bf16 %v1954, %v1953
    %v1985 = vpack.c.bf16 %v1956, %v1955
    %v1986 = vpack.c.bf16 %v1958, %v1957
    %v1987 = vpack.c.bf16 %v1960, %v1959
    %v1988 = vpack.c.bf16 %v1962, %v1961
    %v1989 = vpack.c.bf16 %v1964, %v1963
    %v2006 = vunpack.c.l.b16 %v1966
    %v2007 = vunpack.c.l.b16 %v1967
    %v2008 = vunpack.c.l.b16 %v1968
    %v2009 = vunpack.c.l.b16 %v1969
    %v2010 = vunpack.c.l.b16 %v1970
    %v2011 = vunpack.c.l.b16 %v1971
    %v2012 = vunpack.c.l.b16 %v1972
    %v2013 = vunpack.c.l.b16 %v1973
    %v2014 = vunpack.c.l.b16 %v1974
    %v2015 = vunpack.c.l.b16 %v1975
    %v2016 = vunpack.c.l.b16 %v1976
    %v2017 = vunpack.c.l.b16 %v1977
    %v2018 = vunpack.c.l.b16 %v1978
    %v2019 = vunpack.c.l.b16 %v1979
    %v2020 = vunpack.c.l.b16 %v1980
    %v2021 = vunpack.c.l.b16 %v1981
    %v2022 = vpack.c.b16 %v2007, %v2006
    %v2023 = vpack.c.b16 %v2009, %v2008
    %v2024 = vpack.c.b16 %v2011, %v2010
    %v2025 = vpack.c.b16 %v2013, %v2012
    %v2026 = vpack.c.b16 %v2015, %v2014
    %v2027 = vpack.c.b16 %v2017, %v2016
    %v2028 = vpack.c.b16 %v2019, %v2018
    %v2029 = vpack.c.b16 %v2021, %v2020
    %v2031 = vsel %vm230, %v1982, 0
    %v2034 = vsel %vm230, %v1983, 0
    %v2037 = vsel %vm230, %v1984, 0
    %v2040 = vsel %vm230, %v1985, 0
    %v2043 = vsel %vm230, %v1986, 0
    %v2046 = vsel %vm230, %v1987, 0
    %v2049 = vsel %vm230, %v1988, 0
    %v2052 = vsel %vm230, %v1989, 0
    %v2055 = vsel %vm230, %v2022, 0
    %v2058 = vsel %vm230, %v2023, 0
    %v2061 = vsel %vm230, %v2024, 0
    %v2064 = vsel %vm230, %v2025, 0
    %v2067 = vsel %vm230, %v2026, 0
    %v2070 = vsel %vm230, %v2027, 0
    %v2073 = vsel %vm230, %v2028, 0
    %v2076 = vsel %vm230, %v2029, 0
    %2078 = vmatpush.bf16.xpose.msra.mxu0 %v2076
    %2079 = vmatpush.bf16.xpose.msra.mxu0 %v2073
    %2080 = vmatpush.bf16.xpose.msra.mxu0 %v2070
    %2081 = vmatpush.bf16.xpose.msra.mxu0 %v2067
    %2082 = vmatpush.bf16.xpose.msra.mxu0 %v2064
    %2083 = vmatpush.bf16.xpose.msra.mxu0 %v2061
    %2084 = vmatpush.bf16.xpose.msra.mxu0 %v2058
    %2085 = vmatpush.bf16.xpose.msra.mxu0 %v2055
    %2086 = vmatmul.bf16.gmra.mxu0 %v2031
    %v2087 = vpop.f32.mrf.mxu0
    %v2088 = vadd.f32 0.0, %v2087
    %v2089 = vpop.f32.mrf.mxu0
    %v2090 = vadd.f32 0.0, %v2089
    %2091 = vmatmul.bf16.gmra.mxu0 %v2034
    %v2092 = vpop.f32.mrf.mxu0
    %v2093 = vadd.f32 0.0, %v2092
    %v2094 = vpop.f32.mrf.mxu0
    %v2095 = vadd.f32 0.0, %v2094
    %2096 = vmatmul.bf16.gmra.mxu0 %v2037
    %v2097 = vpop.f32.mrf.mxu0
    %v2098 = vadd.f32 0.0, %v2097
    %v2099 = vpop.f32.mrf.mxu0
    %v2100 = vadd.f32 0.0, %v2099
    %2101 = vmatmul.bf16.gmra.mxu0 %v2040
    %v2102 = vpop.f32.mrf.mxu0
    %v2103 = vadd.f32 0.0, %v2102
    %v2104 = vpop.f32.mrf.mxu0
    %v2105 = vadd.f32 0.0, %v2104
    %2106 = vmatmul.bf16.gmra.mxu0 %v2043
    %v2107 = vpop.f32.mrf.mxu0
    %v2108 = vadd.f32 0.0, %v2107
    %v2109 = vpop.f32.mrf.mxu0
    %v2110 = vadd.f32 0.0, %v2109
    %2111 = vmatmul.bf16.gmra.mxu0 %v2046
    %v2112 = vpop.f32.mrf.mxu0
    %v2113 = vadd.f32 0.0, %v2112
    %v2114 = vpop.f32.mrf.mxu0
    %v2115 = vadd.f32 0.0, %v2114
    %2116 = vmatmul.bf16.gmra.mxu0 %v2049
    %v2117 = vpop.f32.mrf.mxu0
    %v2118 = vadd.f32 0.0, %v2117
    %v2119 = vpop.f32.mrf.mxu0
    %v2120 = vadd.f32 0.0, %v2119
    %2121 = vmatmul.bf16.gmra.mxu0 %v2052
    %v2122 = vpop.f32.mrf.mxu0
    %v2123 = vadd.f32 0.0, %v2122
    %v2124 = vpop.f32.mrf.mxu0
    %v2125 = vadd.f32 0.0, %v2124
    %2126 = vdwg.mxu0
    %s2127 = scalar_lea.vmem %s4, 3
    %v2128 = vld [vmem:[%s2127] sm:$0x1]
    %v2130 = vperm.slane %v2128, 0
    %v2132 = vsub.f32 %v2130, %v2088
    %v2133 = vsub.f32 %v2130, %v2090
    %v2134 = vsub.f32 %v2130, %v2093
    %v2135 = vsub.f32 %v2130, %v2095
    %v2136 = vsub.f32 %v2130, %v2098
    %v2137 = vsub.f32 %v2130, %v2100
    %v2138 = vsub.f32 %v2130, %v2103
    %v2139 = vsub.f32 %v2130, %v2105
    %v2140 = vsub.f32 %v2130, %v2108
    %v2141 = vsub.f32 %v2130, %v2110
    %v2142 = vsub.f32 %v2130, %v2113
    %v2143 = vsub.f32 %v2130, %v2115
    %v2144 = vsub.f32 %v2130, %v2118
    %v2145 = vsub.f32 %v2130, %v2120
    %v2146 = vsub.f32 %v2130, %v2123
    %v2147 = vsub.f32 %v2130, %v2125
    %2148 = vmin.xlane.f32.xlu0 %v2132
    %v2149 = vpop.xlane.xlu0 %2148
    %2150 = vmin.xlane.f32.xlu0 %v2133
    %v2151 = vpop.xlane.xlu0 %2150
    %2152 = vmin.xlane.f32.xlu0 %v2134
    %v2153 = vpop.xlane.xlu0 %2152
    %2154 = vmin.xlane.f32.xlu0 %v2135
    %v2155 = vpop.xlane.xlu0 %2154
    %2156 = vmin.xlane.f32.xlu0 %v2136
    %v2157 = vpop.xlane.xlu0 %2156
    %2158 = vmin.xlane.f32.xlu0 %v2137
    %v2159 = vpop.xlane.xlu0 %2158
    %2160 = vmin.xlane.f32.xlu0 %v2138
    %v2161 = vpop.xlane.xlu0 %2160
    %2162 = vmin.xlane.f32.xlu0 %v2139
    %v2163 = vpop.xlane.xlu0 %2162
    %2164 = vmin.xlane.f32.xlu0 %v2140
    %v2165 = vpop.xlane.xlu0 %2164
    %2166 = vmin.xlane.f32.xlu0 %v2141
    %v2167 = vpop.xlane.xlu0 %2166
    %2168 = vmin.xlane.f32.xlu0 %v2142
    %v2169 = vpop.xlane.xlu0 %2168
    %2170 = vmin.xlane.f32.xlu0 %v2143
    %v2171 = vpop.xlane.xlu0 %2170
    %2172 = vmin.xlane.f32.xlu0 %v2144
    %v2173 = vpop.xlane.xlu0 %2172
    %2174 = vmin.xlane.f32.xlu0 %v2145
    %v2175 = vpop.xlane.xlu0 %2174
    %2176 = vmin.xlane.f32.xlu0 %v2146
    %v2177 = vpop.xlane.xlu0 %2176
    %2178 = vmin.xlane.f32.xlu0 %v2147
    %v2179 = vpop.xlane.xlu0 %2178
    %vm2180 = vcmp.eq.f32.partialorder %v2132, %v2149
    %vm2181 = vcmp.eq.f32.partialorder %v2133, %v2151
    %vm2182 = vcmp.eq.f32.partialorder %v2134, %v2153
    %vm2183 = vcmp.eq.f32.partialorder %v2135, %v2155
    %vm2184 = vcmp.eq.f32.partialorder %v2136, %v2157
    %vm2185 = vcmp.eq.f32.partialorder %v2137, %v2159
    %vm2186 = vcmp.eq.f32.partialorder %v2138, %v2161
    %vm2187 = vcmp.eq.f32.partialorder %v2139, %v2163
    %vm2188 = vcmp.eq.f32.partialorder %v2140, %v2165
    %vm2189 = vcmp.eq.f32.partialorder %v2141, %v2167
    %vm2190 = vcmp.eq.f32.partialorder %v2142, %v2169
    %vm2191 = vcmp.eq.f32.partialorder %v2143, %v2171
    %vm2192 = vcmp.eq.f32.partialorder %v2144, %v2173
    %vm2193 = vcmp.eq.f32.partialorder %v2145, %v2175
    %vm2194 = vcmp.eq.f32.partialorder %v2146, %v2177
    %vm2195 = vcmp.eq.f32.partialorder %v2147, %v2179
    %v2196 = vsel %vm2180, %v165, 128
    %v2197 = vsel %vm2181, %v165, 128
    %v2198 = vsel %vm2182, %v165, 128
    %v2199 = vsel %vm2183, %v165, 128
    %v2200 = vsel %vm2184, %v165, 128
    %v2201 = vsel %vm2185, %v165, 128
    %v2202 = vsel %vm2186, %v165, 128
    %v2203 = vsel %vm2187, %v165, 128
    %v2204 = vsel %vm2188, %v165, 128
    %v2205 = vsel %vm2189, %v165, 128
    %v2206 = vsel %vm2190, %v165, 128
    %v2207 = vsel %vm2191, %v165, 128
    %v2208 = vsel %vm2192, %v165, 128
    %v2209 = vsel %vm2193, %v165, 128
    %v2210 = vsel %vm2194, %v165, 128
    %v2211 = vsel %vm2195, %v165, 128
    %v2212 = vand.u32 %v2196, 65535
    %v2213 = vshra.s32 %v2196, 16
    %v2214 = vcvt.s32.f32 %v2212
    %v2215 = vcvt.s32.f32 %v2213
    %2216 = vmin.xlane.f32.xlu0 %v2215
    %v2217 = vpop.xlane.xlu0 %2216
    %vm2218 = vcmp.eq.f32.partialorder %v2215, %v2217
    %v2219 = vsel %vm2218, %v2214, inf
    %2220 = vmin.xlane.f32.xlu0 %v2219
    %v2221 = vpop.xlane.xlu0 %2220
    %v2222 = vcvt.f32.s32 %v2221
    %v2223 = vcvt.f32.s32 %v2217
    %v2224 = vshll.u32 %v2223, 16
    %v2225 = vadd.s32 %v2224, %v2222
    %v2226 = vand.u32 %v2197, 65535
    %v2227 = vshra.s32 %v2197, 16
    %v2228 = vcvt.s32.f32 %v2226
    %v2229 = vcvt.s32.f32 %v2227
    %2230 = vmin.xlane.f32.xlu0 %v2229
    %v2231 = vpop.xlane.xlu0 %2230
    %vm2232 = vcmp.eq.f32.partialorder %v2229, %v2231
    %v2233 = vsel %vm2232, %v2228, inf
    %2234 = vmin.xlane.f32.xlu0 %v2233
    %v2235 = vpop.xlane.xlu0 %2234
    %v2236 = vcvt.f32.s32 %v2235
    %v2237 = vcvt.f32.s32 %v2231
    %v2238 = vshll.u32 %v2237, 16
    %v2239 = vadd.s32 %v2238, %v2236
    %v2240 = vand.u32 %v2198, 65535
    %v2241 = vshra.s32 %v2198, 16
    %v2242 = vcvt.s32.f32 %v2240
    %v2243 = vcvt.s32.f32 %v2241
    %2244 = vmin.xlane.f32.xlu0 %v2243
    %v2245 = vpop.xlane.xlu0 %2244
    %vm2246 = vcmp.eq.f32.partialorder %v2243, %v2245
    %v2247 = vsel %vm2246, %v2242, inf
    %2248 = vmin.xlane.f32.xlu0 %v2247
    %v2249 = vpop.xlane.xlu0 %2248
    %v2250 = vcvt.f32.s32 %v2249
    %v2251 = vcvt.f32.s32 %v2245
    %v2252 = vshll.u32 %v2251, 16
    %v2253 = vadd.s32 %v2252, %v2250
    %v2254 = vand.u32 %v2199, 65535
    %v2255 = vshra.s32 %v2199, 16
    %v2256 = vcvt.s32.f32 %v2254
    %v2257 = vcvt.s32.f32 %v2255
    %2258 = vmin.xlane.f32.xlu0 %v2257
    %v2259 = vpop.xlane.xlu0 %2258
    %vm2260 = vcmp.eq.f32.partialorder %v2257, %v2259
    %v2261 = vsel %vm2260, %v2256, inf
    %2262 = vmin.xlane.f32.xlu0 %v2261
    %v2263 = vpop.xlane.xlu0 %2262
    %v2264 = vcvt.f32.s32 %v2263
    %v2265 = vcvt.f32.s32 %v2259
    %v2266 = vshll.u32 %v2265, 16
    %v2267 = vadd.s32 %v2266, %v2264
    %v2268 = vand.u32 %v2200, 65535
    %v2269 = vshra.s32 %v2200, 16
    %v2270 = vcvt.s32.f32 %v2268
    %v2271 = vcvt.s32.f32 %v2269
    %2272 = vmin.xlane.f32.xlu0 %v2271
    %v2273 = vpop.xlane.xlu0 %2272
    %vm2274 = vcmp.eq.f32.partialorder %v2271, %v2273
    %v2275 = vsel %vm2274, %v2270, inf
    %2276 = vmin.xlane.f32.xlu0 %v2275
    %v2277 = vpop.xlane.xlu0 %2276
    %v2278 = vcvt.f32.s32 %v2277
    %v2279 = vcvt.f32.s32 %v2273
    %v2280 = vshll.u32 %v2279, 16
    %v2281 = vadd.s32 %v2280, %v2278
    %v2282 = vand.u32 %v2201, 65535
    %v2283 = vshra.s32 %v2201, 16
    %v2284 = vcvt.s32.f32 %v2282
    %v2285 = vcvt.s32.f32 %v2283
    %2286 = vmin.xlane.f32.xlu0 %v2285
    %v2287 = vpop.xlane.xlu0 %2286
    %vm2288 = vcmp.eq.f32.partialorder %v2285, %v2287
    %v2289 = vsel %vm2288, %v2284, inf
    %2290 = vmin.xlane.f32.xlu0 %v2289
    %v2291 = vpop.xlane.xlu0 %2290
    %v2292 = vcvt.f32.s32 %v2291
    %v2293 = vcvt.f32.s32 %v2287
    %v2294 = vshll.u32 %v2293, 16
    %v2295 = vadd.s32 %v2294, %v2292
    %v2296 = vand.u32 %v2202, 65535
    %v2297 = vshra.s32 %v2202, 16
    %v2298 = vcvt.s32.f32 %v2296
    %v2299 = vcvt.s32.f32 %v2297
    %2300 = vmin.xlane.f32.xlu0 %v2299
    %v2301 = vpop.xlane.xlu0 %2300
    %vm2302 = vcmp.eq.f32.partialorder %v2299, %v2301
    %v2303 = vsel %vm2302, %v2298, inf
    %2304 = vmin.xlane.f32.xlu0 %v2303
    %v2305 = vpop.xlane.xlu0 %2304
    %v2306 = vcvt.f32.s32 %v2305
    %v2307 = vcvt.f32.s32 %v2301
    %v2308 = vshll.u32 %v2307, 16
    %v2309 = vadd.s32 %v2308, %v2306
    %v2310 = vand.u32 %v2203, 65535
    %v2311 = vshra.s32 %v2203, 16
    %v2312 = vcvt.s32.f32 %v2310
    %v2313 = vcvt.s32.f32 %v2311
    %2314 = vmin.xlane.f32.xlu0 %v2313
    %v2315 = vpop.xlane.xlu0 %2314
    %vm2316 = vcmp.eq.f32.partialorder %v2313, %v2315
    %v2317 = vsel %vm2316, %v2312, inf
    %2318 = vmin.xlane.f32.xlu0 %v2317
    %v2319 = vpop.xlane.xlu0 %2318
    %v2320 = vcvt.f32.s32 %v2319
    %v2321 = vcvt.f32.s32 %v2315
    %v2322 = vshll.u32 %v2321, 16
    %v2323 = vadd.s32 %v2322, %v2320
    %v2324 = vand.u32 %v2204, 65535
    %v2325 = vshra.s32 %v2204, 16
    %v2326 = vcvt.s32.f32 %v2324
    %v2327 = vcvt.s32.f32 %v2325
    %2328 = vmin.xlane.f32.xlu0 %v2327
    %v2329 = vpop.xlane.xlu0 %2328
    %vm2330 = vcmp.eq.f32.partialorder %v2327, %v2329
    %v2331 = vsel %vm2330, %v2326, inf
    %2332 = vmin.xlane.f32.xlu0 %v2331
    %v2333 = vpop.xlane.xlu0 %2332
    %v2334 = vcvt.f32.s32 %v2333
    %v2335 = vcvt.f32.s32 %v2329
    %v2336 = vshll.u32 %v2335, 16
    %v2337 = vadd.s32 %v2336, %v2334
    %v2338 = vand.u32 %v2205, 65535
    %v2339 = vshra.s32 %v2205, 16
    %v2340 = vcvt.s32.f32 %v2338
    %v2341 = vcvt.s32.f32 %v2339
    %2342 = vmin.xlane.f32.xlu0 %v2341
    %v2343 = vpop.xlane.xlu0 %2342
    %vm2344 = vcmp.eq.f32.partialorder %v2341, %v2343
    %v2345 = vsel %vm2344, %v2340, inf
    %2346 = vmin.xlane.f32.xlu0 %v2345
    %v2347 = vpop.xlane.xlu0 %2346
    %v2348 = vcvt.f32.s32 %v2347
    %v2349 = vcvt.f32.s32 %v2343
    %v2350 = vshll.u32 %v2349, 16
    %v2351 = vadd.s32 %v2350, %v2348
    %v2352 = vand.u32 %v2206, 65535
    %v2353 = vshra.s32 %v2206, 16
    %v2354 = vcvt.s32.f32 %v2352
    %v2355 = vcvt.s32.f32 %v2353
    %2356 = vmin.xlane.f32.xlu0 %v2355
    %v2357 = vpop.xlane.xlu0 %2356
    %vm2358 = vcmp.eq.f32.partialorder %v2355, %v2357
    %v2359 = vsel %vm2358, %v2354, inf
    %2360 = vmin.xlane.f32.xlu0 %v2359
    %v2361 = vpop.xlane.xlu0 %2360
    %v2362 = vcvt.f32.s32 %v2361
    %v2363 = vcvt.f32.s32 %v2357
    %v2364 = vshll.u32 %v2363, 16
    %v2365 = vadd.s32 %v2364, %v2362
    %v2366 = vand.u32 %v2207, 65535
    %v2367 = vshra.s32 %v2207, 16
    %v2368 = vcvt.s32.f32 %v2366
    %v2369 = vcvt.s32.f32 %v2367
    %2370 = vmin.xlane.f32.xlu0 %v2369
    %v2371 = vpop.xlane.xlu0 %2370
    %vm2372 = vcmp.eq.f32.partialorder %v2369, %v2371
    %v2373 = vsel %vm2372, %v2368, inf
    %2374 = vmin.xlane.f32.xlu0 %v2373
    %v2375 = vpop.xlane.xlu0 %2374
    %v2376 = vcvt.f32.s32 %v2375
    %v2377 = vcvt.f32.s32 %v2371
    %v2378 = vshll.u32 %v2377, 16
    %v2379 = vadd.s32 %v2378, %v2376
    %v2380 = vand.u32 %v2208, 65535
    %v2381 = vshra.s32 %v2208, 16
    %v2382 = vcvt.s32.f32 %v2380
    %v2383 = vcvt.s32.f32 %v2381
    %2384 = vmin.xlane.f32.xlu0 %v2383
    %v2385 = vpop.xlane.xlu0 %2384
    %vm2386 = vcmp.eq.f32.partialorder %v2383, %v2385
    %v2387 = vsel %vm2386, %v2382, inf
    %2388 = vmin.xlane.f32.xlu0 %v2387
    %v2389 = vpop.xlane.xlu0 %2388
    %v2390 = vcvt.f32.s32 %v2389
    %v2391 = vcvt.f32.s32 %v2385
    %v2392 = vshll.u32 %v2391, 16
    %v2393 = vadd.s32 %v2392, %v2390
    %v2394 = vand.u32 %v2209, 65535
    %v2395 = vshra.s32 %v2209, 16
    %v2396 = vcvt.s32.f32 %v2394
    %v2397 = vcvt.s32.f32 %v2395
    %2398 = vmin.xlane.f32.xlu0 %v2397
    %v2399 = vpop.xlane.xlu0 %2398
    %vm2400 = vcmp.eq.f32.partialorder %v2397, %v2399
    %v2401 = vsel %vm2400, %v2396, inf
    %2402 = vmin.xlane.f32.xlu0 %v2401
    %v2403 = vpop.xlane.xlu0 %2402
    %v2404 = vcvt.f32.s32 %v2403
    %v2405 = vcvt.f32.s32 %v2399
    %v2406 = vshll.u32 %v2405, 16
    %v2407 = vadd.s32 %v2406, %v2404
    %v2408 = vand.u32 %v2210, 65535
    %v2409 = vshra.s32 %v2210, 16
    %v2410 = vcvt.s32.f32 %v2408
    %v2411 = vcvt.s32.f32 %v2409
    %2412 = vmin.xlane.f32.xlu0 %v2411
    %v2413 = vpop.xlane.xlu0 %2412
    %vm2414 = vcmp.eq.f32.partialorder %v2411, %v2413
    %v2415 = vsel %vm2414, %v2410, inf
    %2416 = vmin.xlane.f32.xlu0 %v2415
    %v2417 = vpop.xlane.xlu0 %2416
    %v2418 = vcvt.f32.s32 %v2417
    %v2419 = vcvt.f32.s32 %v2413
    %v2420 = vshll.u32 %v2419, 16
    %v2421 = vadd.s32 %v2420, %v2418
    %v2422 = vand.u32 %v2211, 65535
    %v2423 = vshra.s32 %v2211, 16
    %v2424 = vcvt.s32.f32 %v2422
    %v2425 = vcvt.s32.f32 %v2423
    %2426 = vmin.xlane.f32.xlu0 %v2425
    %v2427 = vpop.xlane.xlu0 %2426
    %vm2428 = vcmp.eq.f32.partialorder %v2425, %v2427
    %v2429 = vsel %vm2428, %v2424, inf
    %2430 = vmin.xlane.f32.xlu0 %v2429
    %v2431 = vpop.xlane.xlu0 %2430
    %v2432 = vcvt.f32.s32 %v2431
    %v2433 = vcvt.f32.s32 %v2427
    %v2434 = vshll.u32 %v2433, 16
    %v2435 = vadd.s32 %v2434, %v2432
    %v2436 = vperm.slane %v425, %v165
    %v2437 = vadd.s32 %v165, 4294967288
    %v2438 = vperm.slane %v439, %v2437
    %vm2439 = vcmask 130112
    %v2440 = vsel %vm2439, %v2438, %v2436
    %v2441 = vadd.s32 %v165, 4294967280
    %v2442 = vperm.slane %v453, %v2441
    %vm2443 = vcmask 195712
    %v2444 = vsel %vm2443, %v2442, %v2440
    %v2445 = vadd.s32 %v165, 4294967272
    %v2446 = vperm.slane %v467, %v2445
    %vm2447 = vcmask 261312
    %v2448 = vsel %vm2447, %v2446, %v2444
    %v2449 = vadd.s32 %v165, 4294967264
    %v2450 = vperm.slane %v481, %v2449
    %vm2451 = vcmask 326912
    %v2452 = vsel %vm2451, %v2450, %v2448
    %v2453 = vadd.s32 %v165, 4294967256
    %v2454 = vperm.slane %v495, %v2453
    %vm2455 = vcmask 392512
    %v2456 = vsel %vm2455, %v2454, %v2452
    %v2457 = vadd.s32 %v165, 4294967248
    %v2458 = vperm.slane %v509, %v2457
    %vm2459 = vcmask 458112
    %v2460 = vsel %vm2459, %v2458, %v2456
    %v2461 = vadd.s32 %v165, 4294967240
    %v2462 = vperm.slane %v523, %v2461
    %vm2463 = vcmask 523712
    %v2464 = vsel %vm2463, %v2462, %v2460
    %v2465 = vadd.s32 %v165, 4294967232
    %v2466 = vperm.slane %v537, %v2465
    %vm2467 = vcmask 589312
    %v2468 = vsel %vm2467, %v2466, %v2464
    %v2469 = vadd.s32 %v165, 4294967224
    %v2470 = vperm.slane %v551, %v2469
    %vm2471 = vcmask 654912
    %v2472 = vsel %vm2471, %v2470, %v2468
    %v2473 = vadd.s32 %v165, 4294967216
    %v2474 = vperm.slane %v565, %v2473
    %vm2475 = vcmask 720512
    %v2476 = vsel %vm2475, %v2474, %v2472
    %v2477 = vadd.s32 %v165, 4294967208
    %v2478 = vperm.slane %v579, %v2477
    %vm2479 = vcmask 786112
    %v2480 = vsel %vm2479, %v2478, %v2476
    %v2481 = vadd.s32 %v165, 4294967200
    %v2482 = vperm.slane %v593, %v2481
    %vm2483 = vcmask 851712
    %v2484 = vsel %vm2483, %v2482, %v2480
    %v2485 = vadd.s32 %v165, 4294967192
    %v2486 = vperm.slane %v607, %v2485
    %vm2487 = vcmask 917312
    %v2488 = vsel %vm2487, %v2486, %v2484
    %v2489 = vadd.s32 %v165, 4294967184
    %v2490 = vperm.slane %v621, %v2489
    %vm2491 = vcmask 982912
    %v2492 = vsel %vm2491, %v2490, %v2488
    %v2493 = vadd.s32 %v165, 4294967176
    %v2494 = vperm.slane %v635, %v2493
    %vm2495 = vcmask 1048512
    %v2496 = vsel %vm2495, %v2494, %v2492
    %v2497 = vperm.slane %v1025, %v165
    %v2498 = vperm.slane %v1039, %v2437
    %v2499 = vsel %vm2439, %v2498, %v2497
    %v2500 = vperm.slane %v1053, %v2441
    %v2501 = vsel %vm2443, %v2500, %v2499
    %v2502 = vperm.slane %v1067, %v2445
    %v2503 = vsel %vm2447, %v2502, %v2501
    %v2504 = vperm.slane %v1081, %v2449
    %v2505 = vsel %vm2451, %v2504, %v2503
    %v2506 = vperm.slane %v1095, %v2453
    %v2507 = vsel %vm2455, %v2506, %v2505
    %v2508 = vperm.slane %v1109, %v2457
    %v2509 = vsel %vm2459, %v2508, %v2507
    %v2510 = vperm.slane %v1123, %v2461
    %v2511 = vsel %vm2463, %v2510, %v2509
    %v2512 = vperm.slane %v1137, %v2465
    %v2513 = vsel %vm2467, %v2512, %v2511
    %v2514 = vperm.slane %v1151, %v2469
    %v2515 = vsel %vm2471, %v2514, %v2513
    %v2516 = vperm.slane %v1165, %v2473
    %v2517 = vsel %vm2475, %v2516, %v2515
    %v2518 = vperm.slane %v1179, %v2477
    %v2519 = vsel %vm2479, %v2518, %v2517
    %v2520 = vperm.slane %v1193, %v2481
    %v2521 = vsel %vm2483, %v2520, %v2519
    %v2522 = vperm.slane %v1207, %v2485
    %v2523 = vsel %vm2487, %v2522, %v2521
    %v2524 = vperm.slane %v1221, %v2489
    %v2525 = vsel %vm2491, %v2524, %v2523
    %v2526 = vperm.slane %v1235, %v2493
    %v2527 = vsel %vm2495, %v2526, %v2525
    %v2528 = vperm.slane %v1625, %v165
    %v2529 = vperm.slane %v1639, %v2437
    %v2530 = vsel %vm2439, %v2529, %v2528
    %v2531 = vperm.slane %v1653, %v2441
    %v2532 = vsel %vm2443, %v2531, %v2530
    %v2533 = vperm.slane %v1667, %v2445
    %v2534 = vsel %vm2447, %v2533, %v2532
    %v2535 = vperm.slane %v1681, %v2449
    %v2536 = vsel %vm2451, %v2535, %v2534
    %v2537 = vperm.slane %v1695, %v2453
    %v2538 = vsel %vm2455, %v2537, %v2536
    %v2539 = vperm.slane %v1709, %v2457
    %v2540 = vsel %vm2459, %v2539, %v2538
    %v2541 = vperm.slane %v1723, %v2461
    %v2542 = vsel %vm2463, %v2541, %v2540
    %v2543 = vperm.slane %v1737, %v2465
    %v2544 = vsel %vm2467, %v2543, %v2542
    %v2545 = vperm.slane %v1751, %v2469
    %v2546 = vsel %vm2471, %v2545, %v2544
    %v2547 = vperm.slane %v1765, %v2473
    %v2548 = vsel %vm2475, %v2547, %v2546
    %v2549 = vperm.slane %v1779, %v2477
    %v2550 = vsel %vm2479, %v2549, %v2548
    %v2551 = vperm.slane %v1793, %v2481
    %v2552 = vsel %vm2483, %v2551, %v2550
    %v2553 = vperm.slane %v1807, %v2485
    %v2554 = vsel %vm2487, %v2553, %v2552
    %v2555 = vperm.slane %v1821, %v2489
    %v2556 = vsel %vm2491, %v2555, %v2554
    %v2557 = vperm.slane %v1835, %v2493
    %v2558 = vsel %vm2495, %v2557, %v2556
    %v2559 = vperm.slane %v2225, %v165
    %v2560 = vperm.slane %v2239, %v2437
    %v2561 = vsel %vm2439, %v2560, %v2559
    %v2562 = vperm.slane %v2253, %v2441
    %v2563 = vsel %vm2443, %v2562, %v2561
    %v2564 = vperm.slane %v2267, %v2445
    %v2565 = vsel %vm2447, %v2564, %v2563
    %v2566 = vperm.slane %v2281, %v2449
    %v2567 = vsel %vm2451, %v2566, %v2565
    %v2568 = vperm.slane %v2295, %v2453
    %v2569 = vsel %vm2455, %v2568, %v2567
    %v2570 = vperm.slane %v2309, %v2457
    %v2571 = vsel %vm2459, %v2570, %v2569
    %v2572 = vperm.slane %v2323, %v2461
    %v2573 = vsel %vm2463, %v2572, %v2571
    %v2574 = vperm.slane %v2337, %v2465
    %v2575 = vsel %vm2467, %v2574, %v2573
    %v2576 = vperm.slane %v2351, %v2469
    %v2577 = vsel %vm2471, %v2576, %v2575
    %v2578 = vperm.slane %v2365, %v2473
    %v2579 = vsel %vm2475, %v2578, %v2577
    %v2580 = vperm.slane %v2379, %v2477
    %v2581 = vsel %vm2479, %v2580, %v2579
    %v2582 = vperm.slane %v2393, %v2481
    %v2583 = vsel %vm2483, %v2582, %v2581
    %v2584 = vperm.slane %v2407, %v2485
    %v2585 = vsel %vm2487, %v2584, %v2583
    %v2586 = vperm.slane %v2421, %v2489
    %v2587 = vsel %vm2491, %v2586, %v2585
    %v2588 = vperm.slane %v2435, %v2493
    %v2589 = vsel %vm2495, %v2588, %v2587
    %vm2590 = vcmask 1040384
    %v2591 = vsel %vm2590, %v2496, %v2527
    %vm2592 = vcmask 1041408
    %v2593 = vsel %vm2592, %v2591, %v2558
    %vm2594 = vcmask 1042432
    %v2595 = vsel %vm2594, %v2593, %v2589
    %2596 = vst [vmem:[#allocation2] sm:$0xf] %v2595
    // Predicated region
    $region22: #{tpu_custom_call.1} parent=1 // pred_check
      _
    $region23: #{tpu_custom_call.1} parent=1 // pred_check_branch
      %2598 = sbr.rel (0) target = $region25
    $region24: #{tpu_custom_call.1} parent=1 // pred_region
      %2600 = vsyncadd [#allocation3], 0
      %s2602 = sshll.u32 [#allocation2], 4
      %s2603 = int_to_ptr.vmem [resolvable:$true] %s2602
      %s2604 = sshll.u32 %s5, 4
      %s2605 = int_to_ptr.hbm [resolvable:$true] %s2604
      %2607 = dma.vmem_to_hbm [thread:$0]  %s2603, 64, %s2605, [#allocation3]
    $region25: #{tpu_custom_call.1} parent=1 // pred_fallthru
      _
    // Predicated region
    $region26: #{tpu_custom_call.1} parent=1 // pred_check
      _
    $region27: #{tpu_custom_call.1} parent=1 // pred_check_branch
      %2609 = sbr.rel (0) target = $region29
    $region28: #{tpu_custom_call.1} parent=1 // pred_region
      %2611 = dma.done [#allocation3], 64
    $region29: #{tpu_custom_call.1} parent=1 // pred_fallthru
      _
    %2612 = vsyncpa [#allocation3], 1

// kernel: tpu_custom_call.1
$region0: #{tpu_custom_call.1}
  #allocation0 [shape = 'u32[]', space=smem, size = 0x4, offset = 0x4, fixed_abs, tag = 'smem constant byte address 0x4 - core index']
  #allocation1 [shape = 'u32[72,128]{1,0:T(1,128)}', space=vmem, size = 0x9000, scoped, tag = 'internal scratch']
  %s0 = inlined_call_operand.vmem [shape: bf16[128,16], index: 0, kind: input, shape index: {}]
  %s1 = inlined_call_operand.vmem [shape: bf16[16,32], index: 1, kind: input, shape index: {}]
  %s2 = inlined_call_operand.vmem [shape: f32[1,32], index: 2, kind: input, shape index: {}]
  %s3 = inlined_call_operand.vmem [shape: bf16[4,128,32], index: 3, kind: input, shape index: {}]
  %s4 = inlined_call_operand.vmem [shape: f32[4,1,128], index: 4, kind: input, shape index: {}]
  %s5 = inlined_call_operand.hbm [shape: s32[4,128], index: 5, kind: output, shape index: {}]
  %s6 = sld [smem:[#allocation0]]
  $region30: #{tpu_custom_call.1} parent=0
    _
  %s8 = ssub.s32 1, %s6
  %s9 = scalar_select 0, %s8, %s6
  $region1: #{tpu_custom_call.1} parent=0
    #allocation2 [shape = 'u8[2048]{0}', space=vmem, size = 0x800, scoped, tag = 'output window, operand 0, single buffered']
    #allocation3 [shape = 's32[1]{0}', space=sflag, size = 0x4, scoped, tag = 'scoped memory for tpu_custom_call.1']
    %10 = vsyncpa [#allocation3], 0
    // Predicated region
    $region2: #{tpu_custom_call.1} parent=1 // pred_check
      _
    $region3: #{tpu_custom_call.1} parent=1 // pred_check_branch
      %12 = sbr.rel (0) target = $region5
    $region4: #{tpu_custom_call.1} parent=1 // pred_region
      _
    $region5: #{tpu_custom_call.1} parent=1 // pred_fallthru
      _
    // Predicated region
    $region6: #{tpu_custom_call.1} parent=1 // pred_check
      _
    $region7: #{tpu_custom_call.1} parent=1 // pred_check_branch
      %14 = sbr.rel (0) target = $region9
    $region8: #{tpu_custom_call.1} parent=1 // pred_region
      _
    $region9: #{tpu_custom_call.1} parent=1 // pred_fallthru
      _
    // Predicated region
    $region10: #{tpu_custom_call.1} parent=1 // pred_check
      _
    $region11: #{tpu_custom_call.1} parent=1 // pred_check_branch
      %16 = sbr.rel (0) target = $region13
    $region12: #{tpu_custom_call.1} parent=1 // pred_region
      _
    $region13: #{tpu_custom_call.1} parent=1 // pred_fallthru
      _
    // Predicated region
    $region14: #{tpu_custom_call.1} parent=1 // pred_check
      _
    $region15: #{tpu_custom_call.1} parent=1 // pred_check_branch
      %18 = sbr.rel (0) target = $region17
    $region16: #{tpu_custom_call.1} parent=1 // pred_region
      _
    $region17: #{tpu_custom_call.1} parent=1 // pred_fallthru
      _
    // Predicated region
    $region18: #{tpu_custom_call.1} parent=1 // pred_check
      _
    $region19: #{tpu_custom_call.1} parent=1 // pred_check_branch
      %20 = sbr.rel (0) target = $region21
    $region20: #{tpu_custom_call.1} parent=1 // pred_region
      _
    $region21: #{tpu_custom_call.1} parent=1 // pred_fallthru
      _
    %v22 = vld [vmem:[%s0] sm:$0xf]
    %v23 = vld [vmem:[%s0 + $0x4] sm:$0xf]
    %v24 = vld [vmem:[%s0 + $0x8] sm:$0xf]
    %v25 = vld [vmem:[%s0 + $0xc] sm:$0xf]
    %v26 = vld [vmem:[%s0 + $0x10] sm:$0xf]
    %v27 = vld [vmem:[%s0 + $0x14] sm:$0xf]
    %v28 = vld [vmem:[%s0 + $0x18] sm:$0xf]
    %v29 = vld [vmem:[%s0 + $0x1c] sm:$0xf]
    %v30 = vld [vmem:[%s0 + $0x20] sm:$0xf]
    %v31 = vld [vmem:[%s0 + $0x24] sm:$0xf]
    %v32 = vld [vmem:[%s0 + $0x28] sm:$0xf]
    %v33 = vld [vmem:[%s0 + $0x2c] sm:$0xf]
    %v34 = vld [vmem:[%s0 + $0x30] sm:$0xf]
    %v35 = vld [vmem:[%s0 + $0x34] sm:$0xf]
    %v36 = vld [vmem:[%s0 + $0x38] sm:$0xf]
    %v37 = vld [vmem:[%s0 + $0x3c] sm:$0xf]
    %v38 = vld [vmem:[%s1] sm:$0xf]
    %v39 = vld [vmem:[%s1 + $0x4] sm:$0xf]
    %v40 = vld [vmem:[%s2] sm:$0x1]
    %v42 = vperm.slane %v40, 0
    %v60 = vunpack.c.l.b16 %v22
    %v61 = vunpack.c.l.b16 %v23
    %v62 = vunpack.c.l.b16 %v24
    %v63 = vunpack.c.l.b16 %v25
    %v64 = vunpack.c.l.b16 %v26
    %v65 = vunpack.c.l.b16 %v27
    %v66 = vunpack.c.l.b16 %v28
    %v67 = vunpack.c.l.b16 %v29
    %v68 = vunpack.c.l.b16 %v30
    %v69 = vunpack.c.l.b16 %v31
    %v70 = vunpack.c.l.b16 %v32
    %v71 = vunpack.c.l.b16 %v33
    %v72 = vunpack.c.l.b16 %v34
    %v73 = vunpack.c.l.b16 %v35
    %v74 = vunpack.c.l.b16 %v36
    %v75 = vunpack.c.l.b16 %v37
    %v76 = vpack.c.b16 %v61, %v60
    %v77 = vpack.c.b16 %v63, %v62
    %v78 = vpack.c.b16 %v65, %v64
    %v79 = vpack.c.b16 %v67, %v66
    %v80 = vpack.c.b16 %v69, %v68
    %v81 = vpack.c.b16 %v71, %v70
    %v82 = vpack.c.b16 %v73, %v72
    %v83 = vpack.c.b16 %v75, %v74
    %v86 = vunpack.c.l.b16 %v38
    %v87 = vunpack.c.l.b16 %v39
    %v88 = vpack.c.b16 %v87, %v86
    %vm90 = vcmask 130048
    %v92 = vsel %vm90, %v76, 0
    %v95 = vsel %vm90, %v77, 0
    %v98 = vsel %vm90, %v78, 0
    %v101 = vsel %vm90, %v79, 0
    %v104 = vsel %vm90, %v80, 0
    %v107 = vsel %vm90, %v81, 0
    %v110 = vsel %vm90, %v82, 0
    %v113 = vsel %vm90, %v83, 0
    %115 = vmatpush.bf16.msra.mxu0 0
    %116 = vmatpush.bf16.msra.mxu0 0
    %117 = vmatpush.bf16.msra.mxu0 0
    %118 = vmatpush.bf16.msra.mxu0 0
    %119 = vmatpush.bf16.msra.mxu0 0
    %120 = vmatpush.bf16.msra.mxu0 0
    %121 = vmatpush.bf16.msra.mxu0 0
    %122 = vmatpush.bf16.msra.mxu0 %v88
    %123 = vmatmul.bf16.gmra.mxu0 %v92
    %v124 = vpop.f32.mrf.mxu0
    %v125 = vadd.f32 %v42, %v124
    %v126 = vpop.f32.mrf.mxu0
    %v127 = vadd.f32 %v42, %v126
    %128 = vmatmul.bf16.gmra.mxu0 %v95
    %v129 = vpop.f32.mrf.mxu0
    %v130 = vadd.f32 %v42, %v129
    %v131 = vpop.f32.mrf.mxu0
    %v132 = vadd.f32 %v42, %v131
    %133 = vmatmul.bf16.gmra.mxu0 %v98
    %v134 = vpop.f32.mrf.mxu0
    %v135 = vadd.f32 %v42, %v134
    %v136 = vpop.f32.mrf.mxu0
    %v137 = vadd.f32 %v42, %v136
    %138 = vmatmul.bf16.gmra.mxu0 %v101
    %v139 = vpop.f32.mrf.mxu0
    %v140 = vadd.f32 %v42, %v139
    %v141 = vpop.f32.mrf.mxu0
    %v142 = vadd.f32 %v42, %v141
    %143 = vmatmul.bf16.gmra.mxu0 %v104
    %v144 = vpop.f32.mrf.mxu0
    %v145 = vadd.f32 %v42, %v144
    %v146 = vpop.f32.mrf.mxu0
    %v147 = vadd.f32 %v42, %v146
    %148 = vmatmul.bf16.gmra.mxu0 %v107
    %v149 = vpop.f32.mrf.mxu0
    %v150 = vadd.f32 %v42, %v149
    %v151 = vpop.f32.mrf.mxu0
    %v152 = vadd.f32 %v42, %v151
    %153 = vmatmul.bf16.gmra.mxu0 %v110
    %v154 = vpop.f32.mrf.mxu0
    %v155 = vadd.f32 %v42, %v154
    %v156 = vpop.f32.mrf.mxu0
    %v157 = vadd.f32 %v42, %v156
    %158 = vmatmul.bf16.gmra.mxu0 %v113
    %v159 = vpop.f32.mrf.mxu0
    %v160 = vadd.f32 %v42, %v159
    %v161 = vpop.f32.mrf.mxu0
    %v162 = vadd.f32 %v42, %v161
    %163 = vdwg.mxu0
    %v164 = vlaneseq
    %v165 = vand.u32 %v164, 127
    %v166 = vld [vmem:[%s3] sm:$0xf]
    %v167 = vld [vmem:[%s3 + $0x4] sm:$0xf]
    %v168 = vld [vmem:[%s3 + $0x8] sm:$0xf]
    %v169 = vld [vmem:[%s3 + $0xc] sm:$0xf]
    %v170 = vld [vmem:[%s3 + $0x10] sm:$0xf]
    %v171 = vld [vmem:[%s3 + $0x14] sm:$0xf]
    %v172 = vld [vmem:[%s3 + $0x18] sm:$0xf]
    %v173 = vld [vmem:[%s3 + $0x1c] sm:$0xf]
    %v174 = vld [vmem:[%s3 + $0x20] sm:$0xf]
    %v175 = vld [vmem:[%s3 + $0x24] sm:$0xf]
    %v176 = vld [vmem:[%s3 + $0x28] sm:$0xf]
    %v177 = vld [vmem:[%s3 + $0x2c] sm:$0xf]
    %v178 = vld [vmem:[%s3 + $0x30] sm:$0xf]
    %v179 = vld [vmem:[%s3 + $0x34] sm:$0xf]
    %v180 = vld [vmem:[%s3 + $0x38] sm:$0xf]
    %v181 = vld [vmem:[%s3 + $0x3c] sm:$0xf]
    %v182 = vpack.c.bf16 %v127, %v125
    %v183 = vpack.c.bf16 %v132, %v130
    %v184 = vpack.c.bf16 %v137, %v135
    %v185 = vpack.c.bf16 %v142, %v140
    %v186 = vpack.c.bf16 %v147, %v145
    %v187 = vpack.c.bf16 %v152, %v150
    %v188 = vpack.c.bf16 %v157, %v155
    %v189 = vpack.c.bf16 %v162, %v160
    %v206 = vunpack.c.l.b16 %v166
    %v207 = vunpack.c.l.b16 %v167
    %v208 = vunpack.c.l.b16 %v168
    %v209 = vunpack.c.l.b16 %v169
    %v210 = vunpack.c.l.b16 %v170
    %v211 = vunpack.c.l.b16 %v171
    %v212 = vunpack.c.l.b16 %v172
    %v213 = vunpack.c.l.b16 %v173
    %v214 = vunpack.c.l.b16 %v174
    %v215 = vunpack.c.l.b16 %v175
    %v216 = vunpack.c.l.b16 %v176
    %v217 = vunpack.c.l.b16 %v177
    %v218 = vunpack.c.l.b16 %v178
    %v219 = vunpack.c.l.b16 %v179
    %v220 = vunpack.c.l.b16 %v180
    %v221 = vunpack.c.l.b16 %v181
    %v222 = vpack.c.b16 %v207, %v206
    %v223 = vpack.c.b16 %v209, %v208
    %v224 = vpack.c.b16 %v211, %v210
    %v225 = vpack.c.b16 %v213, %v212
    %v226 = vpack.c.b16 %v215, %v214
    %v227 = vpack.c.b16 %v217, %v216
    %v228 = vpack.c.b16 %v219, %v218
    %v229 = vpack.c.b16 %v221, %v220
    %vm230 = vcmask 261120
    %v232 = vsel %vm230, %v182, 0
    %v235 = vsel %vm230, %v183, 0
    %v238 = vsel %vm230, %v184, 0
    %v241 = vsel %vm230, %v185, 0
    %v244 = vsel %vm230, %v186, 0
    %v247 = vsel %vm230, %v187, 0
    %v250 = vsel %vm230, %v188, 0
    %v253 = vsel %vm230, %v189, 0
    %v256 = vsel %vm230, %v222, 0
    %v259 = vsel %vm230, %v223, 0
    %v262 = vsel %vm230, %v224, 0
    %v265 = vsel %vm230, %v225, 0
    %v268 = vsel %vm230, %v226, 0
    %v271 = vsel %vm230, %v227, 0
    %v274 = vsel %vm230, %v228, 0
    %v277 = vsel %vm230, %v229, 0
    %279 = vmatpush.bf16.xpose.msra.mxu0 %v277
    %280 = vmatpush.bf16.xpose.msra.mxu0 %v274
    %281 = vmatpush.bf16.xpose.msra.mxu0 %v271
    %282 = vmatpush.bf16.xpose.msra.mxu0 %v268
    %283 = vmatpush.bf16.xpose.msra.mxu0 %v265
    %284 = vmatpush.bf16.xpose.msra.mxu0 %v262
    %285 = vmatpush.bf16.xpose.msra.mxu0 %v259
    %286 = vmatpush.bf16.xpose.msra.mxu0 %v256
    %287 = vmatmul.bf16.gmra.mxu0 %v232
    %v288 = vpop.f32.mrf.mxu0
    %v289 = vadd.f32 0.0, %v288
    %v290 = vpop.f32.mrf.mxu0
    %v291 = vadd.f32 0.0, %v290
    %292 = vmatmul.bf16.gmra.mxu0 %v235
    %v293 = vpop.f32.mrf.mxu0
    %v294 = vadd.f32 0.0, %v293
    %v295 = vpop.f32.mrf.mxu0
    %v296 = vadd.f32 0.0, %v295
    %297 = vmatmul.bf16.gmra.mxu0 %v238
    %v298 = vpop.f32.mrf.mxu0
    %v299 = vadd.f32 0.0, %v298
    %v300 = vpop.f32.mrf.mxu0
    %v301 = vadd.f32 0.0, %v300
    %302 = vmatmul.bf16.gmra.mxu0 %v241
    %v303 = vpop.f32.mrf.mxu0
    %v304 = vadd.f32 0.0, %v303
    %v305 = vpop.f32.mrf.mxu0
    %v306 = vadd.f32 0.0, %v305
    %307 = vmatmul.bf16.gmra.mxu0 %v244
    %v308 = vpop.f32.mrf.mxu0
    %v309 = vadd.f32 0.0, %v308
    %v310 = vpop.f32.mrf.mxu0
    %v311 = vadd.f32 0.0, %v310
    %312 = vmatmul.bf16.gmra.mxu0 %v247
    %v313 = vpop.f32.mrf.mxu0
    %v314 = vadd.f32 0.0, %v313
    %v315 = vpop.f32.mrf.mxu0
    %v316 = vadd.f32 0.0, %v315
    %317 = vmatmul.bf16.gmra.mxu0 %v250
    %v318 = vpop.f32.mrf.mxu0
    %v319 = vadd.f32 0.0, %v318
    %v320 = vpop.f32.mrf.mxu0
    %v321 = vadd.f32 0.0, %v320
    %322 = vmatmul.bf16.gmra.mxu0 %v253
    %v323 = vpop.f32.mrf.mxu0
    %v324 = vadd.f32 0.0, %v323
    %v325 = vpop.f32.mrf.mxu0
    %v326 = vadd.f32 0.0, %v325
    %327 = vdwg.mxu0
    %v328 = vld [vmem:[%s4] sm:$0x1]
    %v330 = vperm.slane %v328, 0
    %v332 = vsub.f32 %v330, %v289
    %v333 = vsub.f32 %v330, %v291
    %v334 = vsub.f32 %v330, %v294
    %v335 = vsub.f32 %v330, %v296
    %v336 = vsub.f32 %v330, %v299
    %v337 = vsub.f32 %v330, %v301
    %v338 = vsub.f32 %v330, %v304
    %v339 = vsub.f32 %v330, %v306
    %v340 = vsub.f32 %v330, %v309
    %v341 = vsub.f32 %v330, %v311
    %v342 = vsub.f32 %v330, %v314
    %v343 = vsub.f32 %v330, %v316
    %v344 = vsub.f32 %v330, %v319
    %v345 = vsub.f32 %v330, %v321
    %v346 = vsub.f32 %v330, %v324
    %v347 = vsub.f32 %v330, %v326
    %348 = vmin.xlane.f32.xlu0 %v332
    %v349 = vpop.xlane.xlu0 %348
    %350 = vmin.xlane.f32.xlu0 %v333
    %v351 = vpop.xlane.xlu0 %350
    %352 = vmin.xlane.f32.xlu0 %v334
    %v353 = vpop.xlane.xlu0 %352
    %354 = vmin.xlane.f32.xlu0 %v335
    %v355 = vpop.xlane.xlu0 %354
    %356 = vmin.xlane.f32.xlu0 %v336
    %v357 = vpop.xlane.xlu0 %356
    %358 = vmin.xlane.f32.xlu0 %v337
    %v359 = vpop.xlane.xlu0 %358
    %360 = vmin.xlane.f32.xlu0 %v338
    %v361 = vpop.xlane.xlu0 %360
    %362 = vmin.xlane.f32.xlu0 %v339
    %v363 = vpop.xlane.xlu0 %362
    %364 = vmin.xlane.f32.xlu0 %v340
    %v365 = vpop.xlane.xlu0 %364
    %366 = vmin.xlane.f32.xlu0 %v341
    %v367 = vpop.xlane.xlu0 %366
    %368 = vmin.xlane.f32.xlu0 %v342
    %v369 = vpop.xlane.xlu0 %368
    %370 = vmin.xlane.f32.xlu0 %v343
    %v371 = vpop.xlane.xlu0 %370
    %372 = vmin.xlane.f32.xlu0 %v344
    %v373 = vpop.xlane.xlu0 %372
    %374 = vmin.xlane.f32.xlu0 %v345
    %v375 = vpop.xlane.xlu0 %374
    %376 = vmin.xlane.f32.xlu0 %v346
    %v377 = vpop.xlane.xlu0 %376
    %378 = vmin.xlane.f32.xlu0 %v347
    %v379 = vpop.xlane.xlu0 %378
    %vm380 = vcmp.eq.f32.partialorder %v332, %v349
    %vm381 = vcmp.eq.f32.partialorder %v333, %v351
    %vm382 = vcmp.eq.f32.partialorder %v334, %v353
    %vm383 = vcmp.eq.f32.partialorder %v335, %v355
    %vm384 = vcmp.eq.f32.partialorder %v336, %v357
    %vm385 = vcmp.eq.f32.partialorder %v337, %v359
    %vm386 = vcmp.eq.f32.partialorder %v338, %v361
    %vm387 = vcmp.eq.f32.partialorder %v339, %v363
    %vm388 = vcmp.eq.f32.partialorder %v340, %v365
    %vm389 = vcmp.eq.f32.partialorder %v341, %v367
    %vm390 = vcmp.eq.f32.partialorder %v342, %v369
    %vm391 = vcmp.eq.f32.partialorder %v343, %v371
    %vm392 = vcmp.eq.f32.partialorder %v344, %v373
    %vm393 = vcmp.eq.f32.partialorder %v345, %v375
    %vm394 = vcmp.eq.f32.partialorder %v346, %v377
    %vm395 = vcmp.eq.f32.partialorder %v347, %v379
    %v396 = vsel %vm380, %v165, 128
    %v397 = vsel %vm381, %v165, 128
    %v398 = vsel %vm382, %v165, 128
    %v399 = vsel %vm383, %v165, 128
    %v400 = vsel %vm384, %v165, 128
    %v401 = vsel %vm385, %v165, 128
    %v402 = vsel %vm386, %v165, 128
    %v403 = vsel %vm387, %v165, 128
    %v404 = vsel %vm388, %v165, 128
    %v405 = vsel %vm389, %v165, 128
    %v406 = vsel %vm390, %v165, 128
    %v407 = vsel %vm391, %v165, 128
    %v408 = vsel %vm392, %v165, 128
    %v409 = vsel %vm393, %v165, 128
    %v410 = vsel %vm394, %v165, 128
    %v411 = vsel %vm395, %v165, 128
    %v412 = vand.u32 %v396, 65535
    %v413 = vshra.s32 %v396, 16
    %v414 = vcvt.s32.f32 %v412
    %v415 = vcvt.s32.f32 %v413
    %416 = vmin.xlane.f32.xlu0 %v415
    %v417 = vpop.xlane.xlu0 %416
    %vm418 = vcmp.eq.f32.partialorder %v415, %v417
    %v419 = vsel %vm418, %v414, inf
    %420 = vmin.xlane.f32.xlu0 %v419
    %v421 = vpop.xlane.xlu0 %420
    %v422 = vcvt.f32.s32 %v421
    %v423 = vcvt.f32.s32 %v417
    %v424 = vshll.u32 %v423, 16
    %v425 = vadd.s32 %v424, %v422
    %v426 = vand.u32 %v397, 65535
    %v427 = vshra.s32 %v397, 16
    %v428 = vcvt.s32.f32 %v426
    %v429 = vcvt.s32.f32 %v427
    %430 = vmin.xlane.f32.xlu0 %v429
    %v431 = vpop.xlane.xlu0 %430
    %vm432 = vcmp.eq.f32.partialorder %v429, %v431
    %v433 = vsel %vm432, %v428, inf
    %434 = vmin.xlane.f32.xlu0 %v433
    %v435 = vpop.xlane.xlu0 %434
    %v436 = vcvt.f32.s32 %v435
    %v437 = vcvt.f32.s32 %v431
    %v438 = vshll.u32 %v437, 16
    %v439 = vadd.s32 %v438, %v436
    %v440 = vand.u32 %v398, 65535
    %v441 = vshra.s32 %v398, 16
    %v442 = vcvt.s32.f32 %v440
    %v443 = vcvt.s32.f32 %v441
    %444 = vmin.xlane.f32.xlu0 %v443
    %v445 = vpop.xlane.xlu0 %444
    %vm446 = vcmp.eq.f32.partialorder %v443, %v445
    %v447 = vsel %vm446, %v442, inf
    %448 = vmin.xlane.f32.xlu0 %v447
    %v449 = vpop.xlane.xlu0 %448
    %v450 = vcvt.f32.s32 %v449
    %v451 = vcvt.f32.s32 %v445
    %v452 = vshll.u32 %v451, 16
    %v453 = vadd.s32 %v452, %v450
    %v454 = vand.u32 %v399, 65535
    %v455 = vshra.s32 %v399, 16
    %v456 = vcvt.s32.f32 %v454
    %v457 = vcvt.s32.f32 %v455
    %458 = vmin.xlane.f32.xlu0 %v457
    %v459 = vpop.xlane.xlu0 %458
    %vm460 = vcmp.eq.f32.partialorder %v457, %v459
    %v461 = vsel %vm460, %v456, inf
    %462 = vmin.xlane.f32.xlu0 %v461
    %v463 = vpop.xlane.xlu0 %462
    %v464 = vcvt.f32.s32 %v463
    %v465 = vcvt.f32.s32 %v459
    %v466 = vshll.u32 %v465, 16
    %v467 = vadd.s32 %v466, %v464
    %v468 = vand.u32 %v400, 65535
    %v469 = vshra.s32 %v400, 16
    %v470 = vcvt.s32.f32 %v468
    %v471 = vcvt.s32.f32 %v469
    %472 = vmin.xlane.f32.xlu0 %v471
    %v473 = vpop.xlane.xlu0 %472
    %vm474 = vcmp.eq.f32.partialorder %v471, %v473
    %v475 = vsel %vm474, %v470, inf
    %476 = vmin.xlane.f32.xlu0 %v475
    %v477 = vpop.xlane.xlu0 %476
    %v478 = vcvt.f32.s32 %v477
    %v479 = vcvt.f32.s32 %v473
    %v480 = vshll.u32 %v479, 16
    %v481 = vadd.s32 %v480, %v478
    %v482 = vand.u32 %v401, 65535
    %v483 = vshra.s32 %v401, 16
    %v484 = vcvt.s32.f32 %v482
    %v485 = vcvt.s32.f32 %v483
    %486 = vmin.xlane.f32.xlu0 %v485
    %v487 = vpop.xlane.xlu0 %486
    %vm488 = vcmp.eq.f32.partialorder %v485, %v487
    %v489 = vsel %vm488, %v484, inf
    %490 = vmin.xlane.f32.xlu0 %v489
    %v491 = vpop.xlane.xlu0 %490
    %v492 = vcvt.f32.s32 %v491
    %v493 = vcvt.f32.s32 %v487
    %v494 = vshll.u32 %v493, 16
    %v495 = vadd.s32 %v494, %v492
    %v496 = vand.u32 %v402, 65535
    %v497 = vshra.s32 %v402, 16
    %v498 = vcvt.s32.f32 %v496
    %v499 = vcvt.s32.f32 %v497
    %500 = vmin.xlane.f32.xlu0 %v499
    %v501 = vpop.xlane.xlu0 %500
    %vm502 = vcmp.eq.f32.partialorder %v499, %v501
    %v503 = vsel %vm502, %v498, inf
    %504 = vmin.xlane.f32.xlu0 %v503
    %v505 = vpop.xlane.xlu0 %504
    %v506 = vcvt.f32.s32 %v505
    %v507 = vcvt.f32.s32 %v501
    %v508 = vshll.u32 %v507, 16
    %v509 = vadd.s32 %v508, %v506
    %v510 = vand.u32 %v403, 65535
    %v511 = vshra.s32 %v403, 16
    %v512 = vcvt.s32.f32 %v510
    %v513 = vcvt.s32.f32 %v511
    %514 = vmin.xlane.f32.xlu0 %v513
    %v515 = vpop.xlane.xlu0 %514
    %vm516 = vcmp.eq.f32.partialorder %v513, %v515
    %v517 = vsel %vm516, %v512, inf
    %518 = vmin.xlane.f32.xlu0 %v517
    %v519 = vpop.xlane.xlu0 %518
    %v520 = vcvt.f32.s32 %v519
    %v521 = vcvt.f32.s32 %v515
    %v522 = vshll.u32 %v521, 16
    %v523 = vadd.s32 %v522, %v520
    %v524 = vand.u32 %v404, 65535
    %v525 = vshra.s32 %v404, 16
    %v526 = vcvt.s32.f32 %v524
    %v527 = vcvt.s32.f32 %v525
    %528 = vmin.xlane.f32.xlu0 %v527
    %v529 = vpop.xlane.xlu0 %528
    %vm530 = vcmp.eq.f32.partialorder %v527, %v529
    %v531 = vsel %vm530, %v526, inf
    %532 = vmin.xlane.f32.xlu0 %v531
    %v533 = vpop.xlane.xlu0 %532
    %v534 = vcvt.f32.s32 %v533
    %v535 = vcvt.f32.s32 %v529
    %v536 = vshll.u32 %v535, 16
    %v537 = vadd.s32 %v536, %v534
    %v538 = vand.u32 %v405, 65535
    %v539 = vshra.s32 %v405, 16
    %v540 = vcvt.s32.f32 %v538
    %v541 = vcvt.s32.f32 %v539
    %542 = vmin.xlane.f32.xlu0 %v541
    %v543 = vpop.xlane.xlu0 %542
    %vm544 = vcmp.eq.f32.partialorder %v541, %v543
    %v545 = vsel %vm544, %v540, inf
    %546 = vmin.xlane.f32.xlu0 %v545
    %v547 = vpop.xlane.xlu0 %546
    %v548 = vcvt.f32.s32 %v547
    %v549 = vcvt.f32.s32 %v543
    %v550 = vshll.u32 %v549, 16
    %v551 = vadd.s32 %v550, %v548
    %v552 = vand.u32 %v406, 65535
    %v553 = vshra.s32 %v406, 16
    %v554 = vcvt.s32.f32 %v552
    %v555 = vcvt.s32.f32 %v553
    %556 = vmin.xlane.f32.xlu0 %v555
    %v557 = vpop.xlane.xlu0 %556
    %vm558 = vcmp.eq.f32.partialorder %v555, %v557
    %v559 = vsel %vm558, %v554, inf
    %560 = vmin.xlane.f32.xlu0 %v559
    %v561 = vpop.xlane.xlu0 %560
    %v562 = vcvt.f32.s32 %v561
    %v563 = vcvt.f32.s32 %v557
    %v564 = vshll.u32 %v563, 16
    %v565 = vadd.s32 %v564, %v562
    %v566 = vand.u32 %v407, 65535
    %v567 = vshra.s32 %v407, 16
    %v568 = vcvt.s32.f32 %v566
    %v569 = vcvt.s32.f32 %v567
    %570 = vmin.xlane.f32.xlu0 %v569
    %v571 = vpop.xlane.xlu0 %570
    %vm572 = vcmp.eq.f32.partialorder %v569, %v571
    %v573 = vsel %vm572, %v568, inf
    %574 = vmin.xlane.f32.xlu0 %v573
    %v575 = vpop.xlane.xlu0 %574
    %v576 = vcvt.f32.s32 %v575
    %v577 = vcvt.f32.s32 %v571
    %v578 = vshll.u32 %v577, 16
    %v579 = vadd.s32 %v578, %v576
    %v580 = vand.u32 %v408, 65535
    %v581 = vshra.s32 %v408, 16
    %v582 = vcvt.s32.f32 %v580
    %v583 = vcvt.s32.f32 %v581
    %584 = vmin.xlane.f32.xlu0 %v583
    %v585 = vpop.xlane.xlu0 %584
    %vm586 = vcmp.eq.f32.partialorder %v583, %v585
    %v587 = vsel %vm586, %v582, inf
    %588 = vmin.xlane.f32.xlu0 %v587
    %v589 = vpop.xlane.xlu0 %588
    %v590 = vcvt.f32.s32 %v589
    %v591 = vcvt.f32.s32 %v585
    %v592 = vshll.u32 %v591, 16
    %v593 = vadd.s32 %v592, %v590
    %v594 = vand.u32 %v409, 65535
    %v595 = vshra.s32 %v409, 16
    %v596 = vcvt.s32.f32 %v594
    %v597 = vcvt.s32.f32 %v595
    %598 = vmin.xlane.f32.xlu0 %v597
    %v599 = vpop.xlane.xlu0 %598
    %vm600 = vcmp.eq.f32.partialorder %v597, %v599
    %v601 = vsel %vm600, %v596, inf
    %602 = vmin.xlane.f32.xlu0 %v601
    %v603 = vpop.xlane.xlu0 %602
    %v604 = vcvt.f32.s32 %v603
    %v605 = vcvt.f32.s32 %v599
    %v606 = vshll.u32 %v605, 16
    %v607 = vadd.s32 %v606, %v604
    %v608 = vand.u32 %v410, 65535
    %v609 = vshra.s32 %v410, 16
    %v610 = vcvt.s32.f32 %v608
    %v611 = vcvt.s32.f32 %v609
    %612 = vmin.xlane.f32.xlu0 %v611
    %v613 = vpop.xlane.xlu0 %612
    %vm614 = vcmp.eq.f32.partialorder %v611, %v613
    %v615 = vsel %vm614, %v610, inf
    %616 = vmin.xlane.f32.xlu0 %v615
    %v617 = vpop.xlane.xlu0 %616
    %v618 = vcvt.f32.s32 %v617
    %v619 = vcvt.f32.s32 %v613
    %v620 = vshll.u32 %v619, 16
    %v621 = vadd.s32 %v620, %v618
    %v622 = vand.u32 %v411, 65535
    %v623 = vshra.s32 %v411, 16
    %v624 = vcvt.s32.f32 %v622
    %v625 = vcvt.s32.f32 %v623
    %626 = vmin.xlane.f32.xlu0 %v625
    %v627 = vpop.xlane.xlu0 %626
    %vm628 = vcmp.eq.f32.partialorder %v625, %v627
    %v629 = vsel %vm628, %v624, inf
    %630 = vmin.xlane.f32.xlu0 %v629
    %v631 = vpop.xlane.xlu0 %630
    %v632 = vcvt.f32.s32 %v631
    %v633 = vcvt.f32.s32 %v627
    %v634 = vshll.u32 %v633, 16
    %v635 = vadd.s32 %v634, %v632
    %vm636 = vcmp.eq.s32.totalorder %v165, %v425
    %vm637 = vcmp.eq.s32.totalorder %v165, %v439
    %vm638 = vcmp.eq.s32.totalorder %v165, %v453
    %vm639 = vcmp.eq.s32.totalorder %v165, %v467
    %vm640 = vcmp.eq.s32.totalorder %v165, %v481
    %vm641 = vcmp.eq.s32.totalorder %v165, %v495
    %vm642 = vcmp.eq.s32.totalorder %v165, %v509
    %vm643 = vcmp.eq.s32.totalorder %v165, %v523
    %vm644 = vcmp.eq.s32.totalorder %v165, %v537
    %vm645 = vcmp.eq.s32.totalorder %v165, %v551
    %vm646 = vcmp.eq.s32.totalorder %v165, %v565
    %vm647 = vcmp.eq.s32.totalorder %v165, %v579
    %vm648 = vcmp.eq.s32.totalorder %v165, %v593
    %vm649 = vcmp.eq.s32.totalorder %v165, %v607
    %vm650 = vcmp.eq.s32.totalorder %v165, %v621
    %vm651 = vcmp.eq.s32.totalorder %v165, %v635
    %v652 = vsel %vm636, 1, 0
    %v653 = vsel %vm637, 1, 0
    %v654 = vsel %vm638, 1, 0
    %v655 = vsel %vm639, 1, 0
    %v656 = vsel %vm640, 1, 0
    %v657 = vsel %vm641, 1, 0
    %v658 = vsel %vm642, 1, 0
    %v659 = vsel %vm643, 1, 0
    %v660 = vsel %vm644, 1, 0
    %v661 = vsel %vm645, 1, 0
    %v662 = vsel %vm646, 1, 0
    %v663 = vsel %vm647, 1, 0
    %v664 = vsel %vm648, 1, 0
    %v665 = vsel %vm649, 1, 0
    %v666 = vsel %vm650, 1, 0
    %v667 = vsel %vm651, 1, 0
    %v668 = vcvt.s32.f32 %v652
    %v669 = vcvt.s32.f32 %v653
    %v670 = vcvt.s32.f32 %v654
    %v671 = vcvt.s32.f32 %v655
    %v672 = vcvt.s32.f32 %v656
    %v673 = vcvt.s32.f32 %v657
    %v674 = vcvt.s32.f32 %v658
    %v675 = vcvt.s32.f32 %v659
    %v676 = vcvt.s32.f32 %v660
    %v677 = vcvt.s32.f32 %v661
    %v678 = vcvt.s32.f32 %v662
    %v679 = vcvt.s32.f32 %v663
    %v680 = vcvt.s32.f32 %v664
    %v681 = vcvt.s32.f32 %v665
    %v682 = vcvt.s32.f32 %v666
    %v683 = vcvt.s32.f32 %v667
    %v684 = vpack.c.bf16 %v669, %v668
    %v685 = vpack.c.bf16 %v671, %v670
    %v686 = vpack.c.bf16 %v673, %v672
    %v687 = vpack.c.bf16 %v675, %v674
    %v688 = vpack.c.bf16 %v677, %v676
    %v689 = vpack.c.bf16 %v679, %v678
    %v690 = vpack.c.bf16 %v681, %v680
    %v691 = vpack.c.bf16 %v683, %v682
    %700 = vmatpush.bf16.msra.mxu0 %v229
    %701 = vmatpush.bf16.msra.mxu0 %v228
    %702 = vmatpush.bf16.msra.mxu0 %v227
    %703 = vmatpush.bf16.msra.mxu0 %v226
    %704 = vmatpush.bf16.msra.mxu0 %v225
    %705 = vmatpush.bf16.msra.mxu0 %v224
    %706 = vmatpush.bf16.msra.mxu0 %v223
    %707 = vmatpush.bf16.msra.mxu0 %v222
    %708 = vmatmul.bf16.gmra.mxu0 %v684
    %v709 = vpop.f32.mrf.mxu0
    %v710 = vadd.f32 0.0, %v709
    %v711 = vpop.f32.mrf.mxu0
    %v712 = vadd.f32 0.0, %v711
    %713 = vmatmul.bf16.gmra.mxu0 %v685
    %v714 = vpop.f32.mrf.mxu0
    %v715 = vadd.f32 0.0, %v714
    %v716 = vpop.f32.mrf.mxu0
    %v717 = vadd.f32 0.0, %v716
    %718 = vmatmul.bf16.gmra.mxu0 %v686
    %v719 = vpop.f32.mrf.mxu0
    %v720 = vadd.f32 0.0, %v719
    %v721 = vpop.f32.mrf.mxu0
    %v722 = vadd.f32 0.0, %v721
    %723 = vmatmul.bf16.gmra.mxu0 %v687
    %v724 = vpop.f32.mrf.mxu0
    %v725 = vadd.f32 0.0, %v724
    %v726 = vpop.f32.mrf.mxu0
    %v727 = vadd.f32 0.0, %v726
    %728 = vmatmul.bf16.gmra.mxu0 %v688
    %v729 = vpop.f32.mrf.mxu0
    %v730 = vadd.f32 0.0, %v729
    %v731 = vpop.f32.mrf.mxu0
    %v732 = vadd.f32 0.0, %v731
    %733 = vmatmul.bf16.gmra.mxu0 %v689
    %v734 = vpop.f32.mrf.mxu0
    %v735 = vadd.f32 0.0, %v734
    %v736 = vpop.f32.mrf.mxu0
    %v737 = vadd.f32 0.0, %v736
    %738 = vmatmul.bf16.gmra.mxu0 %v690
    %v739 = vpop.f32.mrf.mxu0
    %v740 = vadd.f32 0.0, %v739
    %v741 = vpop.f32.mrf.mxu0
    %v742 = vadd.f32 0.0, %v741
    %743 = vmatmul.bf16.gmra.mxu0 %v691
    %v744 = vpop.f32.mrf.mxu0
    %v745 = vadd.f32 0.0, %v744
    %v746 = vpop.f32.mrf.mxu0
    %v747 = vadd.f32 0.0, %v746
    %748 = vdwg.mxu0
    %v749 = vsub.f32 %v125, %v710
    %v750 = vsub.f32 %v127, %v712
    %v751 = vsub.f32 %v130, %v715
    %v752 = vsub.f32 %v132, %v717
    %v753 = vsub.f32 %v135, %v720
    %v754 = vsub.f32 %v137, %v722
    %v755 = vsub.f32 %v140, %v725
    %v756 = vsub.f32 %v142, %v727
    %v757 = vsub.f32 %v145, %v730
    %v758 = vsub.f32 %v147, %v732
    %v759 = vsub.f32 %v150, %v735
    %v760 = vsub.f32 %v152, %v737
    %v761 = vsub.f32 %v155, %v740
    %v762 = vsub.f32 %v157, %v742
    %v763 = vsub.f32 %v160, %v745
    %v764 = vsub.f32 %v162, %v747
    %s765 = scalar_lea.vmem %s3, 64
    %v766 = vld [vmem:[%s765] sm:$0xf]
    %v767 = vld [vmem:[%s765 + $0x4] sm:$0xf]
    %v768 = vld [vmem:[%s765 + $0x8] sm:$0xf]
    %v769 = vld [vmem:[%s765 + $0xc] sm:$0xf]
    %v770 = vld [vmem:[%s765 + $0x10] sm:$0xf]
    %v771 = vld [vmem:[%s765 + $0x14] sm:$0xf]
    %v772 = vld [vmem:[%s765 + $0x18] sm:$0xf]
    %v773 = vld [vmem:[%s765 + $0x1c] sm:$0xf]
    %v774 = vld [vmem:[%s765 + $0x20] sm:$0xf]
    %v775 = vld [vmem:[%s765 + $0x24] sm:$0xf]
    %v776 = vld [vmem:[%s765 + $0x28] sm:$0xf]
    %v777 = vld [vmem:[%s765 + $0x2c] sm:$0xf]
    %v778 = vld [vmem:[%s765 + $0x30] sm:$0xf]
    %v779 = vld [vmem:[%s765 + $0x34] sm:$0xf]
    %v780 = vld [vmem:[%s765 + $0x38] sm:$0xf]
    %v781 = vld [vmem:[%s765 + $0x3c] sm:$0xf]
    %v782 = vpack.c.bf16 %v750, %v749
    %v783 = vpack.c.bf16 %v752, %v751
    %v784 = vpack.c.bf16 %v754, %v753
    %v785 = vpack.c.bf16 %v756, %v755
    %v786 = vpack.c.bf16 %v758, %v757
    %v787 = vpack.c.bf16 %v760, %v759
    %v788 = vpack.c.bf16 %v762, %v761
    %v789 = vpack.c.bf16 %v764, %v763
    %v806 = vunpack.c.l.b16 %v766
    %v807 = vunpack.c.l.b16 %v767
    %v808 = vunpack.c.l.b16 %v768
    %v809 = vunpack.c.l.b16 %v769
    %v810 = vunpack.c.l.b16 %v770
    %v811 = vunpack.c.l.b16 %v771
    %v812 = vunpack.c.l.b16 %v772
    %v813 = vunpack.c.l.b16 %v773
    %v814 = vunpack.c.l.b16 %v774
    %v815 = vunpack.c.l.b16 %v775
    %v816 = vunpack.c.l.b16 %v776
    %v817 = vunpack.c.l.b16 %v777
    %v818 = vunpack.c.l.b16 %v778
    %v819 = vunpack.c.l.b16 %v779
    %v820 = vunpack.c.l.b16 %v780
    %v821 = vunpack.c.l.b16 %v781
    %v822 = vpack.c.b16 %v807, %v806
    %v823 = vpack.c.b16 %v809, %v808
    %v824 = vpack.c.b16 %v811, %v810
    %v825 = vpack.c.b16 %v813, %v812
    %v826 = vpack.c.b16 %v815, %v814
    %v827 = vpack.c.b16 %v817, %v816
    %v828 = vpack.c.b16 %v819, %v818
    %v829 = vpack.c.b16 %v821, %v820
    %v831 = vsel %vm230, %v782, 0
    %v834 = vsel %vm230, %v783, 0
    %v837 = vsel %vm230, %v784, 0
    %v840 = vsel %vm230, %v785, 0
    %v843 = vsel %vm230, %v786, 0
    %v846 = vsel %vm230, %v787, 0
    %v849 = vsel %vm230, %v788, 0
    %v852 = vsel %vm230, %v789, 0
    %v855 = vsel %vm230, %v822, 0
    %v858 = vsel %vm230, %v823, 0
    %v861 = vsel %vm230, %v824, 0
    %v864 = vsel %vm230, %v825, 0
    %v867 = vsel %vm230, %v826, 0
    %v870 = vsel %vm230, %v827, 0
    %v873 = vsel %vm230, %v828, 0
    %v876 = vsel %vm230, %v829, 0
    %878 = vmatpush.bf16.xpose.msra.mxu0 %v876
    %879 = vmatpush.bf16.xpose.msra.mxu0 %v873
    %880 = vmatpush.bf16.xpose.msra.mxu0 %v870
    %881 = vmatpush.bf16.xpose.msra.mxu0 %v867
    %882 = vmatpush.bf16.xpose.msra.mxu0 %v864
    %883 = vmatpush.bf16.xpose.msra.mxu0 %v861
    %884 = vmatpush.bf16.xpose.msra.mxu0 %v858
    %885 = vmatpush.bf16.xpose.msra.mxu0 %v855
    %886 = vmatmul.bf16.gmra.mxu0 %v831
    %v887 = vpop.f32.mrf.mxu0
    %v888 = vadd.f32 0.0, %v887
    %v889 = vpop.f32.mrf.mxu0
    %v890 = vadd.f32 0.0, %v889
    %891 = vmatmul.bf16.gmra.mxu0 %v834
    %v892 = vpop.f32.mrf.mxu0
    %v893 = vadd.f32 0.0, %v892
    %v894 = vpop.f32.mrf.mxu0
    %v895 = vadd.f32 0.0, %v894
    %896 = vmatmul.bf16.gmra.mxu0 %v837
    %v897 = vpop.f32.mrf.mxu0
    %v898 = vadd.f32 0.0, %v897
    %v899 = vpop.f32.mrf.mxu0
    %v900 = vadd.f32 0.0, %v899
    %901 = vmatmul.bf16.gmra.mxu0 %v840
    %v902 = vpop.f32.mrf.mxu0
    %v903 = vadd.f32 0.0, %v902
    %v904 = vpop.f32.mrf.mxu0
    %v905 = vadd.f32 0.0, %v904
    %906 = vmatmul.bf16.gmra.mxu0 %v843
    %v907 = vpop.f32.mrf.mxu0
    %v908 = vadd.f32 0.0, %v907
    %v909 = vpop.f32.mrf.mxu0
    %v910 = vadd.f32 0.0, %v909
    %911 = vmatmul.bf16.gmra.mxu0 %v846
    %v912 = vpop.f32.mrf.mxu0
    %v913 = vadd.f32 0.0, %v912
    %v914 = vpop.f32.mrf.mxu0
    %v915 = vadd.f32 0.0, %v914
    %916 = vmatmul.bf16.gmra.mxu0 %v849
    %v917 = vpop.f32.mrf.mxu0
    %v918 = vadd.f32 0.0, %v917
    %v919 = vpop.f32.mrf.mxu0
    %v920 = vadd.f32 0.0, %v919
    %921 = vmatmul.bf16.gmra.mxu0 %v852
    %v922 = vpop.f32.mrf.mxu0
    %v923 = vadd.f32 0.0, %v922
    %v924 = vpop.f32.mrf.mxu0
    %v925 = vadd.f32 0.0, %v924
    %926 = vdwg.mxu0
    %s927 = scalar_lea.vmem %s4, 1
    %v928 = vld [vmem:[%s927] sm:$0x1]
    %v930 = vperm.slane %v928, 0
    %v932 = vsub.f32 %v930, %v888
    %v933 = vsub.f32 %v930, %v890
    %v934 = vsub.f32 %v930, %v893
    %v935 = vsub.f32 %v930, %v895
    %v936 = vsub.f32 %v930, %v898
    %v937 = vsub.f32 %v930, %v900
    %v938 = vsub.f32 %v930, %v903
    %v939 = vsub.f32 %v930, %v905
    %v940 = vsub.f32 %v930, %v908
    %v941 = vsub.f32 %v930, %v910
    %v942 = vsub.f32 %v930, %v913
    %v943 = vsub.f32 %v930, %v915
    %v944 = vsub.f32 %v930, %v918
    %v945 = vsub.f32 %v930, %v920
    %v946 = vsub.f32 %v930, %v923
    %v947 = vsub.f32 %v930, %v925
    %948 = vmin.xlane.f32.xlu0 %v932
    %v949 = vpop.xlane.xlu0 %948
    %950 = vmin.xlane.f32.xlu0 %v933
    %v951 = vpop.xlane.xlu0 %950
    %952 = vmin.xlane.f32.xlu0 %v934
    %v953 = vpop.xlane.xlu0 %952
    %954 = vmin.xlane.f32.xlu0 %v935
    %v955 = vpop.xlane.xlu0 %954
    %956 = vmin.xlane.f32.xlu0 %v936
    %v957 = vpop.xlane.xlu0 %956
    %958 = vmin.xlane.f32.xlu0 %v937
    %v959 = vpop.xlane.xlu0 %958
    %960 = vmin.xlane.f32.xlu0 %v938
    %v961 = vpop.xlane.xlu0 %960
    %962 = vmin.xlane.f32.xlu0 %v939
    %v963 = vpop.xlane.xlu0 %962
    %964 = vmin.xlane.f32.xlu0 %v940
    %v965 = vpop.xlane.xlu0 %964
    %966 = vmin.xlane.f32.xlu0 %v941
    %v967 = vpop.xlane.xlu0 %966
    %968 = vmin.xlane.f32.xlu0 %v942
    %v969 = vpop.xlane.xlu0 %968
    %970 = vmin.xlane.f32.xlu0 %v943
    %v971 = vpop.xlane.xlu0 %970
    %972 = vmin.xlane.f32.xlu0 %v944
    %v973 = vpop.xlane.xlu0 %972
    %974 = vmin.xlane.f32.xlu0 %v945
    %v975 = vpop.xlane.xlu0 %974
    %976 = vmin.xlane.f32.xlu0 %v946
    %v977 = vpop.xlane.xlu0 %976
    %978 = vmin.xlane.f32.xlu0 %v947
    %v979 = vpop.xlane.xlu0 %978
    %vm980 = vcmp.eq.f32.partialorder %v932, %v949
    %vm981 = vcmp.eq.f32.partialorder %v933, %v951
    %vm982 = vcmp.eq.f32.partialorder %v934, %v953
    %vm983 = vcmp.eq.f32.partialorder %v935, %v955
    %vm984 = vcmp.eq.f32.partialorder %v936, %v957
    %vm985 = vcmp.eq.f32.partialorder %v937, %v959
    %vm986 = vcmp.eq.f32.partialorder %v938, %v961
    %vm987 = vcmp.eq.f32.partialorder %v939, %v963
    %vm988 = vcmp.eq.f32.partialorder %v940, %v965
    %vm989 = vcmp.eq.f32.partialorder %v941, %v967
    %vm990 = vcmp.eq.f32.partialorder %v942, %v969
    %vm991 = vcmp.eq.f32.partialorder %v943, %v971
    %vm992 = vcmp.eq.f32.partialorder %v944, %v973
    %vm993 = vcmp.eq.f32.partialorder %v945, %v975
    %vm994 = vcmp.eq.f32.partialorder %v946, %v977
    %vm995 = vcmp.eq.f32.partialorder %v947, %v979
    %v996 = vsel %vm980, %v165, 128
    %v997 = vsel %vm981, %v165, 128
    %v998 = vsel %vm982, %v165, 128
    %v999 = vsel %vm983, %v165, 128
    %v1000 = vsel %vm984, %v165, 128
    %v1001 = vsel %vm985, %v165, 128
    %v1002 = vsel %vm986, %v165, 128
    %v1003 = vsel %vm987, %v165, 128
    %v1004 = vsel %vm988, %v165, 128
    %v1005 = vsel %vm989, %v165, 128
    %v1006 = vsel %vm990, %v165, 128
    %v1007 = vsel %vm991, %v165, 128
    %v1008 = vsel %vm992, %v165, 128
    %v1009 = vsel %vm993, %v165, 128
    %v1010 = vsel %vm994, %v165, 128
    %v1011 = vsel %vm995, %v165, 128
    %v1012 = vand.u32 %v996, 65535
    %v1013 = vshra.s32 %v996, 16
    %v1014 = vcvt.s32.f32 %v1012
    %v1015 = vcvt.s32.f32 %v1013
    %1016 = vmin.xlane.f32.xlu0 %v1015
    %v1017 = vpop.xlane.xlu0 %1016
    %vm1018 = vcmp.eq.f32.partialorder %v1015, %v1017
    %v1019 = vsel %vm1018, %v1014, inf
    %1020 = vmin.xlane.f32.xlu0 %v1019
    %v1021 = vpop.xlane.xlu0 %1020
    %v1022 = vcvt.f32.s32 %v1021
    %v1023 = vcvt.f32.s32 %v1017
    %v1024 = vshll.u32 %v1023, 16
    %v1025 = vadd.s32 %v1024, %v1022
    %v1026 = vand.u32 %v997, 65535
    %v1027 = vshra.s32 %v997, 16
    %v1028 = vcvt.s32.f32 %v1026
    %v1029 = vcvt.s32.f32 %v1027
    %1030 = vmin.xlane.f32.xlu0 %v1029
    %v1031 = vpop.xlane.xlu0 %1030
    %vm1032 = vcmp.eq.f32.partialorder %v1029, %v1031
    %v1033 = vsel %vm1032, %v1028, inf
    %1034 = vmin.xlane.f32.xlu0 %v1033
    %v1035 = vpop.xlane.xlu0 %1034
    %v1036 = vcvt.f32.s32 %v1035
    %v1037 = vcvt.f32.s32 %v1031
    %v1038 = vshll.u32 %v1037, 16
    %v1039 = vadd.s32 %v1038, %v1036
    %v1040 = vand.u32 %v998, 65535
    %v1041 = vshra.s32 %v998, 16
    %v1042 = vcvt.s32.f32 %v1040
    %v1043 = vcvt.s32.f32 %v1041
    %1044 = vmin.xlane.f32.xlu0 %v1043
    %v1045 = vpop.xlane.xlu0 %1044
    %vm1046 = vcmp.eq.f32.partialorder %v1043, %v1045
    %v1047 = vsel %vm1046, %v1042, inf
    %1048 = vmin.xlane.f32.xlu0 %v1047
    %v1049 = vpop.xlane.xlu0 %1048
    %v1050 = vcvt.f32.s32 %v1049
    %v1051 = vcvt.f32.s32 %v1045
    %v1052 = vshll.u32 %v1051, 16
    %v1053 = vadd.s32 %v1052, %v1050
    %v1054 = vand.u32 %v999, 65535
    %v1055 = vshra.s32 %v999, 16
    %v1056 = vcvt.s32.f32 %v1054
    %v1057 = vcvt.s32.f32 %v1055
    %1058 = vmin.xlane.f32.xlu0 %v1057
    %v1059 = vpop.xlane.xlu0 %1058
    %vm1060 = vcmp.eq.f32.partialorder %v1057, %v1059
    %v1061 = vsel %vm1060, %v1056, inf
    %1062 = vmin.xlane.f32.xlu0 %v1061
    %v1063 = vpop.xlane.xlu0 %1062
    %v1064 = vcvt.f32.s32 %v1063
    %v1065 = vcvt.f32.s32 %v1059
    %v1066 = vshll.u32 %v1065, 16
    %v1067 = vadd.s32 %v1066, %v1064
    %v1068 = vand.u32 %v1000, 65535
    %v1069 = vshra.s32 %v1000, 16
    %v1070 = vcvt.s32.f32 %v1068
    %v1071 = vcvt.s32.f32 %v1069
    %1072 = vmin.xlane.f32.xlu0 %v1071
    %v1073 = vpop.xlane.xlu0 %1072
    %vm1074 = vcmp.eq.f32.partialorder %v1071, %v1073
    %v1075 = vsel %vm1074, %v1070, inf
    %1076 = vmin.xlane.f32.xlu0 %v1075
    %v1077 = vpop.xlane.xlu0 %1076
    %v1078 = vcvt.f32.s32 %v1077
    %v1079 = vcvt.f32.s32 %v1073
    %v1080 = vshll.u32 %v1079, 16
    %v1081 = vadd.s32 %v1080, %v1078
    %v1082 = vand.u32 %v1001, 65535
    %v1083 = vshra.s32 %v1001, 16
    %v1084 = vcvt.s32.f32 %v1082
    %v1085 = vcvt.s32.f32 %v1083
    %1086 = vmin.xlane.f32.xlu0 %v1085
    %v1087 = vpop.xlane.xlu0 %1086
    %vm1088 = vcmp.eq.f32.partialorder %v1085, %v1087
    %v1089 = vsel %vm1088, %v1084, inf
    %1090 = vmin.xlane.f32.xlu0 %v1089
    %v1091 = vpop.xlane.xlu0 %1090
    %v1092 = vcvt.f32.s32 %v1091
    %v1093 = vcvt.f32.s32 %v1087
    %v1094 = vshll.u32 %v1093, 16
    %v1095 = vadd.s32 %v1094, %v1092
    %v1096 = vand.u32 %v1002, 65535
    %v1097 = vshra.s32 %v1002, 16
    %v1098 = vcvt.s32.f32 %v1096
    %v1099 = vcvt.s32.f32 %v1097
    %1100 = vmin.xlane.f32.xlu0 %v1099
    %v1101 = vpop.xlane.xlu0 %1100
    %vm1102 = vcmp.eq.f32.partialorder %v1099, %v1101
    %v1103 = vsel %vm1102, %v1098, inf
    %1104 = vmin.xlane.f32.xlu0 %v1103
    %v1105 = vpop.xlane.xlu0 %1104
    %v1106 = vcvt.f32.s32 %v1105
    %v1107 = vcvt.f32.s32 %v1101
    %v1108 = vshll.u32 %v1107, 16
    %v1109 = vadd.s32 %v1108, %v1106
    %v1110 = vand.u32 %v1003, 65535
    %v1111 = vshra.s32 %v1003, 16
    %v1112 = vcvt.s32.f32 %v1110
    %v1113 = vcvt.s32.f32 %v1111
    %1114 = vmin.xlane.f32.xlu0 %v1113
    %v1115 = vpop.xlane.xlu0 %1114
    %vm1116 = vcmp.eq.f32.partialorder %v1113, %v1115
    %v1117 = vsel %vm1116, %v1112, inf
    %1118 = vmin.xlane.f32.xlu0 %v1117
    %v1119 = vpop.xlane.xlu0 %1118
    %v1120 = vcvt.f32.s32 %v1119
    %v1121 = vcvt.f32.s32 %v1115
    %v1122 = vshll.u32 %v1121, 16
    %v1123 = vadd.s32 %v1122, %v1120
    %v1124 = vand.u32 %v1004, 65535
    %v1125 = vshra.s32 %v1004, 16
    %v1126 = vcvt.s32.f32 %v1124
    %v1127 = vcvt.s32.f32 %v1125
    %1128 = vmin.xlane.f32.xlu0 %v1127
    %v1129 = vpop.xlane.xlu0 %1128
    %vm1130 = vcmp.eq.f32.partialorder %v1127, %v1129
    %v1131 = vsel %vm1130, %v1126, inf
    %1132 = vmin.xlane.f32.xlu0 %v1131
    %v1133 = vpop.xlane.xlu0 %1132
    %v1134 = vcvt.f32.s32 %v1133
    %v1135 = vcvt.f32.s32 %v1129
    %v1136 = vshll.u32 %v1135, 16
    %v1137 = vadd.s32 %v1136, %v1134
    %v1138 = vand.u32 %v1005, 65535
    %v1139 = vshra.s32 %v1005, 16
    %v1140 = vcvt.s32.f32 %v1138
    %v1141 = vcvt.s32.f32 %v1139
    %1142 = vmin.xlane.f32.xlu0 %v1141
    %v1143 = vpop.xlane.xlu0 %1142
    %vm1144 = vcmp.eq.f32.partialorder %v1141, %v1143
    %v1145 = vsel %vm1144, %v1140, inf
    %1146 = vmin.xlane.f32.xlu0 %v1145
    %v1147 = vpop.xlane.xlu0 %1146
    %v1148 = vcvt.f32.s32 %v1147
    %v1149 = vcvt.f32.s32 %v1143
    %v1150 = vshll.u32 %v1149, 16
    %v1151 = vadd.s32 %v1150, %v1148
    %v1152 = vand.u32 %v1006, 65535
    %v1153 = vshra.s32 %v1006, 16
    %v1154 = vcvt.s32.f32 %v1152
    %v1155 = vcvt.s32.f32 %v1153
    %1156 = vmin.xlane.f32.xlu0 %v1155
    %v1157 = vpop.xlane.xlu0 %1156
    %vm1158 = vcmp.eq.f32.partialorder %v1155, %v1157
    %v1159 = vsel %vm1158, %v1154, inf
    %1160 = vmin.xlane.f32.xlu0 %v1159
    %v1161 = vpop.xlane.xlu0 %1160
    %v1162 = vcvt.f32.s32 %v1161
    %v1163 = vcvt.f32.s32 %v1157
    %v1164 = vshll.u32 %v1163, 16
    %v1165 = vadd.s32 %v1164, %v1162
    %v1166 = vand.u32 %v1007, 65535
    %v1167 = vshra.s32 %v1007, 16
    %v1168 = vcvt.s32.f32 %v1166
    %v1169 = vcvt.s32.f32 %v1167
    %1170 = vmin.xlane.f32.xlu0 %v1169
    %v1171 = vpop.xlane.xlu0 %1170
    %vm1172 = vcmp.eq.f32.partialorder %v1169, %v1171
    %v1173 = vsel %vm1172, %v1168, inf
    %1174 = vmin.xlane.f32.xlu0 %v1173
    %v1175 = vpop.xlane.xlu0 %1174
    %v1176 = vcvt.f32.s32 %v1175
    %v1177 = vcvt.f32.s32 %v1171
    %v1178 = vshll.u32 %v1177, 16
    %v1179 = vadd.s32 %v1178, %v1176
    %v1180 = vand.u32 %v1008, 65535
    %v1181 = vshra.s32 %v1008, 16
    %v1182 = vcvt.s32.f32 %v1180
    %v1183 = vcvt.s32.f32 %v1181
    %1184 = vmin.xlane.f32.xlu0 %v1183
    %v1185 = vpop.xlane.xlu0 %1184
    %vm1186 = vcmp.eq.f32.partialorder %v1183, %v1185
    %v1187 = vsel %vm1186, %v1182, inf
    %1188 = vmin.xlane.f32.xlu0 %v1187
    %v1189 = vpop.xlane.xlu0 %1188
    %v1190 = vcvt.f32.s32 %v1189
    %v1191 = vcvt.f32.s32 %v1185
    %v1192 = vshll.u32 %v1191, 16
    %v1193 = vadd.s32 %v1192, %v1190
    %v1194 = vand.u32 %v1009, 65535
    %v1195 = vshra.s32 %v1009, 16
    %v1196 = vcvt.s32.f32 %v1194
    %v1197 = vcvt.s32.f32 %v1195
    %1198 = vmin.xlane.f32.xlu0 %v1197
    %v1199 = vpop.xlane.xlu0 %1198
    %vm1200 = vcmp.eq.f32.partialorder %v1197, %v1199
    %v1201 = vsel %vm1200, %v1196, inf
    %1202 = vmin.xlane.f32.xlu0 %v1201
    %v1203 = vpop.xlane.xlu0 %1202
    %v1204 = vcvt.f32.s32 %v1203
    %v1205 = vcvt.f32.s32 %v1199
    %v1206 = vshll.u32 %v1205, 16
    %v1207 = vadd.s32 %v1206, %v1204
    %v1208 = vand.u32 %v1010, 65535
    %v1209 = vshra.s32 %v1010, 16
    %v1210 = vcvt.s32.f32 %v1208
    %v1211 = vcvt.s32.f32 %v1209
    %1212 = vmin.xlane.f32.xlu0 %v1211
    %v1213 = vpop.xlane.xlu0 %1212
    %vm1214 = vcmp.eq.f32.partialorder %v1211, %v1213
    %v1215 = vsel %vm1214, %v1210, inf
    %1216 = vmin.xlane.f32.xlu0 %v1215
    %v1217 = vpop.xlane.xlu0 %1216
    %v1218 = vcvt.f32.s32 %v1217
    %v1219 = vcvt.f32.s32 %v1213
    %v1220 = vshll.u32 %v1219, 16
    %v1221 = vadd.s32 %v1220, %v1218
    %v1222 = vand.u32 %v1011, 65535
    %v1223 = vshra.s32 %v1011, 16
    %v1224 = vcvt.s32.f32 %v1222
    %v1225 = vcvt.s32.f32 %v1223
    %1226 = vmin.xlane.f32.xlu0 %v1225
    %v1227 = vpop.xlane.xlu0 %1226
    %vm1228 = vcmp.eq.f32.partialorder %v1225, %v1227
    %v1229 = vsel %vm1228, %v1224, inf
    %1230 = vmin.xlane.f32.xlu0 %v1229
    %v1231 = vpop.xlane.xlu0 %1230
    %v1232 = vcvt.f32.s32 %v1231
    %v1233 = vcvt.f32.s32 %v1227
    %v1234 = vshll.u32 %v1233, 16
    %v1235 = vadd.s32 %v1234, %v1232
    %vm1236 = vcmp.eq.s32.totalorder %v165, %v1025
    %vm1237 = vcmp.eq.s32.totalorder %v165, %v1039
    %vm1238 = vcmp.eq.s32.totalorder %v165, %v1053
    %vm1239 = vcmp.eq.s32.totalorder %v165, %v1067
    %vm1240 = vcmp.eq.s32.totalorder %v165, %v1081
    %vm1241 = vcmp.eq.s32.totalorder %v165, %v1095
    %vm1242 = vcmp.eq.s32.totalorder %v165, %v1109
    %vm1243 = vcmp.eq.s32.totalorder %v165, %v1123
    %vm1244 = vcmp.eq.s32.totalorder %v165, %v1137
    %vm1245 = vcmp.eq.s32.totalorder %v165, %v1151
    %vm1246 = vcmp.eq.s32.totalorder %v165, %v1165
    %vm1247 = vcmp.eq.s32.totalorder %v165, %v1179
    %vm1248 = vcmp.eq.s32.totalorder %v165, %v1193
    %vm1249 = vcmp.eq.s32.totalorder %v165, %v1207
    %vm1250 = vcmp.eq.s32.totalorder %v165, %v1221
    %vm1251 = vcmp.eq.s32.totalorder %v165, %v1235
    %v1252 = vsel %vm1236, 1, 0
    %v1253 = vsel %vm1237, 1, 0
    %v1254 = vsel %vm1238, 1, 0
    %v1255 = vsel %vm1239, 1, 0
    %v1256 = vsel %vm1240, 1, 0
    %v1257 = vsel %vm1241, 1, 0
    %v1258 = vsel %vm1242, 1, 0
    %v1259 = vsel %vm1243, 1, 0
    %v1260 = vsel %vm1244, 1, 0
    %v1261 = vsel %vm1245, 1, 0
    %v1262 = vsel %vm1246, 1, 0
    %v1263 = vsel %vm1247, 1, 0
    %v1264 = vsel %vm1248, 1, 0
    %v1265 = vsel %vm1249, 1, 0
    %v1266 = vsel %vm1250, 1, 0
    %v1267 = vsel %vm1251, 1, 0
    %v1268 = vcvt.s32.f32 %v1252
    %v1269 = vcvt.s32.f32 %v1253
    %v1270 = vcvt.s32.f32 %v1254
    %v1271 = vcvt.s32.f32 %v1255
    %v1272 = vcvt.s32.f32 %v1256
    %v1273 = vcvt.s32.f32 %v1257
    %v1274 = vcvt.s32.f32 %v1258
    %v1275 = vcvt.s32.f32 %v1259
    %v1276 = vcvt.s32.f32 %v1260
    %v1277 = vcvt.s32.f32 %v1261
    %v1278 = vcvt.s32.f32 %v1262
    %v1279 = vcvt.s32.f32 %v1263
    %v1280 = vcvt.s32.f32 %v1264
    %v1281 = vcvt.s32.f32 %v1265
    %v1282 = vcvt.s32.f32 %v1266
    %v1283 = vcvt.s32.f32 %v1267
    %v1284 = vpack.c.bf16 %v1269, %v1268
    %v1285 = vpack.c.bf16 %v1271, %v1270
    %v1286 = vpack.c.bf16 %v1273, %v1272
    %v1287 = vpack.c.bf16 %v1275, %v1274
    %v1288 = vpack.c.bf16 %v1277, %v1276
    %v1289 = vpack.c.bf16 %v1279, %v1278
    %v1290 = vpack.c.bf16 %v1281, %v1280
    %v1291 = vpack.c.bf16 %v1283, %v1282
    %1300 = vmatpush.bf16.msra.mxu0 %v829
    %1301 = vmatpush.bf16.msra.mxu0 %v828
    %1302 = vmatpush.bf16.msra.mxu0 %v827
    %1303 = vmatpush.bf16.msra.mxu0 %v826
    %1304 = vmatpush.bf16.msra.mxu0 %v825
    %1305 = vmatpush.bf16.msra.mxu0 %v824
    %1306 = vmatpush.bf16.msra.mxu0 %v823
    %1307 = vmatpush.bf16.msra.mxu0 %v822
    %1308 = vmatmul.bf16.gmra.mxu0 %v1284
    %v1309 = vpop.f32.mrf.mxu0
    %v1310 = vadd.f32 0.0, %v1309
    %v1311 = vpop.f32.mrf.mxu0
    %v1312 = vadd.f32 0.0, %v1311
    %1313 = vmatmul.bf16.gmra.mxu0 %v1285
    %v1314 = vpop.f32.mrf.mxu0
    %v1315 = vadd.f32 0.0, %v1314
    %v1316 = vpop.f32.mrf.mxu0
    %v1317 = vadd.f32 0.0, %v1316
    %1318 = vmatmul.bf16.gmra.mxu0 %v1286
    %v1319 = vpop.f32.mrf.mxu0
    %v1320 = vadd.f32 0.0, %v1319
    %v1321 = vpop.f32.mrf.mxu0
    %v1322 = vadd.f32 0.0, %v1321
    %1323 = vmatmul.bf16.gmra.mxu0 %v1287
    %v1324 = vpop.f32.mrf.mxu0
    %v1325 = vadd.f32 0.0, %v1324
    %v1326 = vpop.f32.mrf.mxu0
    %v1327 = vadd.f32 0.0, %v1326
    %1328 = vmatmul.bf16.gmra.mxu0 %v1288
    %v1329 = vpop.f32.mrf.mxu0
    %v1330 = vadd.f32 0.0, %v1329
    %v1331 = vpop.f32.mrf.mxu0
    %v1332 = vadd.f32 0.0, %v1331
    %1333 = vmatmul.bf16.gmra.mxu0 %v1289
    %v1334 = vpop.f32.mrf.mxu0
    %v1335 = vadd.f32 0.0, %v1334
    %v1336 = vpop.f32.mrf.mxu0
    %v1337 = vadd.f32 0.0, %v1336
    %1338 = vmatmul.bf16.gmra.mxu0 %v1290
    %v1339 = vpop.f32.mrf.mxu0
    %v1340 = vadd.f32 0.0, %v1339
    %v1341 = vpop.f32.mrf.mxu0
    %v1342 = vadd.f32 0.0, %v1341
    %1343 = vmatmul.bf16.gmra.mxu0 %v1291
    %v1344 = vpop.f32.mrf.mxu0
    %v1345 = vadd.f32 0.0, %v1344
    %v1346 = vpop.f32.mrf.mxu0
    %v1347 = vadd.f32 0.0, %v1346
    %1348 = vdwg.mxu0
    %v1349 = vsub.f32 %v749, %v1310
    %v1350 = vsub.f32 %v750, %v1312
    %v1351 = vsub.f32 %v751, %v1315
    %v1352 = vsub.f32 %v752, %v1317
    %v1353 = vsub.f32 %v753, %v1320
    %v1354 = vsub.f32 %v754, %v1322
    %v1355 = vsub.f32 %v755, %v1325
    %v1356 = vsub.f32 %v756, %v1327
    %v1357 = vsub.f32 %v757, %v1330
    %v1358 = vsub.f32 %v758, %v1332
    %v1359 = vsub.f32 %v759, %v1335
    %v1360 = vsub.f32 %v760, %v1337
    %v1361 = vsub.f32 %v761, %v1340
    %v1362 = vsub.f32 %v762, %v1342
    %v1363 = vsub.f32 %v763, %v1345
    %v1364 = vsub.f32 %v764, %v1347
    %s1365 = scalar_lea.vmem %s3, 128
    %v1366 = vld [vmem:[%s1365] sm:$0xf]
    %v1367 = vld [vmem:[%s1365 + $0x4] sm:$0xf]
    %v1368 = vld [vmem:[%s1365 + $0x8] sm:$0xf]
    %v1369 = vld [vmem:[%s1365 + $0xc] sm:$0xf]
    %v1370 = vld [vmem:[%s1365 + $0x10] sm:$0xf]
    %v1371 = vld [vmem:[%s1365 + $0x14] sm:$0xf]
    %v1372 = vld [vmem:[%s1365 + $0x18] sm:$0xf]
    %v1373 = vld [vmem:[%s1365 + $0x1c] sm:$0xf]
    %v1374 = vld [vmem:[%s1365 + $0x20] sm:$0xf]
    %v1375 = vld [vmem:[%s1365 + $0x24] sm:$0xf]
    %v1376 = vld [vmem:[%s1365 + $0x28] sm:$0xf]
    %v1377 = vld [vmem:[%s1365 + $0x2c] sm:$0xf]
    %v1378 = vld [vmem:[%s1365 + $0x30] sm:$0xf]
    %v1379 = vld [vmem:[%s1365 + $0x34] sm:$0xf]
    %v1380 = vld [vmem:[%s1365 + $0x38] sm:$0xf]
    %v1381 = vld [vmem:[%s1365 + $0x3c] sm:$0xf]
    %v1382 = vpack.c.bf16 %v1350, %v1349
    %v1383 = vpack.c.bf16 %v1352, %v1351
    %v1384 = vpack.c.bf16 %v1354, %v1353
    %v1385 = vpack.c.bf16 %v1356, %v1355
    %v1386 = vpack.c.bf16 %v1358, %v1357
    %v1387 = vpack.c.bf16 %v1360, %v1359
    %v1388 = vpack.c.bf16 %v1362, %v1361
    %v1389 = vpack.c.bf16 %v1364, %v1363
    %v1406 = vunpack.c.l.b16 %v1366
    %v1407 = vunpack.c.l.b16 %v1367
    %v1408 = vunpack.c.l.b16 %v1368
    %v1409 = vunpack.c.l.b16 %v1369
    %v1410 = vunpack.c.l.b16 %v1370
    %v1411 = vunpack.c.l.b16 %v1371
    %v1412 = vunpack.c.l.b16 %v1372
    %v1413 = vunpack.c.l.b16 %v1373
    %v1414 = vunpack.c.l.b16 %v1374
    %v1415 = vunpack.c.l.b16 %v1375
    %v1416 = vunpack.c.l.b16 %v1376
    %v1417 = vunpack.c.l.b16 %v1377
    %v1418 = vunpack.c.l.b16 %v1378
    %v1419 = vunpack.c.l.b16 %v1379
    %v1420 = vunpack.c.l.b16 %v1380
    %v1421 = vunpack.c.l.b16 %v1381
    %v1422 = vpack.c.b16 %v1407, %v1406
    %v1423 = vpack.c.b16 %v1409, %v1408
    %v1424 = vpack.c.b16 %v1411, %v1410
    %v1425 = vpack.c.b16 %v1413, %v1412
    %v1426 = vpack.c.b16 %v1415, %v1414
    %v1427 = vpack.c.b16 %v1417, %v1416
    %v1428 = vpack.c.b16 %v1419, %v1418
    %v1429 = vpack.c.b16 %v1421, %v1420
    %v1431 = vsel %vm230, %v1382, 0
    %v1434 = vsel %vm230, %v1383, 0
    %v1437 = vsel %vm230, %v1384, 0
    %v1440 = vsel %vm230, %v1385, 0
    %v1443 = vsel %vm230, %v1386, 0
    %v1446 = vsel %vm230, %v1387, 0
    %v1449 = vsel %vm230, %v1388, 0
    %v1452 = vsel %vm230, %v1389, 0
    %v1455 = vsel %vm230, %v1422, 0
    %v1458 = vsel %vm230, %v1423, 0
    %v1461 = vsel %vm230, %v1424, 0
    %v1464 = vsel %vm230, %v1425, 0
    %v1467 = vsel %vm230, %v1426, 0
    %v1470 = vsel %vm230, %v1427, 0
    %v1473 = vsel %vm230, %v1428, 0
    %v1476 = vsel %vm230, %v1429, 0
    %1478 = vmatpush.bf16.xpose.msra.mxu0 %v1476
    %1479 = vmatpush.bf16.xpose.msra.mxu0 %v1473
    %1480 = vmatpush.bf16.xpose.msra.mxu0 %v1470
    %1481 = vmatpush.bf16.xpose.msra.mxu0 %v1467
    %1482 = vmatpush.bf16.xpose.msra.mxu0 %v1464
    %1483 = vmatpush.bf16.xpose.msra.mxu0 %v1461
    %1484 = vmatpush.bf16.xpose.msra.mxu0 %v1458
    %1485 = vmatpush.bf16.xpose.msra.mxu0 %v1455
    %1486 = vmatmul.bf16.gmra.mxu0 %v1431
    %v1487 = vpop.f32.mrf.mxu0
    %v1488 = vadd.f32 0.0, %v1487
    %v1489 = vpop.f32.mrf.mxu0
    %v1490 = vadd.f32 0.0, %v1489
    %1491 = vmatmul.bf16.gmra.mxu0 %v1434
    %v1492 = vpop.f32.mrf.mxu0
    %v1493 = vadd.f32 0.0, %v1492
    %v1494 = vpop.f32.mrf.mxu0
    %v1495 = vadd.f32 0.0, %v1494
    %1496 = vmatmul.bf16.gmra.mxu0 %v1437
    %v1497 = vpop.f32.mrf.mxu0
    %v1498 = vadd.f32 0.0, %v1497
    %v1499 = vpop.f32.mrf.mxu0
    %v1500 = vadd.f32 0.0, %v1499
    %1501 = vmatmul.bf16.gmra.mxu0 %v1440
    %v1502 = vpop.f32.mrf.mxu0
    %v1503 = vadd.f32 0.0, %v1502
    %v1504 = vpop.f32.mrf.mxu0
    %v1505 = vadd.f32 0.0, %v1504
    %1506 = vmatmul.bf16.gmra.mxu0 %v1443
    %v1507 = vpop.f32.mrf.mxu0
    %v1508 = vadd.f32 0.0, %v1507
    %v1509 = vpop.f32.mrf.mxu0
    %v1510 = vadd.f32 0.0, %v1509
    %1511 = vmatmul.bf16.gmra.mxu0 %v1446
    %v1512 = vpop.f32.mrf.mxu0
    %v1513 = vadd.f32 0.0, %v1512
    %v1514 = vpop.f32.mrf.mxu0
    %v1515 = vadd.f32 0.0, %v1514
    %1516 = vmatmul.bf16.gmra.mxu0 %v1449
    %v1517 = vpop.f32.mrf.mxu0
    %v1518 = vadd.f32 0.0, %v1517
    %v1519 = vpop.f32.mrf.mxu0
    %v1520 = vadd.f32 0.0, %v1519
    %1521 = vmatmul.bf16.gmra.mxu0 %v1452
    %v1522 = vpop.f32.mrf.mxu0
    %v1523 = vadd.f32 0.0, %v1522
    %v1524 = vpop.f32.mrf.mxu0
    %v1525 = vadd.f32 0.0, %v1524
    %1526 = vdwg.mxu0
    %s1527 = scalar_lea.vmem %s4, 2
    %v1528 = vld [vmem:[%s1527] sm:$0x1]
    %v1530 = vperm.slane %v1528, 0
    %v1532 = vsub.f32 %v1530, %v1488
    %v1533 = vsub.f32 %v1530, %v1490
    %v1534 = vsub.f32 %v1530, %v1493
    %v1535 = vsub.f32 %v1530, %v1495
    %v1536 = vsub.f32 %v1530, %v1498
    %v1537 = vsub.f32 %v1530, %v1500
    %v1538 = vsub.f32 %v1530, %v1503
    %v1539 = vsub.f32 %v1530, %v1505
    %v1540 = vsub.f32 %v1530, %v1508
    %v1541 = vsub.f32 %v1530, %v1510
    %v1542 = vsub.f32 %v1530, %v1513
    %v1543 = vsub.f32 %v1530, %v1515
    %v1544 = vsub.f32 %v1530, %v1518
    %v1545 = vsub.f32 %v1530, %v1520
    %v1546 = vsub.f32 %v1530, %v1523
    %v1547 = vsub.f32 %v1530, %v1525
    %1548 = vmin.xlane.f32.xlu0 %v1532
    %v1549 = vpop.xlane.xlu0 %1548
    %1550 = vmin.xlane.f32.xlu0 %v1533
    %v1551 = vpop.xlane.xlu0 %1550
    %1552 = vmin.xlane.f32.xlu0 %v1534
    %v1553 = vpop.xlane.xlu0 %1552
    %1554 = vmin.xlane.f32.xlu0 %v1535
    %v1555 = vpop.xlane.xlu0 %1554
    %1556 = vmin.xlane.f32.xlu0 %v1536
    %v1557 = vpop.xlane.xlu0 %1556
    %1558 = vmin.xlane.f32.xlu0 %v1537
    %v1559 = vpop.xlane.xlu0 %1558
    %1560 = vmin.xlane.f32.xlu0 %v1538
    %v1561 = vpop.xlane.xlu0 %1560
    %1562 = vmin.xlane.f32.xlu0 %v1539
    %v1563 = vpop.xlane.xlu0 %1562
    %1564 = vmin.xlane.f32.xlu0 %v1540
    %v1565 = vpop.xlane.xlu0 %1564
    %1566 = vmin.xlane.f32.xlu0 %v1541
    %v1567 = vpop.xlane.xlu0 %1566
    %1568 = vmin.xlane.f32.xlu0 %v1542
    %v1569 = vpop.xlane.xlu0 %1568
    %1570 = vmin.xlane.f32.xlu0 %v1543
    %v1571 = vpop.xlane.xlu0 %1570
    %1572 = vmin.xlane.f32.xlu0 %v1544
    %v1573 = vpop.xlane.xlu0 %1572
    %1574 = vmin.xlane.f32.xlu0 %v1545
    %v1575 = vpop.xlane.xlu0 %1574
    %1576 = vmin.xlane.f32.xlu0 %v1546
    %v1577 = vpop.xlane.xlu0 %1576
    %1578 = vmin.xlane.f32.xlu0 %v1547
    %v1579 = vpop.xlane.xlu0 %1578
    %vm1580 = vcmp.eq.f32.partialorder %v1532, %v1549
    %vm1581 = vcmp.eq.f32.partialorder %v1533, %v1551
    %vm1582 = vcmp.eq.f32.partialorder %v1534, %v1553
    %vm1583 = vcmp.eq.f32.partialorder %v1535, %v1555
    %vm1584 = vcmp.eq.f32.partialorder %v1536, %v1557
    %vm1585 = vcmp.eq.f32.partialorder %v1537, %v1559
    %vm1586 = vcmp.eq.f32.partialorder %v1538, %v1561
    %vm1587 = vcmp.eq.f32.partialorder %v1539, %v1563
    %vm1588 = vcmp.eq.f32.partialorder %v1540, %v1565
    %vm1589 = vcmp.eq.f32.partialorder %v1541, %v1567
    %vm1590 = vcmp.eq.f32.partialorder %v1542, %v1569
    %vm1591 = vcmp.eq.f32.partialorder %v1543, %v1571
    %vm1592 = vcmp.eq.f32.partialorder %v1544, %v1573
    %vm1593 = vcmp.eq.f32.partialorder %v1545, %v1575
    %vm1594 = vcmp.eq.f32.partialorder %v1546, %v1577
    %vm1595 = vcmp.eq.f32.partialorder %v1547, %v1579
    %v1596 = vsel %vm1580, %v165, 128
    %v1597 = vsel %vm1581, %v165, 128
    %v1598 = vsel %vm1582, %v165, 128
    %v1599 = vsel %vm1583, %v165, 128
    %v1600 = vsel %vm1584, %v165, 128
    %v1601 = vsel %vm1585, %v165, 128
    %v1602 = vsel %vm1586, %v165, 128
    %v1603 = vsel %vm1587, %v165, 128
    %v1604 = vsel %vm1588, %v165, 128
    %v1605 = vsel %vm1589, %v165, 128
    %v1606 = vsel %vm1590, %v165, 128
    %v1607 = vsel %vm1591, %v165, 128
    %v1608 = vsel %vm1592, %v165, 128
    %v1609 = vsel %vm1593, %v165, 128
    %v1610 = vsel %vm1594, %v165, 128
    %v1611 = vsel %vm1595, %v165, 128
    %v1612 = vand.u32 %v1596, 65535
    %v1613 = vshra.s32 %v1596, 16
    %v1614 = vcvt.s32.f32 %v1612
    %v1615 = vcvt.s32.f32 %v1613
    %1616 = vmin.xlane.f32.xlu0 %v1615
    %v1617 = vpop.xlane.xlu0 %1616
    %vm1618 = vcmp.eq.f32.partialorder %v1615, %v1617
    %v1619 = vsel %vm1618, %v1614, inf
    %1620 = vmin.xlane.f32.xlu0 %v1619
    %v1621 = vpop.xlane.xlu0 %1620
    %v1622 = vcvt.f32.s32 %v1621
    %v1623 = vcvt.f32.s32 %v1617
    %v1624 = vshll.u32 %v1623, 16
    %v1625 = vadd.s32 %v1624, %v1622
    %v1626 = vand.u32 %v1597, 65535
    %v1627 = vshra.s32 %v1597, 16
    %v1628 = vcvt.s32.f32 %v1626
    %v1629 = vcvt.s32.f32 %v1627
    %1630 = vmin.xlane.f32.xlu0 %v1629
    %v1631 = vpop.xlane.xlu0 %1630
    %vm1632 = vcmp.eq.f32.partialorder %v1629, %v1631
    %v1633 = vsel %vm1632, %v1628, inf
    %1634 = vmin.xlane.f32.xlu0 %v1633
    %v1635 = vpop.xlane.xlu0 %1634
    %v1636 = vcvt.f32.s32 %v1635
    %v1637 = vcvt.f32.s32 %v1631
    %v1638 = vshll.u32 %v1637, 16
    %v1639 = vadd.s32 %v1638, %v1636
    %v1640 = vand.u32 %v1598, 65535
    %v1641 = vshra.s32 %v1598, 16
    %v1642 = vcvt.s32.f32 %v1640
    %v1643 = vcvt.s32.f32 %v1641
    %1644 = vmin.xlane.f32.xlu0 %v1643
    %v1645 = vpop.xlane.xlu0 %1644
    %vm1646 = vcmp.eq.f32.partialorder %v1643, %v1645
    %v1647 = vsel %vm1646, %v1642, inf
    %1648 = vmin.xlane.f32.xlu0 %v1647
    %v1649 = vpop.xlane.xlu0 %1648
    %v1650 = vcvt.f32.s32 %v1649
    %v1651 = vcvt.f32.s32 %v1645
    %v1652 = vshll.u32 %v1651, 16
    %v1653 = vadd.s32 %v1652, %v1650
    %v1654 = vand.u32 %v1599, 65535
    %v1655 = vshra.s32 %v1599, 16
    %v1656 = vcvt.s32.f32 %v1654
    %v1657 = vcvt.s32.f32 %v1655
    %1658 = vmin.xlane.f32.xlu0 %v1657
    %v1659 = vpop.xlane.xlu0 %1658
    %vm1660 = vcmp.eq.f32.partialorder %v1657, %v1659
    %v1661 = vsel %vm1660, %v1656, inf
    %1662 = vmin.xlane.f32.xlu0 %v1661
    %v1663 = vpop.xlane.xlu0 %1662
    %v1664 = vcvt.f32.s32 %v1663
    %v1665 = vcvt.f32.s32 %v1659
    %v1666 = vshll.u32 %v1665, 16
    %v1667 = vadd.s32 %v1666, %v1664
    %v1668 = vand.u32 %v1600, 65535
    %v1669 = vshra.s32 %v1600, 16
    %v1670 = vcvt.s32.f32 %v1668
    %v1671 = vcvt.s32.f32 %v1669
    %1672 = vmin.xlane.f32.xlu0 %v1671
    %v1673 = vpop.xlane.xlu0 %1672
    %vm1674 = vcmp.eq.f32.partialorder %v1671, %v1673
    %v1675 = vsel %vm1674, %v1670, inf
    %1676 = vmin.xlane.f32.xlu0 %v1675
    %v1677 = vpop.xlane.xlu0 %1676
    %v1678 = vcvt.f32.s32 %v1677
    %v1679 = vcvt.f32.s32 %v1673
    %v1680 = vshll.u32 %v1679, 16
    %v1681 = vadd.s32 %v1680, %v1678
    %v1682 = vand.u32 %v1601, 65535
    %v1683 = vshra.s32 %v1601, 16
    %v1684 = vcvt.s32.f32 %v1682
    %v1685 = vcvt.s32.f32 %v1683
    %1686 = vmin.xlane.f32.xlu0 %v1685
    %v1687 = vpop.xlane.xlu0 %1686
    %vm1688 = vcmp.eq.f32.partialorder %v1685, %v1687
    %v1689 = vsel %vm1688, %v1684, inf
    %1690 = vmin.xlane.f32.xlu0 %v1689
    %v1691 = vpop.xlane.xlu0 %1690
    %v1692 = vcvt.f32.s32 %v1691
    %v1693 = vcvt.f32.s32 %v1687
    %v1694 = vshll.u32 %v1693, 16
    %v1695 = vadd.s32 %v1694, %v1692
    %v1696 = vand.u32 %v1602, 65535
    %v1697 = vshra.s32 %v1602, 16
    %v1698 = vcvt.s32.f32 %v1696
    %v1699 = vcvt.s32.f32 %v1697
    %1700 = vmin.xlane.f32.xlu0 %v1699
    %v1701 = vpop.xlane.xlu0 %1700
    %vm1702 = vcmp.eq.f32.partialorder %v1699, %v1701
    %v1703 = vsel %vm1702, %v1698, inf
    %1704 = vmin.xlane.f32.xlu0 %v1703
    %v1705 = vpop.xlane.xlu0 %1704
    %v1706 = vcvt.f32.s32 %v1705
    %v1707 = vcvt.f32.s32 %v1701
    %v1708 = vshll.u32 %v1707, 16
    %v1709 = vadd.s32 %v1708, %v1706
    %v1710 = vand.u32 %v1603, 65535
    %v1711 = vshra.s32 %v1603, 16
    %v1712 = vcvt.s32.f32 %v1710
    %v1713 = vcvt.s32.f32 %v1711
    %1714 = vmin.xlane.f32.xlu0 %v1713
    %v1715 = vpop.xlane.xlu0 %1714
    %vm1716 = vcmp.eq.f32.partialorder %v1713, %v1715
    %v1717 = vsel %vm1716, %v1712, inf
    %1718 = vmin.xlane.f32.xlu0 %v1717
    %v1719 = vpop.xlane.xlu0 %1718
    %v1720 = vcvt.f32.s32 %v1719
    %v1721 = vcvt.f32.s32 %v1715
    %v1722 = vshll.u32 %v1721, 16
    %v1723 = vadd.s32 %v1722, %v1720
    %v1724 = vand.u32 %v1604, 65535
    %v1725 = vshra.s32 %v1604, 16
    %v1726 = vcvt.s32.f32 %v1724
    %v1727 = vcvt.s32.f32 %v1725
    %1728 = vmin.xlane.f32.xlu0 %v1727
    %v1729 = vpop.xlane.xlu0 %1728
    %vm1730 = vcmp.eq.f32.partialorder %v1727, %v1729
    %v1731 = vsel %vm1730, %v1726, inf
    %1732 = vmin.xlane.f32.xlu0 %v1731
    %v1733 = vpop.xlane.xlu0 %1732
    %v1734 = vcvt.f32.s32 %v1733
    %v1735 = vcvt.f32.s32 %v1729
    %v1736 = vshll.u32 %v1735, 16
    %v1737 = vadd.s32 %v1736, %v1734
    %v1738 = vand.u32 %v1605, 65535
    %v1739 = vshra.s32 %v1605, 16
    %v1740 = vcvt.s32.f32 %v1738
    %v1741 = vcvt.s32.f32 %v1739
    %1742 = vmin.xlane.f32.xlu0 %v1741
    %v1743 = vpop.xlane.xlu0 %1742
    %vm1744 = vcmp.eq.f32.partialorder %v1741, %v1743
    %v1745 = vsel %vm1744, %v1740, inf
    %1746 = vmin.xlane.f32.xlu0 %v1745
    %v1747 = vpop.xlane.xlu0 %1746
    %v1748 = vcvt.f32.s32 %v1747
    %v1749 = vcvt.f32.s32 %v1743
    %v1750 = vshll.u32 %v1749, 16
    %v1751 = vadd.s32 %v1750, %v1748
    %v1752 = vand.u32 %v1606, 65535
    %v1753 = vshra.s32 %v1606, 16
    %v1754 = vcvt.s32.f32 %v1752
    %v1755 = vcvt.s32.f32 %v1753
    %1756 = vmin.xlane.f32.xlu0 %v1755
    %v1757 = vpop.xlane.xlu0 %1756
    %vm1758 = vcmp.eq.f32.partialorder %v1755, %v1757
    %v1759 = vsel %vm1758, %v1754, inf
    %1760 = vmin.xlane.f32.xlu0 %v1759
    %v1761 = vpop.xlane.xlu0 %1760
    %v1762 = vcvt.f32.s32 %v1761
    %v1763 = vcvt.f32.s32 %v1757
    %v1764 = vshll.u32 %v1763, 16
    %v1765 = vadd.s32 %v1764, %v1762
    %v1766 = vand.u32 %v1607, 65535
    %v1767 = vshra.s32 %v1607, 16
    %v1768 = vcvt.s32.f32 %v1766
    %v1769 = vcvt.s32.f32 %v1767
    %1770 = vmin.xlane.f32.xlu0 %v1769
    %v1771 = vpop.xlane.xlu0 %1770
    %vm1772 = vcmp.eq.f32.partialorder %v1769, %v1771
    %v1773 = vsel %vm1772, %v1768, inf
    %1774 = vmin.xlane.f32.xlu0 %v1773
    %v1775 = vpop.xlane.xlu0 %1774
    %v1776 = vcvt.f32.s32 %v1775
    %v1777 = vcvt.f32.s32 %v1771
    %v1778 = vshll.u32 %v1777, 16
    %v1779 = vadd.s32 %v1778, %v1776
    %v1780 = vand.u32 %v1608, 65535
    %v1781 = vshra.s32 %v1608, 16
    %v1782 = vcvt.s32.f32 %v1780
    %v1783 = vcvt.s32.f32 %v1781
    %1784 = vmin.xlane.f32.xlu0 %v1783
    %v1785 = vpop.xlane.xlu0 %1784
    %vm1786 = vcmp.eq.f32.partialorder %v1783, %v1785
    %v1787 = vsel %vm1786, %v1782, inf
    %1788 = vmin.xlane.f32.xlu0 %v1787
    %v1789 = vpop.xlane.xlu0 %1788
    %v1790 = vcvt.f32.s32 %v1789
    %v1791 = vcvt.f32.s32 %v1785
    %v1792 = vshll.u32 %v1791, 16
    %v1793 = vadd.s32 %v1792, %v1790
    %v1794 = vand.u32 %v1609, 65535
    %v1795 = vshra.s32 %v1609, 16
    %v1796 = vcvt.s32.f32 %v1794
    %v1797 = vcvt.s32.f32 %v1795
    %1798 = vmin.xlane.f32.xlu0 %v1797
    %v1799 = vpop.xlane.xlu0 %1798
    %vm1800 = vcmp.eq.f32.partialorder %v1797, %v1799
    %v1801 = vsel %vm1800, %v1796, inf
    %1802 = vmin.xlane.f32.xlu0 %v1801
    %v1803 = vpop.xlane.xlu0 %1802
    %v1804 = vcvt.f32.s32 %v1803
    %v1805 = vcvt.f32.s32 %v1799
    %v1806 = vshll.u32 %v1805, 16
    %v1807 = vadd.s32 %v1806, %v1804
    %v1808 = vand.u32 %v1610, 65535
    %v1809 = vshra.s32 %v1610, 16
    %v1810 = vcvt.s32.f32 %v1808
    %v1811 = vcvt.s32.f32 %v1809
    %1812 = vmin.xlane.f32.xlu0 %v1811
    %v1813 = vpop.xlane.xlu0 %1812
    %vm1814 = vcmp.eq.f32.partialorder %v1811, %v1813
    %v1815 = vsel %vm1814, %v1810, inf
    %1816 = vmin.xlane.f32.xlu0 %v1815
    %v1817 = vpop.xlane.xlu0 %1816
    %v1818 = vcvt.f32.s32 %v1817
    %v1819 = vcvt.f32.s32 %v1813
    %v1820 = vshll.u32 %v1819, 16
    %v1821 = vadd.s32 %v1820, %v1818
    %v1822 = vand.u32 %v1611, 65535
    %v1823 = vshra.s32 %v1611, 16
    %v1824 = vcvt.s32.f32 %v1822
    %v1825 = vcvt.s32.f32 %v1823
    %1826 = vmin.xlane.f32.xlu0 %v1825
    %v1827 = vpop.xlane.xlu0 %1826
    %vm1828 = vcmp.eq.f32.partialorder %v1825, %v1827
    %v1829 = vsel %vm1828, %v1824, inf
    %1830 = vmin.xlane.f32.xlu0 %v1829
    %v1831 = vpop.xlane.xlu0 %1830
    %v1832 = vcvt.f32.s32 %v1831
    %v1833 = vcvt.f32.s32 %v1827
    %v1834 = vshll.u32 %v1833, 16
    %v1835 = vadd.s32 %v1834, %v1832
    %vm1836 = vcmp.eq.s32.totalorder %v165, %v1625
    %vm1837 = vcmp.eq.s32.totalorder %v165, %v1639
    %vm1838 = vcmp.eq.s32.totalorder %v165, %v1653
    %vm1839 = vcmp.eq.s32.totalorder %v165, %v1667
    %vm1840 = vcmp.eq.s32.totalorder %v165, %v1681
    %vm1841 = vcmp.eq.s32.totalorder %v165, %v1695
    %vm1842 = vcmp.eq.s32.totalorder %v165, %v1709
    %vm1843 = vcmp.eq.s32.totalorder %v165, %v1723
    %vm1844 = vcmp.eq.s32.totalorder %v165, %v1737
    %vm1845 = vcmp.eq.s32.totalorder %v165, %v1751
    %vm1846 = vcmp.eq.s32.totalorder %v165, %v1765
    %vm1847 = vcmp.eq.s32.totalorder %v165, %v1779
    %vm1848 = vcmp.eq.s32.totalorder %v165, %v1793
    %vm1849 = vcmp.eq.s32.totalorder %v165, %v1807
    %vm1850 = vcmp.eq.s32.totalorder %v165, %v1821
    %vm1851 = vcmp.eq.s32.totalorder %v165, %v1835
    %v1852 = vsel %vm1836, 1, 0
    %v1853 = vsel %vm1837, 1, 0
    %v1854 = vsel %vm1838, 1, 0
    %v1855 = vsel %vm1839, 1, 0
    %v1856 = vsel %vm1840, 1, 0
    %v1857 = vsel %vm1841, 1, 0
    %v1858 = vsel %vm1842, 1, 0
    %v1859 = vsel %vm1843, 1, 0
    %v1860 = vsel %vm1844, 1, 0
    %v1861 = vsel %vm1845, 1, 0
    %v1862 = vsel %vm1846, 1, 0
    %v1863 = vsel %vm1847, 1, 0
    %v1864 = vsel %vm1848, 1, 0
    %v1865 = vsel %vm1849, 1, 0
    %v1866 = vsel %vm1850, 1, 0
    %v1867 = vsel %vm1851, 1, 0
    %v1868 = vcvt.s32.f32 %v1852
    %v1869 = vcvt.s32.f32 %v1853
    %v1870 = vcvt.s32.f32 %v1854
    %v1871 = vcvt.s32.f32 %v1855
    %v1872 = vcvt.s32.f32 %v1856
    %v1873 = vcvt.s32.f32 %v1857
    %v1874 = vcvt.s32.f32 %v1858
    %v1875 = vcvt.s32.f32 %v1859
    %v1876 = vcvt.s32.f32 %v1860
    %v1877 = vcvt.s32.f32 %v1861
    %v1878 = vcvt.s32.f32 %v1862
    %v1879 = vcvt.s32.f32 %v1863
    %v1880 = vcvt.s32.f32 %v1864
    %v1881 = vcvt.s32.f32 %v1865
    %v1882 = vcvt.s32.f32 %v1866
    %v1883 = vcvt.s32.f32 %v1867
    %v1884 = vpack.c.bf16 %v1869, %v1868
    %v1885 = vpack.c.bf16 %v1871, %v1870
    %v1886 = vpack.c.bf16 %v1873, %v1872
    %v1887 = vpack.c.bf16 %v1875, %v1874
    %v1888 = vpack.c.bf16 %v1877, %v1876
    %v1889 = vpack.c.bf16 %v1879, %v1878
    %v1890 = vpack.c.bf16 %v1881, %v1880
    %v1891 = vpack.c.bf16 %v1883, %v1882
    %1900 = vmatpush.bf16.msra.mxu0 %v1429
    %1901 = vmatpush.bf16.msra.mxu0 %v1428
    %1902 = vmatpush.bf16.msra.mxu0 %v1427
    %1903 = vmatpush.bf16.msra.mxu0 %v1426
    %1904 = vmatpush.bf16.msra.mxu0 %v1425
    %1905 = vmatpush.bf16.msra.mxu0 %v1424
    %1906 = vmatpush.bf16.msra.mxu0 %v1423
    %1907 = vmatpush.bf16.msra.mxu0 %v1422
    %1908 = vmatmul.bf16.gmra.mxu0 %v1884
    %v1909 = vpop.f32.mrf.mxu0
    %v1910 = vadd.f32 0.0, %v1909
    %v1911 = vpop.f32.mrf.mxu0
    %v1912 = vadd.f32 0.0, %v1911
    %1913 = vmatmul.bf16.gmra.mxu0 %v1885
    %v1914 = vpop.f32.mrf.mxu0
    %v1915 = vadd.f32 0.0, %v1914
    %v1916 = vpop.f32.mrf.mxu0
    %v1917 = vadd.f32 0.0, %v1916
    %1918 = vmatmul.bf16.gmra.mxu0 %v1886
    %v1919 = vpop.f32.mrf.mxu0
    %v1920 = vadd.f32 0.0, %v1919
    %v1921 = vpop.f32.mrf.mxu0
    %v1922 = vadd.f32 0.0, %v1921
    %1923 = vmatmul.bf16.gmra.mxu0 %v1887
    %v1924 = vpop.f32.mrf.mxu0
    %v1925 = vadd.f32 0.0, %v1924
    %v1926 = vpop.f32.mrf.mxu0
    %v1927 = vadd.f32 0.0, %v1926
    %1928 = vmatmul.bf16.gmra.mxu0 %v1888
    %v1929 = vpop.f32.mrf.mxu0
    %v1930 = vadd.f32 0.0, %v1929
    %v1931 = vpop.f32.mrf.mxu0
    %v1932 = vadd.f32 0.0, %v1931
    %1933 = vmatmul.bf16.gmra.mxu0 %v1889
    %v1934 = vpop.f32.mrf.mxu0
    %v1935 = vadd.f32 0.0, %v1934
    %v1936 = vpop.f32.mrf.mxu0
    %v1937 = vadd.f32 0.0, %v1936
    %1938 = vmatmul.bf16.gmra.mxu0 %v1890
    %v1939 = vpop.f32.mrf.mxu0
    %v1940 = vadd.f32 0.0, %v1939
    %v1941 = vpop.f32.mrf.mxu0
    %v1942 = vadd.f32 0.0, %v1941
    %1943 = vmatmul.bf16.gmra.mxu0 %v1891
    %v1944 = vpop.f32.mrf.mxu0
    %v1945 = vadd.f32 0.0, %v1944
    %v1946 = vpop.f32.mrf.mxu0
    %v1947 = vadd.f32 0.0, %v1946
    %1948 = vdwg.mxu0
    %v1949 = vsub.f32 %v1349, %v1910
    %v1950 = vsub.f32 %v1350, %v1912
    %v1951 = vsub.f32 %v1351, %v1915
    %v1952 = vsub.f32 %v1352, %v1917
    %v1953 = vsub.f32 %v1353, %v1920
    %v1954 = vsub.f32 %v1354, %v1922
    %v1955 = vsub.f32 %v1355, %v1925
    %v1956 = vsub.f32 %v1356, %v1927
    %v1957 = vsub.f32 %v1357, %v1930
    %v1958 = vsub.f32 %v1358, %v1932
    %v1959 = vsub.f32 %v1359, %v1935
    %v1960 = vsub.f32 %v1360, %v1937
    %v1961 = vsub.f32 %v1361, %v1940
    %v1962 = vsub.f32 %v1362, %v1942
    %v1963 = vsub.f32 %v1363, %v1945
    %v1964 = vsub.f32 %v1364, %v1947
    %s1965 = scalar_lea.vmem %s3, 192
    %v1966 = vld [vmem:[%s1965] sm:$0xf]
    %v1967 = vld [vmem:[%s1965 + $0x4] sm:$0xf]
    %v1968 = vld [vmem:[%s1965 + $0x8] sm:$0xf]
    %v1969 = vld [vmem:[%s1965 + $0xc] sm:$0xf]
    %v1970 = vld [vmem:[%s1965 + $0x10] sm:$0xf]
    %v1971 = vld [vmem:[%s1965 + $0x14] sm:$0xf]
    %v1972 = vld [vmem:[%s1965 + $0x18] sm:$0xf]
    %v1973 = vld [vmem:[%s1965 + $0x1c] sm:$0xf]
    %v1974 = vld [vmem:[%s1965 + $0x20] sm:$0xf]
    %v1975 = vld [vmem:[%s1965 + $0x24] sm:$0xf]
    %v1976 = vld [vmem:[%s1965 + $0x28] sm:$0xf]
    %v1977 = vld [vmem:[%s1965 + $0x2c] sm:$0xf]
    %v1978 = vld [vmem:[%s1965 + $0x30] sm:$0xf]
    %v1979 = vld [vmem:[%s1965 + $0x34] sm:$0xf]
    %v1980 = vld [vmem:[%s1965 + $0x38] sm:$0xf]
    %v1981 = vld [vmem:[%s1965 + $0x3c] sm:$0xf]
    %v1982 = vpack.c.bf16 %v1950, %v1949
    %v1983 = vpack.c.bf16 %v1952, %v1951
    %v1984 = vpack.c.bf16 %v1954, %v1953
    %v1985 = vpack.c.bf16 %v1956, %v1955
    %v1986 = vpack.c.bf16 %v1958, %v1957
    %v1987 = vpack.c.bf16 %v1960, %v1959
    %v1988 = vpack.c.bf16 %v1962, %v1961
    %v1989 = vpack.c.bf16 %v1964, %v1963
    %v2006 = vunpack.c.l.b16 %v1966
    %v2007 = vunpack.c.l.b16 %v1967
    %v2008 = vunpack.c.l.b16 %v1968
    %v2009 = vunpack.c.l.b16 %v1969
    %v2010 = vunpack.c.l.b16 %v1970
    %v2011 = vunpack.c.l.b16 %v1971
    %v2012 = vunpack.c.l.b16 %v1972
    %v2013 = vunpack.c.l.b16 %v1973
    %v2014 = vunpack.c.l.b16 %v1974
    %v2015 = vunpack.c.l.b16 %v1975
    %v2016 = vunpack.c.l.b16 %v1976
    %v2017 = vunpack.c.l.b16 %v1977
    %v2018 = vunpack.c.l.b16 %v1978
    %v2019 = vunpack.c.l.b16 %v1979
    %v2020 = vunpack.c.l.b16 %v1980
    %v2021 = vunpack.c.l.b16 %v1981
    %v2022 = vpack.c.b16 %v2007, %v2006
    %v2023 = vpack.c.b16 %v2009, %v2008
    %v2024 = vpack.c.b16 %v2011, %v2010
    %v2025 = vpack.c.b16 %v2013, %v2012
    %v2026 = vpack.c.b16 %v2015, %v2014
    %v2027 = vpack.c.b16 %v2017, %v2016
    %v2028 = vpack.c.b16 %v2019, %v2018
    %v2029 = vpack.c.b16 %v2021, %v2020
    %v2031 = vsel %vm230, %v1982, 0
    %v2034 = vsel %vm230, %v1983, 0
    %v2037 = vsel %vm230, %v1984, 0
    %v2040 = vsel %vm230, %v1985, 0
    %v2043 = vsel %vm230, %v1986, 0
    %v2046 = vsel %vm230, %v1987, 0
    %v2049 = vsel %vm230, %v1988, 0
    %v2052 = vsel %vm230, %v1989, 0
    %v2055 = vsel %vm230, %v2022, 0
    %v2058 = vsel %vm230, %v2023, 0
    %v2061 = vsel %vm230, %v2024, 0
    %v2064 = vsel %vm230, %v2025, 0
    %v2067 = vsel %vm230, %v2026, 0
    %v2070 = vsel %vm230, %v2027, 0
    %v2073 = vsel %vm230, %v2028, 0
    %v2076 = vsel %vm230, %v2029, 0
    %2078 = vmatpush.bf16.xpose.msra.mxu0 %v2076
    %2079 = vmatpush.bf16.xpose.msra.mxu0 %v2073
    %2080 = vmatpush.bf16.xpose.msra.mxu0 %v2070
    %2081 = vmatpush.bf16.xpose.msra.mxu0 %v2067
    %2082 = vmatpush.bf16.xpose.msra.mxu0 %v2064
    %2083 = vmatpush.bf16.xpose.msra.mxu0 %v2061
    %2084 = vmatpush.bf16.xpose.msra.mxu0 %v2058
    %2085 = vmatpush.bf16.xpose.msra.mxu0 %v2055
    %2086 = vmatmul.bf16.gmra.mxu0 %v2031
    %v2087 = vpop.f32.mrf.mxu0
    %v2088 = vadd.f32 0.0, %v2087
    %v2089 = vpop.f32.mrf.mxu0
    %v2090 = vadd.f32 0.0, %v2089
    %2091 = vmatmul.bf16.gmra.mxu0 %v2034
    %v2092 = vpop.f32.mrf.mxu0
    %v2093 = vadd.f32 0.0, %v2092
    %v2094 = vpop.f32.mrf.mxu0
    %v2095 = vadd.f32 0.0, %v2094
    %2096 = vmatmul.bf16.gmra.mxu0 %v2037
    %v2097 = vpop.f32.mrf.mxu0
    %v2098 = vadd.f32 0.0, %v2097
    %v2099 = vpop.f32.mrf.mxu0
    %v2100 = vadd.f32 0.0, %v2099
    %2101 = vmatmul.bf16.gmra.mxu0 %v2040
    %v2102 = vpop.f32.mrf.mxu0
    %v2103 = vadd.f32 0.0, %v2102
    %v2104 = vpop.f32.mrf.mxu0
    %v2105 = vadd.f32 0.0, %v2104
    %2106 = vmatmul.bf16.gmra.mxu0 %v2043
    %v2107 = vpop.f32.mrf.mxu0
    %v2108 = vadd.f32 0.0, %v2107
    %v2109 = vpop.f32.mrf.mxu0
    %v2110 = vadd.f32 0.0, %v2109
    %2111 = vmatmul.bf16.gmra.mxu0 %v2046
    %v2112 = vpop.f32.mrf.mxu0
    %v2113 = vadd.f32 0.0, %v2112
    %v2114 = vpop.f32.mrf.mxu0
    %v2115 = vadd.f32 0.0, %v2114
    %2116 = vmatmul.bf16.gmra.mxu0 %v2049
    %v2117 = vpop.f32.mrf.mxu0
    %v2118 = vadd.f32 0.0, %v2117
    %v2119 = vpop.f32.mrf.mxu0
    %v2120 = vadd.f32 0.0, %v2119
    %2121 = vmatmul.bf16.gmra.mxu0 %v2052
    %v2122 = vpop.f32.mrf.mxu0
    %v2123 = vadd.f32 0.0, %v2122
    %v2124 = vpop.f32.mrf.mxu0
    %v2125 = vadd.f32 0.0, %v2124
    %2126 = vdwg.mxu0
    %s2127 = scalar_lea.vmem %s4, 3
    %v2128 = vld [vmem:[%s2127] sm:$0x1]
    %v2130 = vperm.slane %v2128, 0
    %v2132 = vsub.f32 %v2130, %v2088
    %v2133 = vsub.f32 %v2130, %v2090
    %v2134 = vsub.f32 %v2130, %v2093
    %v2135 = vsub.f32 %v2130, %v2095
    %v2136 = vsub.f32 %v2130, %v2098
    %v2137 = vsub.f32 %v2130, %v2100
    %v2138 = vsub.f32 %v2130, %v2103
    %v2139 = vsub.f32 %v2130, %v2105
    %v2140 = vsub.f32 %v2130, %v2108
    %v2141 = vsub.f32 %v2130, %v2110
    %v2142 = vsub.f32 %v2130, %v2113
    %v2143 = vsub.f32 %v2130, %v2115
    %v2144 = vsub.f32 %v2130, %v2118
    %v2145 = vsub.f32 %v2130, %v2120
    %v2146 = vsub.f32 %v2130, %v2123
    %v2147 = vsub.f32 %v2130, %v2125
    %2148 = vmin.xlane.f32.xlu0 %v2132
    %v2149 = vpop.xlane.xlu0 %2148
    %2150 = vmin.xlane.f32.xlu0 %v2133
    %v2151 = vpop.xlane.xlu0 %2150
    %2152 = vmin.xlane.f32.xlu0 %v2134
    %v2153 = vpop.xlane.xlu0 %2152
    %2154 = vmin.xlane.f32.xlu0 %v2135
    %v2155 = vpop.xlane.xlu0 %2154
    %2156 = vmin.xlane.f32.xlu0 %v2136
    %v2157 = vpop.xlane.xlu0 %2156
    %2158 = vmin.xlane.f32.xlu0 %v2137
    %v2159 = vpop.xlane.xlu0 %2158
    %2160 = vmin.xlane.f32.xlu0 %v2138
    %v2161 = vpop.xlane.xlu0 %2160
    %2162 = vmin.xlane.f32.xlu0 %v2139
    %v2163 = vpop.xlane.xlu0 %2162
    %2164 = vmin.xlane.f32.xlu0 %v2140
    %v2165 = vpop.xlane.xlu0 %2164
    %2166 = vmin.xlane.f32.xlu0 %v2141
    %v2167 = vpop.xlane.xlu0 %2166
    %2168 = vmin.xlane.f32.xlu0 %v2142
    %v2169 = vpop.xlane.xlu0 %2168
    %2170 = vmin.xlane.f32.xlu0 %v2143
    %v2171 = vpop.xlane.xlu0 %2170
    %2172 = vmin.xlane.f32.xlu0 %v2144
    %v2173 = vpop.xlane.xlu0 %2172
    %2174 = vmin.xlane.f32.xlu0 %v2145
    %v2175 = vpop.xlane.xlu0 %2174
    %2176 = vmin.xlane.f32.xlu0 %v2146
    %v2177 = vpop.xlane.xlu0 %2176
    %2178 = vmin.xlane.f32.xlu0 %v2147
    %v2179 = vpop.xlane.xlu0 %2178
    %vm2180 = vcmp.eq.f32.partialorder %v2132, %v2149
    %vm2181 = vcmp.eq.f32.partialorder %v2133, %v2151
    %vm2182 = vcmp.eq.f32.partialorder %v2134, %v2153
    %vm2183 = vcmp.eq.f32.partialorder %v2135, %v2155
    %vm2184 = vcmp.eq.f32.partialorder %v2136, %v2157
    %vm2185 = vcmp.eq.f32.partialorder %v2137, %v2159
    %vm2186 = vcmp.eq.f32.partialorder %v2138, %v2161
    %vm2187 = vcmp.eq.f32.partialorder %v2139, %v2163
    %vm2188 = vcmp.eq.f32.partialorder %v2140, %v2165
    %vm2189 = vcmp.eq.f32.partialorder %v2141, %v2167
    %vm2190 = vcmp.eq.f32.partialorder %v2142, %v2169
    %vm2191 = vcmp.eq.f32.partialorder %v2143, %v2171
    %vm2192 = vcmp.eq.f32.partialorder %v2144, %v2173
    %vm2193 = vcmp.eq.f32.partialorder %v2145, %v2175
    %vm2194 = vcmp.eq.f32.partialorder %v2146, %v2177
    %vm2195 = vcmp.eq.f32.partialorder %v2147, %v2179
    %v2196 = vsel %vm2180, %v165, 128
    %v2197 = vsel %vm2181, %v165, 128
    %v2198 = vsel %vm2182, %v165, 128
    %v2199 = vsel %vm2183, %v165, 128
    %v2200 = vsel %vm2184, %v165, 128
    %v2201 = vsel %vm2185, %v165, 128
    %v2202 = vsel %vm2186, %v165, 128
    %v2203 = vsel %vm2187, %v165, 128
    %v2204 = vsel %vm2188, %v165, 128
    %v2205 = vsel %vm2189, %v165, 128
    %v2206 = vsel %vm2190, %v165, 128
    %v2207 = vsel %vm2191, %v165, 128
    %v2208 = vsel %vm2192, %v165, 128
    %v2209 = vsel %vm2193, %v165, 128
    %v2210 = vsel %vm2194, %v165, 128
    %v2211 = vsel %vm2195, %v165, 128
    %v2212 = vand.u32 %v2196, 65535
    %v2213 = vshra.s32 %v2196, 16
    %v2214 = vcvt.s32.f32 %v2212
    %v2215 = vcvt.s32.f32 %v2213
    %2216 = vmin.xlane.f32.xlu0 %v2215
    %v2217 = vpop.xlane.xlu0 %2216
    %vm2218 = vcmp.eq.f32.partialorder %v2215, %v2217
    %v2219 = vsel %vm2218, %v2214, inf
    %2220 = vmin.xlane.f32.xlu0 %v2219
    %v2221 = vpop.xlane.xlu0 %2220
    %v2222 = vcvt.f32.s32 %v2221
    %v2223 = vcvt.f32.s32 %v2217
    %v2224 = vshll.u32 %v2223, 16
    %v2225 = vadd.s32 %v2224, %v2222
    %v2226 = vand.u32 %v2197, 65535
    %v2227 = vshra.s32 %v2197, 16
    %v2228 = vcvt.s32.f32 %v2226
    %v2229 = vcvt.s32.f32 %v2227
    %2230 = vmin.xlane.f32.xlu0 %v2229
    %v2231 = vpop.xlane.xlu0 %2230
    %vm2232 = vcmp.eq.f32.partialorder %v2229, %v2231
    %v2233 = vsel %vm2232, %v2228, inf
    %2234 = vmin.xlane.f32.xlu0 %v2233
    %v2235 = vpop.xlane.xlu0 %2234
    %v2236 = vcvt.f32.s32 %v2235
    %v2237 = vcvt.f32.s32 %v2231
    %v2238 = vshll.u32 %v2237, 16
    %v2239 = vadd.s32 %v2238, %v2236
    %v2240 = vand.u32 %v2198, 65535
    %v2241 = vshra.s32 %v2198, 16
    %v2242 = vcvt.s32.f32 %v2240
    %v2243 = vcvt.s32.f32 %v2241
    %2244 = vmin.xlane.f32.xlu0 %v2243
    %v2245 = vpop.xlane.xlu0 %2244
    %vm2246 = vcmp.eq.f32.partialorder %v2243, %v2245
    %v2247 = vsel %vm2246, %v2242, inf
    %2248 = vmin.xlane.f32.xlu0 %v2247
    %v2249 = vpop.xlane.xlu0 %2248
    %v2250 = vcvt.f32.s32 %v2249
    %v2251 = vcvt.f32.s32 %v2245
    %v2252 = vshll.u32 %v2251, 16
    %v2253 = vadd.s32 %v2252, %v2250
    %v2254 = vand.u32 %v2199, 65535
    %v2255 = vshra.s32 %v2199, 16
    %v2256 = vcvt.s32.f32 %v2254
    %v2257 = vcvt.s32.f32 %v2255
    %2258 = vmin.xlane.f32.xlu0 %v2257
    %v2259 = vpop.xlane.xlu0 %2258
    %vm2260 = vcmp.eq.f32.partialorder %v2257, %v2259
    %v2261 = vsel %vm2260, %v2256, inf
    %2262 = vmin.xlane.f32.xlu0 %v2261
    %v2263 = vpop.xlane.xlu0 %2262
    %v2264 = vcvt.f32.s32 %v2263
    %v2265 = vcvt.f32.s32 %v2259
    %v2266 = vshll.u32 %v2265, 16
    %v2267 = vadd.s32 %v2266, %v2264
    %v2268 = vand.u32 %v2200, 65535
    %v2269 = vshra.s32 %v2200, 16
    %v2270 = vcvt.s32.f32 %v2268
    %v2271 = vcvt.s32.f32 %v2269
    %2272 = vmin.xlane.f32.xlu0 %v2271
    %v2273 = vpop.xlane.xlu0 %2272
    %vm2274 = vcmp.eq.f32.partialorder %v2271, %v2273
    %v2275 = vsel %vm2274, %v2270, inf
    %2276 = vmin.xlane.f32.xlu0 %v2275
    %v2277 = vpop.xlane.xlu0 %2276
    %v2278 = vcvt.f32.s32 %v2277
    %v2279 = vcvt.f32.s32 %v2273
    %v2280 = vshll.u32 %v2279, 16
    %v2281 = vadd.s32 %v2280, %v2278
    %v2282 = vand.u32 %v2201, 65535
    %v2283 = vshra.s32 %v2201, 16
    %v2284 = vcvt.s32.f32 %v2282
    %v2285 = vcvt.s32.f32 %v2283
    %2286 = vmin.xlane.f32.xlu0 %v2285
    %v2287 = vpop.xlane.xlu0 %2286
    %vm2288 = vcmp.eq.f32.partialorder %v2285, %v2287
    %v2289 = vsel %vm2288, %v2284, inf
    %2290 = vmin.xlane.f32.xlu0 %v2289
    %v2291 = vpop.xlane.xlu0 %2290
    %v2292 = vcvt.f32.s32 %v2291
    %v2293 = vcvt.f32.s32 %v2287
    %v2294 = vshll.u32 %v2293, 16
    %v2295 = vadd.s32 %v2294, %v2292
    %v2296 = vand.u32 %v2202, 65535
    %v2297 = vshra.s32 %v2202, 16
    %v2298 = vcvt.s32.f32 %v2296
    %v2299 = vcvt.s32.f32 %v2297
    %2300 = vmin.xlane.f32.xlu0 %v2299
    %v2301 = vpop.xlane.xlu0 %2300
    %vm2302 = vcmp.eq.f32.partialorder %v2299, %v2301
    %v2303 = vsel %vm2302, %v2298, inf
    %2304 = vmin.xlane.f32.xlu0 %v2303
    %v2305 = vpop.xlane.xlu0 %2304
    %v2306 = vcvt.f32.s32 %v2305
    %v2307 = vcvt.f32.s32 %v2301
    %v2308 = vshll.u32 %v2307, 16
    %v2309 = vadd.s32 %v2308, %v2306
    %v2310 = vand.u32 %v2203, 65535
    %v2311 = vshra.s32 %v2203, 16
    %v2312 = vcvt.s32.f32 %v2310
    %v2313 = vcvt.s32.f32 %v2311
    %2314 = vmin.xlane.f32.xlu0 %v2313
    %v2315 = vpop.xlane.xlu0 %2314
    %vm2316 = vcmp.eq.f32.partialorder %v2313, %v2315
    %v2317 = vsel %vm2316, %v2312, inf
    %2318 = vmin.xlane.f32.xlu0 %v2317
    %v2319 = vpop.xlane.xlu0 %2318
    %v2320 = vcvt.f32.s32 %v2319
    %v2321 = vcvt.f32.s32 %v2315
    %v2322 = vshll.u32 %v2321, 16
    %v2323 = vadd.s32 %v2322, %v2320
    %v2324 = vand.u32 %v2204, 65535
    %v2325 = vshra.s32 %v2204, 16
    %v2326 = vcvt.s32.f32 %v2324
    %v2327 = vcvt.s32.f32 %v2325
    %2328 = vmin.xlane.f32.xlu0 %v2327
    %v2329 = vpop.xlane.xlu0 %2328
    %vm2330 = vcmp.eq.f32.partialorder %v2327, %v2329
    %v2331 = vsel %vm2330, %v2326, inf
    %2332 = vmin.xlane.f32.xlu0 %v2331
    %v2333 = vpop.xlane.xlu0 %2332
    %v2334 = vcvt.f32.s32 %v2333
    %v2335 = vcvt.f32.s32 %v2329
    %v2336 = vshll.u32 %v2335, 16
    %v2337 = vadd.s32 %v2336, %v2334
    %v2338 = vand.u32 %v2205, 65535
    %v2339 = vshra.s32 %v2205, 16
    %v2340 = vcvt.s32.f32 %v2338
    %v2341 = vcvt.s32.f32 %v2339
    %2342 = vmin.xlane.f32.xlu0 %v2341
    %v2343 = vpop.xlane.xlu0 %2342
    %vm2344 = vcmp.eq.f32.partialorder %v2341, %v2343
    %v2345 = vsel %vm2344, %v2340, inf
    %2346 = vmin.xlane.f32.xlu0 %v2345
    %v2347 = vpop.xlane.xlu0 %2346
    %v2348 = vcvt.f32.s32 %v2347
    %v2349 = vcvt.f32.s32 %v2343
    %v2350 = vshll.u32 %v2349, 16
    %v2351 = vadd.s32 %v2350, %v2348
    %v2352 = vand.u32 %v2206, 65535
    %v2353 = vshra.s32 %v2206, 16
    %v2354 = vcvt.s32.f32 %v2352
    %v2355 = vcvt.s32.f32 %v2353
    %2356 = vmin.xlane.f32.xlu0 %v2355
    %v2357 = vpop.xlane.xlu0 %2356
    %vm2358 = vcmp.eq.f32.partialorder %v2355, %v2357
    %v2359 = vsel %vm2358, %v2354, inf
    %2360 = vmin.xlane.f32.xlu0 %v2359
    %v2361 = vpop.xlane.xlu0 %2360
    %v2362 = vcvt.f32.s32 %v2361
    %v2363 = vcvt.f32.s32 %v2357
    %v2364 = vshll.u32 %v2363, 16
    %v2365 = vadd.s32 %v2364, %v2362
    %v2366 = vand.u32 %v2207, 65535
    %v2367 = vshra.s32 %v2207, 16
    %v2368 = vcvt.s32.f32 %v2366
    %v2369 = vcvt.s32.f32 %v2367
    %2370 = vmin.xlane.f32.xlu0 %v2369
    %v2371 = vpop.xlane.xlu0 %2370
    %vm2372 = vcmp.eq.f32.partialorder %v2369, %v2371
    %v2373 = vsel %vm2372, %v2368, inf
    %2374 = vmin.xlane.f32.xlu0 %v2373
    %v2375 = vpop.xlane.xlu0 %2374
    %v2376 = vcvt.f32.s32 %v2375
    %v2377 = vcvt.f32.s32 %v2371
    %v2378 = vshll.u32 %v2377, 16
    %v2379 = vadd.s32 %v2378, %v2376
    %v2380 = vand.u32 %v2208, 65535
    %v2381 = vshra.s32 %v2208, 16
    %v2382 = vcvt.s32.f32 %v2380
    %v2383 = vcvt.s32.f32 %v2381
    %2384 = vmin.xlane.f32.xlu0 %v2383
    %v2385 = vpop.xlane.xlu0 %2384
    %vm2386 = vcmp.eq.f32.partialorder %v2383, %v2385
    %v2387 = vsel %vm2386, %v2382, inf
    %2388 = vmin.xlane.f32.xlu0 %v2387
    %v2389 = vpop.xlane.xlu0 %2388
    %v2390 = vcvt.f32.s32 %v2389
    %v2391 = vcvt.f32.s32 %v2385
    %v2392 = vshll.u32 %v2391, 16
    %v2393 = vadd.s32 %v2392, %v2390
    %v2394 = vand.u32 %v2209, 65535
    %v2395 = vshra.s32 %v2209, 16
    %v2396 = vcvt.s32.f32 %v2394
    %v2397 = vcvt.s32.f32 %v2395
    %2398 = vmin.xlane.f32.xlu0 %v2397
    %v2399 = vpop.xlane.xlu0 %2398
    %vm2400 = vcmp.eq.f32.partialorder %v2397, %v2399
    %v2401 = vsel %vm2400, %v2396, inf
    %2402 = vmin.xlane.f32.xlu0 %v2401
    %v2403 = vpop.xlane.xlu0 %2402
    %v2404 = vcvt.f32.s32 %v2403
    %v2405 = vcvt.f32.s32 %v2399
    %v2406 = vshll.u32 %v2405, 16
    %v2407 = vadd.s32 %v2406, %v2404
    %v2408 = vand.u32 %v2210, 65535
    %v2409 = vshra.s32 %v2210, 16
    %v2410 = vcvt.s32.f32 %v2408
    %v2411 = vcvt.s32.f32 %v2409
    %2412 = vmin.xlane.f32.xlu0 %v2411
    %v2413 = vpop.xlane.xlu0 %2412
    %vm2414 = vcmp.eq.f32.partialorder %v2411, %v2413
    %v2415 = vsel %vm2414, %v2410, inf
    %2416 = vmin.xlane.f32.xlu0 %v2415
    %v2417 = vpop.xlane.xlu0 %2416
    %v2418 = vcvt.f32.s32 %v2417
    %v2419 = vcvt.f32.s32 %v2413
    %v2420 = vshll.u32 %v2419, 16
    %v2421 = vadd.s32 %v2420, %v2418
    %v2422 = vand.u32 %v2211, 65535
    %v2423 = vshra.s32 %v2211, 16
    %v2424 = vcvt.s32.f32 %v2422
    %v2425 = vcvt.s32.f32 %v2423
    %2426 = vmin.xlane.f32.xlu0 %v2425
    %v2427 = vpop.xlane.xlu0 %2426
    %vm2428 = vcmp.eq.f32.partialorder %v2425, %v2427
    %v2429 = vsel %vm2428, %v2424, inf
    %2430 = vmin.xlane.f32.xlu0 %v2429
    %v2431 = vpop.xlane.xlu0 %2430
    %v2432 = vcvt.f32.s32 %v2431
    %v2433 = vcvt.f32.s32 %v2427
    %v2434 = vshll.u32 %v2433, 16
    %v2435 = vadd.s32 %v2434, %v2432
    %v2436 = vperm.slane %v425, %v165
    %v2437 = vadd.s32 %v165, 4294967288
    %v2438 = vperm.slane %v439, %v2437
    %vm2439 = vcmask 130112
    %v2440 = vsel %vm2439, %v2438, %v2436
    %v2441 = vadd.s32 %v165, 4294967280
    %v2442 = vperm.slane %v453, %v2441
    %vm2443 = vcmask 195712
    %v2444 = vsel %vm2443, %v2442, %v2440
    %v2445 = vadd.s32 %v165, 4294967272
    %v2446 = vperm.slane %v467, %v2445
    %vm2447 = vcmask 261312
    %v2448 = vsel %vm2447, %v2446, %v2444
    %v2449 = vadd.s32 %v165, 4294967264
    %v2450 = vperm.slane %v481, %v2449
    %vm2451 = vcmask 326912
    %v2452 = vsel %vm2451, %v2450, %v2448
    %v2453 = vadd.s32 %v165, 4294967256
    %v2454 = vperm.slane %v495, %v2453
    %vm2455 = vcmask 392512
    %v2456 = vsel %vm2455, %v2454, %v2452
    %v2457 = vadd.s32 %v165, 4294967248
    %v2458 = vperm.slane %v509, %v2457
    %vm2459 = vcmask 458112
    %v2460 = vsel %vm2459, %v2458, %v2456
    %v2461 = vadd.s32 %v165, 4294967240
    %v2462 = vperm.slane %v523, %v2461
    %vm2463 = vcmask 523712
    %v2464 = vsel %vm2463, %v2462, %v2460
    %v2465 = vadd.s32 %v165, 4294967232
    %v2466 = vperm.slane %v537, %v2465
    %vm2467 = vcmask 589312
    %v2468 = vsel %vm2467, %v2466, %v2464
    %v2469 = vadd.s32 %v165, 4294967224
    %v2470 = vperm.slane %v551, %v2469
    %vm2471 = vcmask 654912
    %v2472 = vsel %vm2471, %v2470, %v2468
    %v2473 = vadd.s32 %v165, 4294967216
    %v2474 = vperm.slane %v565, %v2473
    %vm2475 = vcmask 720512
    %v2476 = vsel %vm2475, %v2474, %v2472
    %v2477 = vadd.s32 %v165, 4294967208
    %v2478 = vperm.slane %v579, %v2477
    %vm2479 = vcmask 786112
    %v2480 = vsel %vm2479, %v2478, %v2476
    %v2481 = vadd.s32 %v165, 4294967200
    %v2482 = vperm.slane %v593, %v2481
    %vm2483 = vcmask 851712
    %v2484 = vsel %vm2483, %v2482, %v2480
    %v2485 = vadd.s32 %v165, 4294967192
    %v2486 = vperm.slane %v607, %v2485
    %vm2487 = vcmask 917312
    %v2488 = vsel %vm2487, %v2486, %v2484
    %v2489 = vadd.s32 %v165, 4294967184
    %v2490 = vperm.slane %v621, %v2489
    %vm2491 = vcmask 982912
    %v2492 = vsel %vm2491, %v2490, %v2488
    %v2493 = vadd.s32 %v165, 4294967176
    %v2494 = vperm.slane %v635, %v2493
    %vm2495 = vcmask 1048512
    %v2496 = vsel %vm2495, %v2494, %v2492
    %v2497 = vperm.slane %v1025, %v165
    %v2498 = vperm.slane %v1039, %v2437
    %v2499 = vsel %vm2439, %v2498, %v2497
    %v2500 = vperm.slane %v1053, %v2441
    %v2501 = vsel %vm2443, %v2500, %v2499
    %v2502 = vperm.slane %v1067, %v2445
    %v2503 = vsel %vm2447, %v2502, %v2501
    %v2504 = vperm.slane %v1081, %v2449
    %v2505 = vsel %vm2451, %v2504, %v2503
    %v2506 = vperm.slane %v1095, %v2453
    %v2507 = vsel %vm2455, %v2506, %v2505
    %v2508 = vperm.slane %v1109, %v2457
    %v2509 = vsel %vm2459, %v2508, %v2507
    %v2510 = vperm.slane %v1123, %v2461
    %v2511 = vsel %vm2463, %v2510, %v2509
    %v2512 = vperm.slane %v1137, %v2465
    %v2513 = vsel %vm2467, %v2512, %v2511
    %v2514 = vperm.slane %v1151, %v2469
    %v2515 = vsel %vm2471, %v2514, %v2513
    %v2516 = vperm.slane %v1165, %v2473
    %v2517 = vsel %vm2475, %v2516, %v2515
    %v2518 = vperm.slane %v1179, %v2477
    %v2519 = vsel %vm2479, %v2518, %v2517
    %v2520 = vperm.slane %v1193, %v2481
    %v2521 = vsel %vm2483, %v2520, %v2519
    %v2522 = vperm.slane %v1207, %v2485
    %v2523 = vsel %vm2487, %v2522, %v2521
    %v2524 = vperm.slane %v1221, %v2489
    %v2525 = vsel %vm2491, %v2524, %v2523
    %v2526 = vperm.slane %v1235, %v2493
    %v2527 = vsel %vm2495, %v2526, %v2525
    %v2528 = vperm.slane %v1625, %v165
    %v2529 = vperm.slane %v1639, %v2437
    %v2530 = vsel %vm2439, %v2529, %v2528
    %v2531 = vperm.slane %v1653, %v2441
    %v2532 = vsel %vm2443, %v2531, %v2530
    %v2533 = vperm.slane %v1667, %v2445
    %v2534 = vsel %vm2447, %v2533, %v2532
    %v2535 = vperm.slane %v1681, %v2449
    %v2536 = vsel %vm2451, %v2535, %v2534
    %v2537 = vperm.slane %v1695, %v2453
    %v2538 = vsel %vm2455, %v2537, %v2536
    %v2539 = vperm.slane %v1709, %v2457
    %v2540 = vsel %vm2459, %v2539, %v2538
    %v2541 = vperm.slane %v1723, %v2461
    %v2542 = vsel %vm2463, %v2541, %v2540
    %v2543 = vperm.slane %v1737, %v2465
    %v2544 = vsel %vm2467, %v2543, %v2542
    %v2545 = vperm.slane %v1751, %v2469
    %v2546 = vsel %vm2471, %v2545, %v2544
    %v2547 = vperm.slane %v1765, %v2473
    %v2548 = vsel %vm2475, %v2547, %v2546
    %v2549 = vperm.slane %v1779, %v2477
    %v2550 = vsel %vm2479, %v2549, %v2548
    %v2551 = vperm.slane %v1793, %v2481
    %v2552 = vsel %vm2483, %v2551, %v2550
    %v2553 = vperm.slane %v1807, %v2485
    %v2554 = vsel %vm2487, %v2553, %v2552
    %v2555 = vperm.slane %v1821, %v2489
    %v2556 = vsel %vm2491, %v2555, %v2554
    %v2557 = vperm.slane %v1835, %v2493
    %v2558 = vsel %vm2495, %v2557, %v2556
    %v2559 = vperm.slane %v2225, %v165
    %v2560 = vperm.slane %v2239, %v2437
    %v2561 = vsel %vm2439, %v2560, %v2559
    %v2562 = vperm.slane %v2253, %v2441
    %v2563 = vsel %vm2443, %v2562, %v2561
    %v2564 = vperm.slane %v2267, %v2445
    %v2565 = vsel %vm2447, %v2564, %v2563
    %v2566 = vperm.slane %v2281, %v2449
    %v2567 = vsel %vm2451, %v2566, %v2565
    %v2568 = vperm.slane %v2295, %v2453
    %v2569 = vsel %vm2455, %v2568, %v2567
    %v2570 = vperm.slane %v2309, %v2457
    %v2571 = vsel %vm2459, %v2570, %v2569
    %v2572 = vperm.slane %v2323, %v2461
    %v2573 = vsel %vm2463, %v2572, %v2571
    %v2574 = vperm.slane %v2337, %v2465
    %v2575 = vsel %vm2467, %v2574, %v2573
    %v2576 = vperm.slane %v2351, %v2469
    %v2577 = vsel %vm2471, %v2576, %v2575
    %v2578 = vperm.slane %v2365, %v2473
    %v2579 = vsel %vm2475, %v2578, %v2577
    %v2580 = vperm.slane %v2379, %v2477
    %v2581 = vsel %vm2479, %v2580, %v2579
    %v2582 = vperm.slane %v2393, %v2481
    %v2583 = vsel %vm2483, %v2582, %v2581
    %v2584 = vperm.slane %v2407, %v2485
    %v2585 = vsel %vm2487, %v2584, %v2583
    %v2586 = vperm.slane %v2421, %v2489
    %v2587 = vsel %vm2491, %v2586, %v2585
    %v2588 = vperm.slane %v2435, %v2493
    %v2589 = vsel %vm2495, %v2588, %v2587
    %vm2590 = vcmask 1040384
    %v2591 = vsel %vm2590, %v2496, %v2527
    %vm2592 = vcmask 1041408
    %v2593 = vsel %vm2592, %v2591, %v2558
    %vm2594 = vcmask 1042432
    %v2595 = vsel %vm2594, %v2593, %v2589
    %2596 = vst [vmem:[#allocation2] sm:$0xf] %v2595
    // Predicated region
    $region22: #{tpu_custom_call.1} parent=1 // pred_check
      _
    $region23: #{tpu_custom_call.1} parent=1 // pred_check_branch
      %2598 = sbr.rel (0) target = $region25
    $region24: #{tpu_custom_call.1} parent=1 // pred_region
      %2600 = vsyncadd [#allocation3], 0
      %s2602 = sshll.u32 [#allocation2], 4
      %s2603 = int_to_ptr.vmem [resolvable:$true] %s2602
      %s2604 = sshll.u32 %s5, 4
      %s2605 = int_to_ptr.hbm [resolvable:$true] %s2604
      %2607 = dma.vmem_to_hbm [thread:$0]  %s2603, 64, %s2605, [#allocation3]
    $region25: #{tpu_custom_call.1} parent=1 // pred_fallthru
      _
    // Predicated region
    $region26: #{tpu_custom_call.1} parent=1 // pred_check
      _
    $region27: #{tpu_custom_call.1} parent=1 // pred_check_branch
      %2609 = sbr.rel (0) target = $region29
    $region28: #{tpu_custom_call.1} parent=1 // pred_region
      %2611 = dma.done [#allocation3], 64
    $region29: #{tpu_custom_call.1} parent=1 // pred_fallthru
      _
    %2612 = vsyncpa [#allocation3], 1

</llo_original>
